<compile_context>
chip_gen: v5e
topology: v5e:2x2
jax: 0.10.0
libtpu: 0.0.40
codegen_flags: <defaults>
</compile_context>

<pallas_src>
import jax
import jax.numpy as jnp
from jax.experimental import pallas as pl
from jax.experimental.pallas import tpu as pltpu  # noqa: F401

# ---- problem dims (hardcoded in MyModel.__init__) ----
SENT_DIM = 768
WORD_DIM = 43            # len(idx_to_char)
HIDDEN_DIM = 1000
OUT_DIM = 43
IN_DIM = SENT_DIM + WORD_DIM   # 811

# ---- padded dims ----
WORD_PAD = 48            # 43 -> 48  (multiple of 16: bf16 sublane packing)
HID_PAD = 1024           # 1000 -> 8*128
OUT_PAD = 128            # 43 -> 128


def mlp_kernel(ctx_ref, cw_ref, w1a_ref, w1b_ref, b1_ref, w2_ref, b2_ref, o_ref):
    """fc1 (split context/word halves) + ReLU + fc2, all on-chip.

    Weights arrive as bf16; both dots accumulate in f32 on the MXU.
    """
    ctx = ctx_ref[...].astype(jnp.bfloat16)                       # (1, 768)
    cw = cw_ref[...].astype(jnp.bfloat16)                         # (1, 48)

    h = jnp.dot(ctx, w1a_ref[...], preferred_element_type=jnp.float32)
    h = h + jnp.dot(cw, w1b_ref[...], preferred_element_type=jnp.float32)
    h = jnp.maximum(h + b1_ref[...], 0.0)                         # (1, HID_PAD) f32

    o = jnp.dot(h.astype(jnp.bfloat16), w2_ref[...],
                preferred_element_type=jnp.float32)
    o_ref[...] = o + b2_ref[...]                                  # (1, OUT_PAD) f32


def _full_spec(shape):
    # Full-array block (exempt from the (8,128) divisibility rule); grid is ().
    return pl.BlockSpec(shape, lambda: (0,) * len(shape))


def prepare_params(w1, b1, w2, b2):
    """One-time weight preparation (call once, cache the result).

    Splits W1 into context/word halves, zero-pads to tile-friendly shapes and
    casts the big matrices to bf16.  Biases stay f32.
    """
    w1 = jnp.asarray(w1, jnp.float32)
    w1a = w1[:SENT_DIM, :].astype(jnp.bfloat16)                   # (768, 1000)
    w1b = w1[SENT_DIM:, :].astype(jnp.bfloat16)                   # (43, 1000)

    w1a_p = jnp.zeros((SENT_DIM, HID_PAD), jnp.bfloat16).at[:, :HIDDEN_DIM].set(w1a)
    w1b_p = jnp.zeros((WORD_PAD, HID_PAD), jnp.bfloat16).at[:WORD_DIM, :HIDDEN_DIM].set(w1b)
    b1_p = jnp.zeros((1, HID_PAD), jnp.float32).at[0, :HIDDEN_DIM].set(
        jnp.asarray(b1, jnp.float32))
    w2_p = jnp.zeros((HID_PAD, OUT_PAD), jnp.bfloat16).at[:HIDDEN_DIM, :OUT_DIM].set(
        jnp.asarray(w2, jnp.float32).astype(jnp.bfloat16))
    b2_p = jnp.zeros((1, OUT_PAD), jnp.float32).at[0, :OUT_DIM].set(
        jnp.asarray(b2, jnp.float32))
    return w1a_p, w1b_p, b1_p, w2_p, b2_p


@jax.jit
def mymodel_forward(context, curr_word, w1a_p, w1b_p, b1_p, w2_p, b2_p):
    """Pallas equivalent of MyModel.forward.  Returns logits of shape (1, 43), f32."""
    ctx = context.reshape(1, SENT_DIM).astype(jnp.float32)
    cw = curr_word.reshape(1, WORD_DIM).astype(jnp.float32)
    cw_p = jnp.pad(cw, ((0, 0), (0, WORD_PAD - WORD_DIM)))        # tiny (1,48) pad

    out_pad = pl.pallas_call(
        mlp_kernel,
        out_shape=jax.ShapeDtypeStruct((1, OUT_PAD), jnp.float32),
        in_specs=[
            _full_spec((1, SENT_DIM)),
            _full_spec((1, WORD_PAD)),
            _full_spec((SENT_DIM, HID_PAD)),
            _full_spec((WORD_PAD, HID_PAD)),
            _full_spec((1, HID_PAD)),
            _full_spec((HID_PAD, OUT_PAD)),
            _full_spec((1, OUT_PAD)),
        ],
        out_specs=_full_spec((1, OUT_PAD)),
    )(ctx, cw_p, w1a_p, w1b_p, b1_p, w2_p, b2_p)

    return out_pad[:, :OUT_DIM]                                   # (1, 43)

# TODO(synk): if this MLP runs inside an autoregressive generation loop, fuse the
# loop into one pallas_call (step grid axis, weight index_map -> (0, 0)) so the
# bf16 weights stay VMEM-resident across steps instead of being re-fetched per token.


def init_params(key):
    """PyTorch Linear default init: U(-1/sqrt(fan_in), 1/sqrt(fan_in))."""
    k1, k2, k3, k4 = jax.random.split(key, 4)
    bound1 = 1.0 / (IN_DIM ** 0.5)
    bound2 = 1.0 / (HIDDEN_DIM ** 0.5)
    w1 = jax.random.uniform(k1, (IN_DIM, HIDDEN_DIM), jnp.float32, -bound1, bound1)
    b1 = jax.random.uniform(k2, (HIDDEN_DIM,), jnp.float32, -bound1, bound1)
    w2 = jax.random.uniform(k3, (HIDDEN_DIM, OUT_DIM), jnp.float32, -bound2, bound2)
    b2 = jax.random.uniform(k4, (OUT_DIM,), jnp.float32, -bound2, bound2)
    return w1, b1, w2, b2


if __name__ == "__main__":
    key = jax.random.PRNGKey(0)
    kp, kc, kw = jax.random.split(key, 3)

    w1, b1, w2, b2 = init_params(kp)
    context = jax.random.normal(kc, (SENT_DIM,), jnp.float32)      # sentence embedding
    curr_word = jax.random.normal(kw, (WORD_DIM,), jnp.float32)    # char embedding of current word

    # One-time weight preparation (padding + bf16 cast), cached outside the forward.
    params = jax.block_until_ready(prepare_params(w1, b1, w2, b2))

    logits = mymodel_forward(context, curr_word, *params)
    logits = jax.block_until_ready(logits)

    # Reference in plain JAX using the same bf16-rounded weights / activations
    # (f32 accumulation), so the check isolates kernel correctness.
    x = jnp.concatenate([context.reshape(1, -1), curr_word.reshape(1, -1)], axis=1)
    xq = x.astype(jnp.bfloat16).astype(jnp.float32)
    w1q = w1.astype(jnp.bfloat16).astype(jnp.float32)
    w2q = w2.astype(jnp.bfloat16).astype(jnp.float32)
    h_ref = jnp.maximum(xq @ w1q + b1, 0.0)
    h_ref = h_ref.astype(jnp.bfloat16).astype(jnp.float32)
    ref = h_ref @ w2q + b2

    assert logits.shape == (1, OUT_DIM)
    assert jnp.allclose(logits, ref, atol=2e-3, rtol=2e-3), float(
        jnp.max(jnp.abs(logits - ref)))

    print("KERNEL_OK")
</pallas_src>

<mosaic_0001>
module attributes {stable_mosaic.version = 11 : i64} {
  func.func @mlp_kernel(%arg0: memref<1x768xf32, #tpu.memory_space<vmem>>, %arg1: memref<1x48xf32, #tpu.memory_space<vmem>>, %arg2: memref<768x1024xbf16, #tpu.memory_space<vmem>>, %arg3: memref<48x1024xbf16, #tpu.memory_space<vmem>>, %arg4: memref<1x1024xf32, #tpu.memory_space<vmem>>, %arg5: memref<1024x128xbf16, #tpu.memory_space<vmem>>, %arg6: memref<1x128xf32, #tpu.memory_space<vmem>>, %arg7: memref<1x128xf32, #tpu.memory_space<vmem>>) attributes {dimension_semantics = [], scalar_prefetch = 0 : i64, scratch_operands = 0 : i64, tpu.core_type = #tpu.core_type<tc>} {
    %c0 = arith.constant 0 : index
    %c0_0 = arith.constant 0 : index
    %0 = vector.load %arg0[%c0, %c0_0] : memref<1x768xf32, #tpu.memory_space<vmem>>, vector<1x768xf32>
    %1 = arith.truncf %0 : vector<1x768xf32> to vector<1x768xbf16>
    %c0_1 = arith.constant 0 : index
    %c0_2 = arith.constant 0 : index
    %2 = vector.load %arg1[%c0_1, %c0_2] : memref<1x48xf32, #tpu.memory_space<vmem>>, vector<1x48xf32>
    %3 = arith.truncf %2 : vector<1x48xf32> to vector<1x48xbf16>
    %c0_3 = arith.constant 0 : index
    %c0_4 = arith.constant 0 : index
    %4 = vector.load %arg2[%c0_3, %c0_4] : memref<768x1024xbf16, #tpu.memory_space<vmem>>, vector<768x1024xbf16>
    %cst = arith.constant dense<0.000000e+00> : vector<1x1024xf32>
    %5 = tpu.matmul %1, %4, %cst {dimension_numbers = #tpu.dot_dimension_numbers<[1], [0], [0], [1], [0, 0, 1, 1], [], []>} : vector<1x768xbf16>, vector<768x1024xbf16>, vector<1x1024xf32> -> vector<1x1024xf32>
    %c0_5 = arith.constant 0 : index
    %c0_6 = arith.constant 0 : index
    %6 = vector.load %arg3[%c0_5, %c0_6] : memref<48x1024xbf16, #tpu.memory_space<vmem>>, vector<48x1024xbf16>
    %cst_7 = arith.constant dense<0.000000e+00> : vector<1x1024xf32>
    %7 = tpu.matmul %3, %6, %cst_7 {dimension_numbers = #tpu.dot_dimension_numbers<[1], [0], [0], [1], [0, 0, 1, 1], [], []>} : vector<1x48xbf16>, vector<48x1024xbf16>, vector<1x1024xf32> -> vector<1x1024xf32>
    %8 = arith.addf %5, %7 : vector<1x1024xf32>
    %c0_8 = arith.constant 0 : index
    %c0_9 = arith.constant 0 : index
    %9 = vector.load %arg4[%c0_8, %c0_9] : memref<1x1024xf32, #tpu.memory_space<vmem>>, vector<1x1024xf32>
    %10 = arith.addf %8, %9 : vector<1x1024xf32>
    %cst_10 = arith.constant 0.000000e+00 : f32
    %11 = vector.broadcast %cst_10 : f32 to vector<1x1024xf32>
    %12 = arith.maximumf %10, %11 : vector<1x1024xf32>
    %13 = arith.truncf %12 : vector<1x1024xf32> to vector<1x1024xbf16>
    %c0_11 = arith.constant 0 : index
    %c0_12 = arith.constant 0 : index
    %14 = vector.load %arg5[%c0_11, %c0_12] : memref<1024x128xbf16, #tpu.memory_space<vmem>>, vector<1024x128xbf16>
    %cst_13 = arith.constant dense<0.000000e+00> : vector<1x128xf32>
    %15 = tpu.matmul %13, %14, %cst_13 {dimension_numbers = #tpu.dot_dimension_numbers<[1], [0], [0], [1], [0, 0, 1, 1], [], []>} : vector<1x1024xbf16>, vector<1024x128xbf16>, vector<1x128xf32> -> vector<1x128xf32>
    %c0_14 = arith.constant 0 : index
    %c0_15 = arith.constant 0 : index
    %16 = vector.load %arg6[%c0_14, %c0_15] : memref<1x128xf32, #tpu.memory_space<vmem>>, vector<1x128xf32>
    %17 = arith.addf %15, %16 : vector<1x128xf32>
    %c0_16 = arith.constant 0 : index
    %c0_17 = arith.constant 0 : index
    %18 = vector.load %arg7[%c0_16, %c0_17] : memref<1x128xf32, #tpu.memory_space<vmem>>, vector<1x128xf32>
    tpu.vector_store %arg7[%c0_16, %c0_17], %17 {strides = array<i32>} : memref<1x128xf32, #tpu.memory_space<vmem>>, vector<1x128xf32>,
    return
  }
}

</mosaic_0001>

<llo_original>
// kernel: mymodel_forward.1
$region0: #{mymodel_forward.1}
  #allocation0 [shape = 'u32[]', space=smem, size = 0x4, offset = 0x4, fixed_abs, tag = 'smem constant byte address 0x4 - core index']
  #allocation1 [shape = 'u32[72,128]{1,0:T(1,128)}', space=vmem, size = 0x9000, scoped, tag = 'internal scratch']
  %s0 = inlined_call_operand.vmem [shape: f32[1,768], index: 0, kind: input, shape index: {}]
  %s1 = inlined_call_operand.vmem [shape: f32[1,48], index: 1, kind: input, shape index: {}]
  %s2 = inlined_call_operand.hbm [shape: bf16[768,1024], index: 2, kind: input, shape index: {}]
  %s3 = inlined_call_operand.hbm [shape: bf16[48,1024], index: 3, kind: input, shape index: {}]
  %s4 = inlined_call_operand.hbm [shape: f32[1,1024], index: 4, kind: input, shape index: {}]
  %s5 = inlined_call_operand.hbm [shape: bf16[1024,128], index: 5, kind: input, shape index: {}]
  %s6 = inlined_call_operand.hbm [shape: f32[1,128], index: 6, kind: input, shape index: {}]
  %s7 = inlined_call_operand.hbm [shape: f32[1,128], index: 7, kind: output, shape index: {}]
  %s8 = sld [smem:[#allocation0]]
  $region58: #{mymodel_forward.1} parent=0
    _
  %s10 = ssub.s32 1, %s8
  %s11 = scalar_select 0, %s10, %s8
  $region1: #{mymodel_forward.1} parent=0
    #allocation2 [shape = 'u8[1572864]{0}', space=vmem, size = 0x180000, scoped, tag = 'input window, operand 2, single buffered']
    #allocation3 [shape = 's32[1]{0}', space=sflag, size = 0x4, scoped, tag = 'scoped memory for mymodel_forward.1']
    #allocation4 [shape = 's32[1]{0}', space=sflag, size = 0x4, scoped, tag = 'scoped memory for mymodel_forward.1']
    #allocation5 [shape = 'u8[98304]{0}', space=vmem, size = 0x18000, scoped, tag = 'input window, operand 3, single buffered']
    #allocation6 [shape = 's32[1]{0}', space=sflag, size = 0x4, scoped, tag = 'scoped memory for mymodel_forward.1']
    #allocation7 [shape = 'u8[4096]{0}', space=vmem, size = 0x1000, scoped, tag = 'input window, operand 4, single buffered']
    #allocation8 [shape = 'u8[262144]{0}', space=vmem, size = 0x40000, scoped, tag = 'input window, operand 5, single buffered']
    #allocation9 [shape = 's32[1]{0}', space=sflag, size = 0x4, scoped, tag = 'scoped memory for mymodel_forward.1']
    #allocation10 [shape = 'u8[512]{0}', space=vmem, size = 0x400, scoped, tag = 'input window, operand 6, single buffered']
    #allocation11 [shape = 'u8[512]{0}', space=vmem, size = 0x400, scoped, tag = 'output window, operand 0, single buffered']
    %12 = vsyncpa [#allocation3], 0
    %13 = vsyncpa [#allocation6], 0
    %14 = vsyncpa [#allocation9], 0
    %15 = vsyncpa [#allocation4], 0
    // Predicated region
    $region2: #{mymodel_forward.1} parent=1 // pred_check
      _
    $region3: #{mymodel_forward.1} parent=1 // pred_check_branch
      %17 = sbr.rel (0) target = $region5
    $region4: #{mymodel_forward.1} parent=1 // pred_region
      _
    $region5: #{mymodel_forward.1} parent=1 // pred_fallthru
      _
    // Predicated region
    $region6: #{mymodel_forward.1} parent=1 // pred_check
      _
    $region7: #{mymodel_forward.1} parent=1 // pred_check_branch
      %19 = sbr.rel (0) target = $region9
    $region8: #{mymodel_forward.1} parent=1 // pred_region
      _
    $region9: #{mymodel_forward.1} parent=1 // pred_fallthru
      _
    // Predicated region
    $region10: #{mymodel_forward.1} parent=1 // pred_check
      _
    $region11: #{mymodel_forward.1} parent=1 // pred_check_branch
      %21 = sbr.rel (0) target = $region13
    $region12: #{mymodel_forward.1} parent=1 // pred_region
      %23 = vsyncadd [#allocation3], 0
      %s24 = sshll.u32 %s2, 4
      %s25 = int_to_ptr.hbm [resolvable:$true] %s24
      %s26 = sshll.u32 [#allocation2], 4
      %s27 = int_to_ptr.vmem [resolvable:$true] %s26
      %32 = dma.hbm_to_vmem [thread:$0]  %s25, 49152, %s27, [#allocation3], 512, 512, 32
    $region13: #{mymodel_forward.1} parent=1 // pred_fallthru
      _
    // Predicated region
    $region14: #{mymodel_forward.1} parent=1 // pred_check
      _
    $region15: #{mymodel_forward.1} parent=1 // pred_check_branch
      %34 = sbr.rel (0) target = $region17
    $region16: #{mymodel_forward.1} parent=1 // pred_region
      %36 = vsyncadd [#allocation6], 0
      %s37 = sshll.u32 %s3, 4
      %s38 = int_to_ptr.hbm [resolvable:$true] %s37
      %s39 = sshll.u32 [#allocation5], 4
      %s40 = int_to_ptr.vmem [resolvable:$true] %s39
      %45 = dma.hbm_to_vmem [thread:$0]  %s38, 3072, %s40, [#allocation6], 512, 512, 32
    $region17: #{mymodel_forward.1} parent=1 // pred_fallthru
      _
    // Predicated region
    $region18: #{mymodel_forward.1} parent=1 // pred_check
      _
    $region19: #{mymodel_forward.1} parent=1 // pred_check_branch
      %47 = sbr.rel (0) target = $region21
    $region20: #{mymodel_forward.1} parent=1 // pred_region
      %49 = vsyncadd [#allocation6], 0
      %s51 = sshll.u32 %s4, 4
      %s52 = int_to_ptr.hbm [resolvable:$true] %s51
      %s53 = sshll.u32 [#allocation7], 4
      %s54 = int_to_ptr.vmem [resolvable:$true] %s53
      %56 = dma.hbm_to_vmem [thread:$0]  %s52, 128, %s54, [#allocation6]
    $region21: #{mymodel_forward.1} parent=1 // pred_fallthru
      _
    // Predicated region
    $region22: #{mymodel_forward.1} parent=1 // pred_check
      _
    $region23: #{mymodel_forward.1} parent=1 // pred_check_branch
      %58 = sbr.rel (0) target = $region25
    $region24: #{mymodel_forward.1} parent=1 // pred_region
      %60 = vsyncadd [#allocation9], 0
      %s61 = sshll.u32 %s5, 4
      %s62 = int_to_ptr.hbm [resolvable:$true] %s61
      %s63 = sshll.u32 [#allocation8], 4
      %s64 = int_to_ptr.vmem [resolvable:$true] %s63
      %69 = dma.hbm_to_vmem [thread:$0]  %s62, 8192, %s64, [#allocation9], 64, 64, 4
    $region25: #{mymodel_forward.1} parent=1 // pred_fallthru
      _
    // Predicated region
    $region26: #{mymodel_forward.1} parent=1 // pred_check
      _
    $region27: #{mymodel_forward.1} parent=1 // pred_check_branch
      %71 = sbr.rel (0) target = $region29
    $region28: #{mymodel_forward.1} parent=1 // pred_region
      %73 = vsyncadd [#allocation9], 0
      %s75 = sshll.u32 %s6, 4
      %s76 = int_to_ptr.hbm [resolvable:$true] %s75
      %s77 = sshll.u32 [#allocation10], 4
      %s78 = int_to_ptr.vmem [resolvable:$true] %s77
      %80 = dma.hbm_to_vmem [thread:$0]  %s76, 16, %s78, [#allocation9]
    $region29: #{mymodel_forward.1} parent=1 // pred_fallthru
      _
    // Predicated region
    $region30: #{mymodel_forward.1} parent=1 // pred_check
      _
    $region31: #{mymodel_forward.1} parent=1 // pred_check_branch
      %82 = sbr.rel (0) target = $region33
    $region32: #{mymodel_forward.1} parent=1 // pred_region
      %84 = dma.done [#allocation3], 49152
    $region33: #{mymodel_forward.1} parent=1 // pred_fallthru
      _
    // Predicated region
    $region34: #{mymodel_forward.1} parent=1 // pred_check
      _
    $region35: #{mymodel_forward.1} parent=1 // pred_check_branch
      %86 = sbr.rel (0) target = $region37
    $region36: #{mymodel_forward.1} parent=1 // pred_region
      %88 = dma.done [#allocation6], 3072
    $region37: #{mymodel_forward.1} parent=1 // pred_fallthru
      _
    // Predicated region
    $region38: #{mymodel_forward.1} parent=1 // pred_check
      _
    $region39: #{mymodel_forward.1} parent=1 // pred_check_branch
      %90 = sbr.rel (0) target = $region41
    $region40: #{mymodel_forward.1} parent=1 // pred_region
      %92 = dma.done [#allocation6], 128
    $region41: #{mymodel_forward.1} parent=1 // pred_fallthru
      _
    // Predicated region
    $region42: #{mymodel_forward.1} parent=1 // pred_check
      _
    $region43: #{mymodel_forward.1} parent=1 // pred_check_branch
      %94 = sbr.rel (0) target = $region45
    $region44: #{mymodel_forward.1} parent=1 // pred_region
      %96 = dma.done [#allocation9], 8192
    $region45: #{mymodel_forward.1} parent=1 // pred_fallthru
      _
    // Predicated region
    $region46: #{mymodel_forward.1} parent=1 // pred_check
      _
    $region47: #{mymodel_forward.1} parent=1 // pred_check_branch
      %98 = sbr.rel (0) target = $region49
    $region48: #{mymodel_forward.1} parent=1 // pred_region
      %100 = dma.done [#allocation9], 16
    $region49: #{mymodel_forward.1} parent=1 // pred_fallthru
      _
    %v102 = vld [vmem:[%s0] sm:$0x3f]
    %v104 = vperm.slane %v102, 0
    %v105 = vperm.slane %v102, 1
    %v106 = vperm.slane %v102, 2
    %v107 = vperm.slane %v102, 3
    %v108 = vperm.slane %v102, 4
    %v109 = vperm.slane %v102, 5
    %v116 = vpack.c.bf16 %v104, %v104
    %v117 = vpack.c.bf16 %v105, %v105
    %v118 = vpack.c.bf16 %v106, %v106
    %v119 = vpack.c.bf16 %v107, %v107
    %v120 = vpack.c.bf16 %v108, %v108
    %v121 = vpack.c.bf16 %v109, %v109
    %v122 = vld [vmem:[%s1] sm:$0x1]
    %v123 = vpack.c.bf16 %v122, %v122
    %v124 = vld [vmem:[#allocation2] sm:$0xff]
    %v125 = vld [vmem:[#allocation2 + $0x8] sm:$0xff]
    %v126 = vld [vmem:[#allocation2 + $0x10] sm:$0xff]
    %v127 = vld [vmem:[#allocation2 + $0x18] sm:$0xff]
    %v128 = vld [vmem:[#allocation2 + $0x20] sm:$0xff]
    %v129 = vld [vmem:[#allocation2 + $0x28] sm:$0xff]
    %v130 = vld [vmem:[#allocation2 + $0x30] sm:$0xff]
    %v131 = vld [vmem:[#allocation2 + $0x38] sm:$0xff]
    %v132 = vld [vmem:[#allocation2 + $0x40] sm:$0xff]
    %v133 = vld [vmem:[#allocation2 + $0x48] sm:$0xff]
    %v134 = vld [vmem:[#allocation2 + $0x50] sm:$0xff]
    %v135 = vld [vmem:[#allocation2 + $0x58] sm:$0xff]
    %v136 = vld [vmem:[#allocation2 + $0x60] sm:$0xff]
    %v137 = vld [vmem:[#allocation2 + $0x68] sm:$0xff]
    %v138 = vld [vmem:[#allocation2 + $0x70] sm:$0xff]
    %v139 = vld [vmem:[#allocation2 + $0x78] sm:$0xff]
    %v140 = vld [vmem:[#allocation2 + $0x80] sm:$0xff]
    %v141 = vld [vmem:[#allocation2 + $0x88] sm:$0xff]
    %v142 = vld [vmem:[#allocation2 + $0x90] sm:$0xff]
    %v143 = vld [vmem:[#allocation2 + $0x98] sm:$0xff]
    %v144 = vld [vmem:[#allocation2 + $0xa0] sm:$0xff]
    %v145 = vld [vmem:[#allocation2 + $0xa8] sm:$0xff]
    %v146 = vld [vmem:[#allocation2 + $0xb0] sm:$0xff]
    %v147 = vld [vmem:[#allocation2 + $0xb8] sm:$0xff]
    %v148 = vld [vmem:[#allocation2 + $0xc0] sm:$0xff]
    %v149 = vld [vmem:[#allocation2 + $0xc8] sm:$0xff]
    %v150 = vld [vmem:[#allocation2 + $0xd0] sm:$0xff]
    %v151 = vld [vmem:[#allocation2 + $0xd8] sm:$0xff]
    %v152 = vld [vmem:[#allocation2 + $0xe0] sm:$0xff]
    %v153 = vld [vmem:[#allocation2 + $0xe8] sm:$0xff]
    %v154 = vld [vmem:[#allocation2 + $0xf0] sm:$0xff]
    %v155 = vld [vmem:[#allocation2 + $0xf8] sm:$0xff]
    %v156 = vld [vmem:[#allocation2 + $0x100] sm:$0xff]
    %v157 = vld [vmem:[#allocation2 + $0x108] sm:$0xff]
    %v158 = vld [vmem:[#allocation2 + $0x110] sm:$0xff]
    %v159 = vld [vmem:[#allocation2 + $0x118] sm:$0xff]
    %v160 = vld [vmem:[#allocation2 + $0x120] sm:$0xff]
    %v161 = vld [vmem:[#allocation2 + $0x128] sm:$0xff]
    %v162 = vld [vmem:[#allocation2 + $0x130] sm:$0xff]
    %v163 = vld [vmem:[#allocation2 + $0x138] sm:$0xff]
    %v164 = vld [vmem:[#allocation2 + $0x140] sm:$0xff]
    %v165 = vld [vmem:[#allocation2 + $0x148] sm:$0xff]
    %v166 = vld [vmem:[#allocation2 + $0x150] sm:$0xff]
    %v167 = vld [vmem:[#allocation2 + $0x158] sm:$0xff]
    %v168 = vld [vmem:[#allocation2 + $0x160] sm:$0xff]
    %v169 = vld [vmem:[#allocation2 + $0x168] sm:$0xff]
    %v170 = vld [vmem:[#allocation2 + $0x170] sm:$0xff]
    %v171 = vld [vmem:[#allocation2 + $0x178] sm:$0xff]
    %v172 = vld [vmem:[#allocation2 + $0x180] sm:$0xff]
    %v173 = vld [vmem:[#allocation2 + $0x188] sm:$0xff]
    %v174 = vld [vmem:[#allocation2 + $0x190] sm:$0xff]
    %v175 = vld [vmem:[#allocation2 + $0x198] sm:$0xff]
    %v176 = vld [vmem:[#allocation2 + $0x1a0] sm:$0xff]
    %v177 = vld [vmem:[#allocation2 + $0x1a8] sm:$0xff]
    %v178 = vld [vmem:[#allocation2 + $0x1b0] sm:$0xff]
    %v179 = vld [vmem:[#allocation2 + $0x1b8] sm:$0xff]
    %v180 = vld [vmem:[#allocation2 + $0x1c0] sm:$0xff]
    %v181 = vld [vmem:[#allocation2 + $0x1c8] sm:$0xff]
    %v182 = vld [vmem:[#allocation2 + $0x1d0] sm:$0xff]
    %v183 = vld [vmem:[#allocation2 + $0x1d8] sm:$0xff]
    %v184 = vld [vmem:[#allocation2 + $0x1e0] sm:$0xff]
    %v185 = vld [vmem:[#allocation2 + $0x1e8] sm:$0xff]
    %v186 = vld [vmem:[#allocation2 + $0x1f0] sm:$0xff]
    %v187 = vld [vmem:[#allocation2 + $0x1f8] sm:$0xff]
    %v188 = vld [vmem:[#allocation2 + $0x200] sm:$0xff]
    %v189 = vld [vmem:[#allocation2 + $0x208] sm:$0xff]
    %v190 = vld [vmem:[#allocation2 + $0x210] sm:$0xff]
    %v191 = vld [vmem:[#allocation2 + $0x218] sm:$0xff]
    %v192 = vld [vmem:[#allocation2 + $0x220] sm:$0xff]
    %v193 = vld [vmem:[#allocation2 + $0x228] sm:$0xff]
    %v194 = vld [vmem:[#allocation2 + $0x230] sm:$0xff]
    %v195 = vld [vmem:[#allocation2 + $0x238] sm:$0xff]
    %v196 = vld [vmem:[#allocation2 + $0x240] sm:$0xff]
    %v197 = vld [vmem:[#allocation2 + $0x248] sm:$0xff]
    %v198 = vld [vmem:[#allocation2 + $0x250] sm:$0xff]
    %v199 = vld [vmem:[#allocation2 + $0x258] sm:$0xff]
    %v200 = vld [vmem:[#allocation2 + $0x260] sm:$0xff]
    %v201 = vld [vmem:[#allocation2 + $0x268] sm:$0xff]
    %v202 = vld [vmem:[#allocation2 + $0x270] sm:$0xff]
    %v203 = vld [vmem:[#allocation2 + $0x278] sm:$0xff]
    %v204 = vld [vmem:[#allocation2 + $0x280] sm:$0xff]
    %v205 = vld [vmem:[#allocation2 + $0x288] sm:$0xff]
    %v206 = vld [vmem:[#allocation2 + $0x290] sm:$0xff]
    %v207 = vld [vmem:[#allocation2 + $0x298] sm:$0xff]
    %v208 = vld [vmem:[#allocation2 + $0x2a0] sm:$0xff]
    %v209 = vld [vmem:[#allocation2 + $0x2a8] sm:$0xff]
    %v210 = vld [vmem:[#allocation2 + $0x2b0] sm:$0xff]
    %v211 = vld [vmem:[#allocation2 + $0x2b8] sm:$0xff]
    %v212 = vld [vmem:[#allocation2 + $0x2c0] sm:$0xff]
    %v213 = vld [vmem:[#allocation2 + $0x2c8] sm:$0xff]
    %v214 = vld [vmem:[#allocation2 + $0x2d0] sm:$0xff]
    %v215 = vld [vmem:[#allocation2 + $0x2d8] sm:$0xff]
    %v216 = vld [vmem:[#allocation2 + $0x2e0] sm:$0xff]
    %v217 = vld [vmem:[#allocation2 + $0x2e8] sm:$0xff]
    %v218 = vld [vmem:[#allocation2 + $0x2f0] sm:$0xff]
    %v219 = vld [vmem:[#allocation2 + $0x2f8] sm:$0xff]
    %v220 = vld [vmem:[#allocation2 + $0x300] sm:$0xff]
    %v221 = vld [vmem:[#allocation2 + $0x308] sm:$0xff]
    %v222 = vld [vmem:[#allocation2 + $0x310] sm:$0xff]
    %v223 = vld [vmem:[#allocation2 + $0x318] sm:$0xff]
    %v224 = vld [vmem:[#allocation2 + $0x320] sm:$0xff]
    %v225 = vld [vmem:[#allocation2 + $0x328] sm:$0xff]
    %v226 = vld [vmem:[#allocation2 + $0x330] sm:$0xff]
    %v227 = vld [vmem:[#allocation2 + $0x338] sm:$0xff]
    %v228 = vld [vmem:[#allocation2 + $0x340] sm:$0xff]
    %v229 = vld [vmem:[#allocation2 + $0x348] sm:$0xff]
    %v230 = vld [vmem:[#allocation2 + $0x350] sm:$0xff]
    %v231 = vld [vmem:[#allocation2 + $0x358] sm:$0xff]
    %v232 = vld [vmem:[#allocation2 + $0x360] sm:$0xff]
    %v233 = vld [vmem:[#allocation2 + $0x368] sm:$0xff]
    %v234 = vld [vmem:[#allocation2 + $0x370] sm:$0xff]
    %v235 = vld [vmem:[#allocation2 + $0x378] sm:$0xff]
    %v236 = vld [vmem:[#allocation2 + $0x380] sm:$0xff]
    %v237 = vld [vmem:[#allocation2 + $0x388] sm:$0xff]
    %v238 = vld [vmem:[#allocation2 + $0x390] sm:$0xff]
    %v239 = vld [vmem:[#allocation2 + $0x398] sm:$0xff]
    %v240 = vld [vmem:[#allocation2 + $0x3a0] sm:$0xff]
    %v241 = vld [vmem:[#allocation2 + $0x3a8] sm:$0xff]
    %v242 = vld [vmem:[#allocation2 + $0x3b0] sm:$0xff]
    %v243 = vld [vmem:[#allocation2 + $0x3b8] sm:$0xff]
    %v244 = vld [vmem:[#allocation2 + $0x3c0] sm:$0xff]
    %v245 = vld [vmem:[#allocation2 + $0x3c8] sm:$0xff]
    %v246 = vld [vmem:[#allocation2 + $0x3d0] sm:$0xff]
    %v247 = vld [vmem:[#allocation2 + $0x3d8] sm:$0xff]
    %v248 = vld [vmem:[#allocation2 + $0x3e0] sm:$0xff]
    %v249 = vld [vmem:[#allocation2 + $0x3e8] sm:$0xff]
    %v250 = vld [vmem:[#allocation2 + $0x3f0] sm:$0xff]
    %v251 = vld [vmem:[#allocation2 + $0x3f8] sm:$0xff]
    %v252 = vld [vmem:[#allocation2 + $0x400] sm:$0xff]
    %v253 = vld [vmem:[#allocation2 + $0x408] sm:$0xff]
    %v254 = vld [vmem:[#allocation2 + $0x410] sm:$0xff]
    %v255 = vld [vmem:[#allocation2 + $0x418] sm:$0xff]
    %v256 = vld [vmem:[#allocation2 + $0x420] sm:$0xff]
    %v257 = vld [vmem:[#allocation2 + $0x428] sm:$0xff]
    %v258 = vld [vmem:[#allocation2 + $0x430] sm:$0xff]
    %v259 = vld [vmem:[#allocation2 + $0x438] sm:$0xff]
    %v260 = vld [vmem:[#allocation2 + $0x440] sm:$0xff]
    %v261 = vld [vmem:[#allocation2 + $0x448] sm:$0xff]
    %v262 = vld [vmem:[#allocation2 + $0x450] sm:$0xff]
    %v263 = vld [vmem:[#allocation2 + $0x458] sm:$0xff]
    %v264 = vld [vmem:[#allocation2 + $0x460] sm:$0xff]
    %v265 = vld [vmem:[#allocation2 + $0x468] sm:$0xff]
    %v266 = vld [vmem:[#allocation2 + $0x470] sm:$0xff]
    %v267 = vld [vmem:[#allocation2 + $0x478] sm:$0xff]
    %v268 = vld [vmem:[#allocation2 + $0x480] sm:$0xff]
    %v269 = vld [vmem:[#allocation2 + $0x488] sm:$0xff]
    %v270 = vld [vmem:[#allocation2 + $0x490] sm:$0xff]
    %v271 = vld [vmem:[#allocation2 + $0x498] sm:$0xff]
    %v272 = vld [vmem:[#allocation2 + $0x4a0] sm:$0xff]
    %v273 = vld [vmem:[#allocation2 + $0x4a8] sm:$0xff]
    %v274 = vld [vmem:[#allocation2 + $0x4b0] sm:$0xff]
    %v275 = vld [vmem:[#allocation2 + $0x4b8] sm:$0xff]
    %v276 = vld [vmem:[#allocation2 + $0x4c0] sm:$0xff]
    %v277 = vld [vmem:[#allocation2 + $0x4c8] sm:$0xff]
    %v278 = vld [vmem:[#allocation2 + $0x4d0] sm:$0xff]
    %v279 = vld [vmem:[#allocation2 + $0x4d8] sm:$0xff]
    %v280 = vld [vmem:[#allocation2 + $0x4e0] sm:$0xff]
    %v281 = vld [vmem:[#allocation2 + $0x4e8] sm:$0xff]
    %v282 = vld [vmem:[#allocation2 + $0x4f0] sm:$0xff]
    %v283 = vld [vmem:[#allocation2 + $0x4f8] sm:$0xff]
    %v284 = vld [vmem:[#allocation2 + $0x500] sm:$0xff]
    %v285 = vld [vmem:[#allocation2 + $0x508] sm:$0xff]
    %v286 = vld [vmem:[#allocation2 + $0x510] sm:$0xff]
    %v287 = vld [vmem:[#allocation2 + $0x518] sm:$0xff]
    %v288 = vld [vmem:[#allocation2 + $0x520] sm:$0xff]
    %v289 = vld [vmem:[#allocation2 + $0x528] sm:$0xff]
    %v290 = vld [vmem:[#allocation2 + $0x530] sm:$0xff]
    %v291 = vld [vmem:[#allocation2 + $0x538] sm:$0xff]
    %v292 = vld [vmem:[#allocation2 + $0x540] sm:$0xff]
    %v293 = vld [vmem:[#allocation2 + $0x548] sm:$0xff]
    %v294 = vld [vmem:[#allocation2 + $0x550] sm:$0xff]
    %v295 = vld [vmem:[#allocation2 + $0x558] sm:$0xff]
    %v296 = vld [vmem:[#allocation2 + $0x560] sm:$0xff]
    %v297 = vld [vmem:[#allocation2 + $0x568] sm:$0xff]
    %v298 = vld [vmem:[#allocation2 + $0x570] sm:$0xff]
    %v299 = vld [vmem:[#allocation2 + $0x578] sm:$0xff]
    %v300 = vld [vmem:[#allocation2 + $0x580] sm:$0xff]
    %v301 = vld [vmem:[#allocation2 + $0x588] sm:$0xff]
    %v302 = vld [vmem:[#allocation2 + $0x590] sm:$0xff]
    %v303 = vld [vmem:[#allocation2 + $0x598] sm:$0xff]
    %v304 = vld [vmem:[#allocation2 + $0x5a0] sm:$0xff]
    %v305 = vld [vmem:[#allocation2 + $0x5a8] sm:$0xff]
    %v306 = vld [vmem:[#allocation2 + $0x5b0] sm:$0xff]
    %v307 = vld [vmem:[#allocation2 + $0x5b8] sm:$0xff]
    %v308 = vld [vmem:[#allocation2 + $0x5c0] sm:$0xff]
    %v309 = vld [vmem:[#allocation2 + $0x5c8] sm:$0xff]
    %v310 = vld [vmem:[#allocation2 + $0x5d0] sm:$0xff]
    %v311 = vld [vmem:[#allocation2 + $0x5d8] sm:$0xff]
    %v312 = vld [vmem:[#allocation2 + $0x5e0] sm:$0xff]
    %v313 = vld [vmem:[#allocation2 + $0x5e8] sm:$0xff]
    %v314 = vld [vmem:[#allocation2 + $0x5f0] sm:$0xff]
    %v315 = vld [vmem:[#allocation2 + $0x5f8] sm:$0xff]
    %v316 = vld [vmem:[#allocation2 + $0x600] sm:$0xff]
    %v317 = vld [vmem:[#allocation2 + $0x608] sm:$0xff]
    %v318 = vld [vmem:[#allocation2 + $0x610] sm:$0xff]
    %v319 = vld [vmem:[#allocation2 + $0x618] sm:$0xff]
    %v320 = vld [vmem:[#allocation2 + $0x620] sm:$0xff]
    %v321 = vld [vmem:[#allocation2 + $0x628] sm:$0xff]
    %v322 = vld [vmem:[#allocation2 + $0x630] sm:$0xff]
    %v323 = vld [vmem:[#allocation2 + $0x638] sm:$0xff]
    %v324 = vld [vmem:[#allocation2 + $0x640] sm:$0xff]
    %v325 = vld [vmem:[#allocation2 + $0x648] sm:$0xff]
    %v326 = vld [vmem:[#allocation2 + $0x650] sm:$0xff]
    %v327 = vld [vmem:[#allocation2 + $0x658] sm:$0xff]
    %v328 = vld [vmem:[#allocation2 + $0x660] sm:$0xff]
    %v329 = vld [vmem:[#allocation2 + $0x668] sm:$0xff]
    %v330 = vld [vmem:[#allocation2 + $0x670] sm:$0xff]
    %v331 = vld [vmem:[#allocation2 + $0x678] sm:$0xff]
    %v332 = vld [vmem:[#allocation2 + $0x680] sm:$0xff]
    %v333 = vld [vmem:[#allocation2 + $0x688] sm:$0xff]
    %v334 = vld [vmem:[#allocation2 + $0x690] sm:$0xff]
    %v335 = vld [vmem:[#allocation2 + $0x698] sm:$0xff]
    %v336 = vld [vmem:[#allocation2 + $0x6a0] sm:$0xff]
    %v337 = vld [vmem:[#allocation2 + $0x6a8] sm:$0xff]
    %v338 = vld [vmem:[#allocation2 + $0x6b0] sm:$0xff]
    %v339 = vld [vmem:[#allocation2 + $0x6b8] sm:$0xff]
    %v340 = vld [vmem:[#allocation2 + $0x6c0] sm:$0xff]
    %v341 = vld [vmem:[#allocation2 + $0x6c8] sm:$0xff]
    %v342 = vld [vmem:[#allocation2 + $0x6d0] sm:$0xff]
    %v343 = vld [vmem:[#allocation2 + $0x6d8] sm:$0xff]
    %v344 = vld [vmem:[#allocation2 + $0x6e0] sm:$0xff]
    %v345 = vld [vmem:[#allocation2 + $0x6e8] sm:$0xff]
    %v346 = vld [vmem:[#allocation2 + $0x6f0] sm:$0xff]
    %v347 = vld [vmem:[#allocation2 + $0x6f8] sm:$0xff]
    %v348 = vld [vmem:[#allocation2 + $0x700] sm:$0xff]
    %v349 = vld [vmem:[#allocation2 + $0x708] sm:$0xff]
    %v350 = vld [vmem:[#allocation2 + $0x710] sm:$0xff]
    %v351 = vld [vmem:[#allocation2 + $0x718] sm:$0xff]
    %v352 = vld [vmem:[#allocation2 + $0x720] sm:$0xff]
    %v353 = vld [vmem:[#allocation2 + $0x728] sm:$0xff]
    %v354 = vld [vmem:[#allocation2 + $0x730] sm:$0xff]
    %v355 = vld [vmem:[#allocation2 + $0x738] sm:$0xff]
    %v356 = vld [vmem:[#allocation2 + $0x740] sm:$0xff]
    %v357 = vld [vmem:[#allocation2 + $0x748] sm:$0xff]
    %v358 = vld [vmem:[#allocation2 + $0x750] sm:$0xff]
    %v359 = vld [vmem:[#allocation2 + $0x758] sm:$0xff]
    %v360 = vld [vmem:[#allocation2 + $0x760] sm:$0xff]
    %v361 = vld [vmem:[#allocation2 + $0x768] sm:$0xff]
    %v362 = vld [vmem:[#allocation2 + $0x770] sm:$0xff]
    %v363 = vld [vmem:[#allocation2 + $0x778] sm:$0xff]
    %v364 = vld [vmem:[#allocation2 + $0x780] sm:$0xff]
    %v365 = vld [vmem:[#allocation2 + $0x788] sm:$0xff]
    %v366 = vld [vmem:[#allocation2 + $0x790] sm:$0xff]
    %v367 = vld [vmem:[#allocation2 + $0x798] sm:$0xff]
    %v368 = vld [vmem:[#allocation2 + $0x7a0] sm:$0xff]
    %v369 = vld [vmem:[#allocation2 + $0x7a8] sm:$0xff]
    %v370 = vld [vmem:[#allocation2 + $0x7b0] sm:$0xff]
    %v371 = vld [vmem:[#allocation2 + $0x7b8] sm:$0xff]
    %v372 = vld [vmem:[#allocation2 + $0x7c0] sm:$0xff]
    %v373 = vld [vmem:[#allocation2 + $0x7c8] sm:$0xff]
    %v374 = vld [vmem:[#allocation2 + $0x7d0] sm:$0xff]
    %v375 = vld [vmem:[#allocation2 + $0x7d8] sm:$0xff]
    %v376 = vld [vmem:[#allocation2 + $0x7e0] sm:$0xff]
    %v377 = vld [vmem:[#allocation2 + $0x7e8] sm:$0xff]
    %v378 = vld [vmem:[#allocation2 + $0x7f0] sm:$0xff]
    %v379 = vld [vmem:[#allocation2 + $0x7f8] sm:$0xff]
    %v380 = vld [vmem:[#allocation2 + $0x800] sm:$0xff]
    %v381 = vld [vmem:[#allocation2 + $0x808] sm:$0xff]
    %v382 = vld [vmem:[#allocation2 + $0x810] sm:$0xff]
    %v383 = vld [vmem:[#allocation2 + $0x818] sm:$0xff]
    %v384 = vld [vmem:[#allocation2 + $0x820] sm:$0xff]
    %v385 = vld [vmem:[#allocation2 + $0x828] sm:$0xff]
    %v386 = vld [vmem:[#allocation2 + $0x830] sm:$0xff]
    %v387 = vld [vmem:[#allocation2 + $0x838] sm:$0xff]
    %v388 = vld [vmem:[#allocation2 + $0x840] sm:$0xff]
    %v389 = vld [vmem:[#allocation2 + $0x848] sm:$0xff]
    %v390 = vld [vmem:[#allocation2 + $0x850] sm:$0xff]
    %v391 = vld [vmem:[#allocation2 + $0x858] sm:$0xff]
    %v392 = vld [vmem:[#allocation2 + $0x860] sm:$0xff]
    %v393 = vld [vmem:[#allocation2 + $0x868] sm:$0xff]
    %v394 = vld [vmem:[#allocation2 + $0x870] sm:$0xff]
    %v395 = vld [vmem:[#allocation2 + $0x878] sm:$0xff]
    %v396 = vld [vmem:[#allocation2 + $0x880] sm:$0xff]
    %v397 = vld [vmem:[#allocation2 + $0x888] sm:$0xff]
    %v398 = vld [vmem:[#allocation2 + $0x890] sm:$0xff]
    %v399 = vld [vmem:[#allocation2 + $0x898] sm:$0xff]
    %v400 = vld [vmem:[#allocation2 + $0x8a0] sm:$0xff]
    %v401 = vld [vmem:[#allocation2 + $0x8a8] sm:$0xff]
    %v402 = vld [vmem:[#allocation2 + $0x8b0] sm:$0xff]
    %v403 = vld [vmem:[#allocation2 + $0x8b8] sm:$0xff]
    %v404 = vld [vmem:[#allocation2 + $0x8c0] sm:$0xff]
    %v405 = vld [vmem:[#allocation2 + $0x8c8] sm:$0xff]
    %v406 = vld [vmem:[#allocation2 + $0x8d0] sm:$0xff]
    %v407 = vld [vmem:[#allocation2 + $0x8d8] sm:$0xff]
    %v408 = vld [vmem:[#allocation2 + $0x8e0] sm:$0xff]
    %v409 = vld [vmem:[#allocation2 + $0x8e8] sm:$0xff]
    %v410 = vld [vmem:[#allocation2 + $0x8f0] sm:$0xff]
    %v411 = vld [vmem:[#allocation2 + $0x8f8] sm:$0xff]
    %v412 = vld [vmem:[#allocation2 + $0x900] sm:$0xff]
    %v413 = vld [vmem:[#allocation2 + $0x908] sm:$0xff]
    %v414 = vld [vmem:[#allocation2 + $0x910] sm:$0xff]
    %v415 = vld [vmem:[#allocation2 + $0x918] sm:$0xff]
    %v416 = vld [vmem:[#allocation2 + $0x920] sm:$0xff]
    %v417 = vld [vmem:[#allocation2 + $0x928] sm:$0xff]
    %v418 = vld [vmem:[#allocation2 + $0x930] sm:$0xff]
    %v419 = vld [vmem:[#allocation2 + $0x938] sm:$0xff]
    %v420 = vld [vmem:[#allocation2 + $0x940] sm:$0xff]
    %v421 = vld [vmem:[#allocation2 + $0x948] sm:$0xff]
    %v422 = vld [vmem:[#allocation2 + $0x950] sm:$0xff]
    %v423 = vld [vmem:[#allocation2 + $0x958] sm:$0xff]
    %v424 = vld [vmem:[#allocation2 + $0x960] sm:$0xff]
    %v425 = vld [vmem:[#allocation2 + $0x968] sm:$0xff]
    %v426 = vld [vmem:[#allocation2 + $0x970] sm:$0xff]
    %v427 = vld [vmem:[#allocation2 + $0x978] sm:$0xff]
    %v428 = vld [vmem:[#allocation2 + $0x980] sm:$0xff]
    %v429 = vld [vmem:[#allocation2 + $0x988] sm:$0xff]
    %v430 = vld [vmem:[#allocation2 + $0x990] sm:$0xff]
    %v431 = vld [vmem:[#allocation2 + $0x998] sm:$0xff]
    %v432 = vld [vmem:[#allocation2 + $0x9a0] sm:$0xff]
    %v433 = vld [vmem:[#allocation2 + $0x9a8] sm:$0xff]
    %v434 = vld [vmem:[#allocation2 + $0x9b0] sm:$0xff]
    %v435 = vld [vmem:[#allocation2 + $0x9b8] sm:$0xff]
    %v436 = vld [vmem:[#allocation2 + $0x9c0] sm:$0xff]
    %v437 = vld [vmem:[#allocation2 + $0x9c8] sm:$0xff]
    %v438 = vld [vmem:[#allocation2 + $0x9d0] sm:$0xff]
    %v439 = vld [vmem:[#allocation2 + $0x9d8] sm:$0xff]
    %v440 = vld [vmem:[#allocation2 + $0x9e0] sm:$0xff]
    %v441 = vld [vmem:[#allocation2 + $0x9e8] sm:$0xff]
    %v442 = vld [vmem:[#allocation2 + $0x9f0] sm:$0xff]
    %v443 = vld [vmem:[#allocation2 + $0x9f8] sm:$0xff]
    %v444 = vld [vmem:[#allocation2 + $0xa00] sm:$0xff]
    %v445 = vld [vmem:[#allocation2 + $0xa08] sm:$0xff]
    %v446 = vld [vmem:[#allocation2 + $0xa10] sm:$0xff]
    %v447 = vld [vmem:[#allocation2 + $0xa18] sm:$0xff]
    %v448 = vld [vmem:[#allocation2 + $0xa20] sm:$0xff]
    %v449 = vld [vmem:[#allocation2 + $0xa28] sm:$0xff]
    %v450 = vld [vmem:[#allocation2 + $0xa30] sm:$0xff]
    %v451 = vld [vmem:[#allocation2 + $0xa38] sm:$0xff]
    %v452 = vld [vmem:[#allocation2 + $0xa40] sm:$0xff]
    %v453 = vld [vmem:[#allocation2 + $0xa48] sm:$0xff]
    %v454 = vld [vmem:[#allocation2 + $0xa50] sm:$0xff]
    %v455 = vld [vmem:[#allocation2 + $0xa58] sm:$0xff]
    %v456 = vld [vmem:[#allocation2 + $0xa60] sm:$0xff]
    %v457 = vld [vmem:[#allocation2 + $0xa68] sm:$0xff]
    %v458 = vld [vmem:[#allocation2 + $0xa70] sm:$0xff]
    %v459 = vld [vmem:[#allocation2 + $0xa78] sm:$0xff]
    %v460 = vld [vmem:[#allocation2 + $0xa80] sm:$0xff]
    %v461 = vld [vmem:[#allocation2 + $0xa88] sm:$0xff]
    %v462 = vld [vmem:[#allocation2 + $0xa90] sm:$0xff]
    %v463 = vld [vmem:[#allocation2 + $0xa98] sm:$0xff]
    %v464 = vld [vmem:[#allocation2 + $0xaa0] sm:$0xff]
    %v465 = vld [vmem:[#allocation2 + $0xaa8] sm:$0xff]
    %v466 = vld [vmem:[#allocation2 + $0xab0] sm:$0xff]
    %v467 = vld [vmem:[#allocation2 + $0xab8] sm:$0xff]
    %v468 = vld [vmem:[#allocation2 + $0xac0] sm:$0xff]
    %v469 = vld [vmem:[#allocation2 + $0xac8] sm:$0xff]
    %v470 = vld [vmem:[#allocation2 + $0xad0] sm:$0xff]
    %v471 = vld [vmem:[#allocation2 + $0xad8] sm:$0xff]
    %v472 = vld [vmem:[#allocation2 + $0xae0] sm:$0xff]
    %v473 = vld [vmem:[#allocation2 + $0xae8] sm:$0xff]
    %v474 = vld [vmem:[#allocation2 + $0xaf0] sm:$0xff]
    %v475 = vld [vmem:[#allocation2 + $0xaf8] sm:$0xff]
    %v476 = vld [vmem:[#allocation2 + $0xb00] sm:$0xff]
    %v477 = vld [vmem:[#allocation2 + $0xb08] sm:$0xff]
    %v478 = vld [vmem:[#allocation2 + $0xb10] sm:$0xff]
    %v479 = vld [vmem:[#allocation2 + $0xb18] sm:$0xff]
    %v480 = vld [vmem:[#allocation2 + $0xb20] sm:$0xff]
    %v481 = vld [vmem:[#allocation2 + $0xb28] sm:$0xff]
    %v482 = vld [vmem:[#allocation2 + $0xb30] sm:$0xff]
    %v483 = vld [vmem:[#allocation2 + $0xb38] sm:$0xff]
    %v484 = vld [vmem:[#allocation2 + $0xb40] sm:$0xff]
    %v485 = vld [vmem:[#allocation2 + $0xb48] sm:$0xff]
    %v486 = vld [vmem:[#allocation2 + $0xb50] sm:$0xff]
    %v487 = vld [vmem:[#allocation2 + $0xb58] sm:$0xff]
    %v488 = vld [vmem:[#allocation2 + $0xb60] sm:$0xff]
    %v489 = vld [vmem:[#allocation2 + $0xb68] sm:$0xff]
    %v490 = vld [vmem:[#allocation2 + $0xb70] sm:$0xff]
    %v491 = vld [vmem:[#allocation2 + $0xb78] sm:$0xff]
    %v492 = vld [vmem:[#allocation2 + $0xb80] sm:$0xff]
    %v493 = vld [vmem:[#allocation2 + $0xb88] sm:$0xff]
    %v494 = vld [vmem:[#allocation2 + $0xb90] sm:$0xff]
    %v495 = vld [vmem:[#allocation2 + $0xb98] sm:$0xff]
    %v496 = vld [vmem:[#allocation2 + $0xba0] sm:$0xff]
    %v497 = vld [vmem:[#allocation2 + $0xba8] sm:$0xff]
    %v498 = vld [vmem:[#allocation2 + $0xbb0] sm:$0xff]
    %v499 = vld [vmem:[#allocation2 + $0xbb8] sm:$0xff]
    %v500 = vld [vmem:[#allocation2 + $0xbc0] sm:$0xff]
    %v501 = vld [vmem:[#allocation2 + $0xbc8] sm:$0xff]
    %v502 = vld [vmem:[#allocation2 + $0xbd0] sm:$0xff]
    %v503 = vld [vmem:[#allocation2 + $0xbd8] sm:$0xff]
    %v504 = vld [vmem:[#allocation2 + $0xbe0] sm:$0xff]
    %v505 = vld [vmem:[#allocation2 + $0xbe8] sm:$0xff]
    %v506 = vld [vmem:[#allocation2 + $0xbf0] sm:$0xff]
    %v507 = vld [vmem:[#allocation2 + $0xbf8] sm:$0xff]
    %v508 = vld [vmem:[#allocation5] sm:$0xff]
    %v509 = vld [vmem:[#allocation5 + $0x8] sm:$0xff]
    %v510 = vld [vmem:[#allocation5 + $0x10] sm:$0xff]
    %v511 = vld [vmem:[#allocation5 + $0x18] sm:$0xff]
    %v512 = vld [vmem:[#allocation5 + $0x20] sm:$0xff]
    %v513 = vld [vmem:[#allocation5 + $0x28] sm:$0xff]
    %v514 = vld [vmem:[#allocation5 + $0x30] sm:$0xff]
    %v515 = vld [vmem:[#allocation5 + $0x38] sm:$0xff]
    %v516 = vld [vmem:[#allocation5 + $0x40] sm:$0xff]
    %v517 = vld [vmem:[#allocation5 + $0x48] sm:$0xff]
    %v518 = vld [vmem:[#allocation5 + $0x50] sm:$0xff]
    %v519 = vld [vmem:[#allocation5 + $0x58] sm:$0xff]
    %v520 = vld [vmem:[#allocation5 + $0x60] sm:$0xff]
    %v521 = vld [vmem:[#allocation5 + $0x68] sm:$0xff]
    %v522 = vld [vmem:[#allocation5 + $0x70] sm:$0xff]
    %v523 = vld [vmem:[#allocation5 + $0x78] sm:$0xff]
    %v524 = vld [vmem:[#allocation5 + $0x80] sm:$0xff]
    %v525 = vld [vmem:[#allocation5 + $0x88] sm:$0xff]
    %v526 = vld [vmem:[#allocation5 + $0x90] sm:$0xff]
    %v527 = vld [vmem:[#allocation5 + $0x98] sm:$0xff]
    %v528 = vld [vmem:[#allocation5 + $0xa0] sm:$0xff]
    %v529 = vld [vmem:[#allocation5 + $0xa8] sm:$0xff]
    %v530 = vld [vmem:[#allocation5 + $0xb0] sm:$0xff]
    %v531 = vld [vmem:[#allocation5 + $0xb8] sm:$0xff]
    %v556 = vunpack.c.l.b16 %v508
    %v557 = vunpack.c.h.b16 %v508
    %v558 = vunpack.c.l.b16 %v509
    %v559 = vunpack.c.h.b16 %v509
    %v560 = vunpack.c.l.b16 %v510
    %v561 = vunpack.c.h.b16 %v510
    %v562 = vunpack.c.l.b16 %v511
    %v563 = vunpack.c.h.b16 %v511
    %v564 = vunpack.c.l.b16 %v512
    %v565 = vunpack.c.h.b16 %v512
    %v566 = vunpack.c.l.b16 %v513
    %v567 = vunpack.c.h.b16 %v513
    %v568 = vunpack.c.l.b16 %v514
    %v569 = vunpack.c.h.b16 %v514
    %v570 = vunpack.c.l.b16 %v515
    %v571 = vunpack.c.h.b16 %v515
    %v572 = vunpack.c.l.b16 %v516
    %v573 = vunpack.c.h.b16 %v516
    %v574 = vunpack.c.l.b16 %v517
    %v575 = vunpack.c.h.b16 %v517
    %v576 = vunpack.c.l.b16 %v518
    %v577 = vunpack.c.h.b16 %v518
    %v578 = vunpack.c.l.b16 %v519
    %v579 = vunpack.c.h.b16 %v519
    %v580 = vunpack.c.l.b16 %v520
    %v581 = vunpack.c.h.b16 %v520
    %v582 = vunpack.c.l.b16 %v521
    %v583 = vunpack.c.h.b16 %v521
    %v584 = vunpack.c.l.b16 %v522
    %v585 = vunpack.c.h.b16 %v522
    %v586 = vunpack.c.l.b16 %v523
    %v587 = vunpack.c.h.b16 %v523
    %v588 = vunpack.c.l.b16 %v524
    %v589 = vunpack.c.h.b16 %v524
    %v590 = vunpack.c.l.b16 %v525
    %v591 = vunpack.c.h.b16 %v525
    %v592 = vunpack.c.l.b16 %v526
    %v593 = vunpack.c.h.b16 %v526
    %v594 = vunpack.c.l.b16 %v527
    %v595 = vunpack.c.h.b16 %v527
    %v596 = vunpack.c.l.b16 %v528
    %v597 = vunpack.c.h.b16 %v528
    %v598 = vunpack.c.l.b16 %v529
    %v599 = vunpack.c.h.b16 %v529
    %v600 = vunpack.c.l.b16 %v530
    %v601 = vunpack.c.h.b16 %v530
    %v602 = vunpack.c.l.b16 %v531
    %v603 = vunpack.c.h.b16 %v531
    %v604 = vpack.c.b16 %v564, %v556
    %v605 = vpack.c.b16 %v565, %v557
    %v606 = vpack.c.b16 %v566, %v558
    %v607 = vpack.c.b16 %v567, %v559
    %v608 = vpack.c.b16 %v568, %v560
    %v609 = vpack.c.b16 %v569, %v561
    %v610 = vpack.c.b16 %v570, %v562
    %v611 = vpack.c.b16 %v571, %v563
    %v612 = vpack.c.b16 %v580, %v572
    %v613 = vpack.c.b16 %v581, %v573
    %v614 = vpack.c.b16 %v582, %v574
    %v615 = vpack.c.b16 %v583, %v575
    %v616 = vpack.c.b16 %v584, %v576
    %v617 = vpack.c.b16 %v585, %v577
    %v618 = vpack.c.b16 %v586, %v578
    %v619 = vpack.c.b16 %v587, %v579
    %v620 = vpack.c.b16 %v596, %v588
    %v621 = vpack.c.b16 %v597, %v589
    %v622 = vpack.c.b16 %v598, %v590
    %v623 = vpack.c.b16 %v599, %v591
    %v624 = vpack.c.b16 %v600, %v592
    %v625 = vpack.c.b16 %v601, %v593
    %v626 = vpack.c.b16 %v602, %v594
    %v627 = vpack.c.b16 %v603, %v595
    %vm652 = vcmask 392192
    %v654 = vsel %vm652, %v123, 0
    %656 = vmatpush.bf16.msra.mxu0 0
    %657 = vmatpush.bf16.msra.mxu0 0
    %658 = vmatpush.bf16.msra.mxu0 0
    %659 = vmatpush.bf16.msra.mxu0 0
    %660 = vmatpush.bf16.msra.mxu0 0
    %661 = vmatpush.bf16.msra.mxu0 %v620
    %662 = vmatpush.bf16.msra.mxu0 %v612
    %663 = vmatpush.bf16.msra.mxu0 %v604
    %664 = vmatmul.bf16.gmra.mxu0 %v654
    %v665 = vpop.f32.mrf.mxu0
    %v666 = vadd.f32 0.0, %v665
    %v667 = vpop.f32.mrf.mxu0
    %668 = vdwg.mxu0
    %669 = vmatpush.bf16.msra.mxu0 0
    %670 = vmatpush.bf16.msra.mxu0 0
    %671 = vmatpush.bf16.msra.mxu0 0
    %672 = vmatpush.bf16.msra.mxu0 0
    %673 = vmatpush.bf16.msra.mxu0 0
    %674 = vmatpush.bf16.msra.mxu0 %v621
    %675 = vmatpush.bf16.msra.mxu0 %v613
    %676 = vmatpush.bf16.msra.mxu0 %v605
    %677 = vmatmul.bf16.gmra.mxu0 %v654
    %v678 = vpop.f32.mrf.mxu0
    %v679 = vadd.f32 0.0, %v678
    %v680 = vpop.f32.mrf.mxu0
    %681 = vdwg.mxu0
    %682 = vmatpush.bf16.msra.mxu0 0
    %683 = vmatpush.bf16.msra.mxu0 0
    %684 = vmatpush.bf16.msra.mxu0 0
    %685 = vmatpush.bf16.msra.mxu0 0
    %686 = vmatpush.bf16.msra.mxu0 0
    %687 = vmatpush.bf16.msra.mxu0 %v622
    %688 = vmatpush.bf16.msra.mxu0 %v614
    %689 = vmatpush.bf16.msra.mxu0 %v606
    %690 = vmatmul.bf16.gmra.mxu0 %v654
    %v691 = vpop.f32.mrf.mxu0
    %v692 = vadd.f32 0.0, %v691
    %v693 = vpop.f32.mrf.mxu0
    %694 = vdwg.mxu0
    %695 = vmatpush.bf16.msra.mxu0 0
    %696 = vmatpush.bf16.msra.mxu0 0
    %697 = vmatpush.bf16.msra.mxu0 0
    %698 = vmatpush.bf16.msra.mxu0 0
    %699 = vmatpush.bf16.msra.mxu0 0
    %700 = vmatpush.bf16.msra.mxu0 %v623
    %701 = vmatpush.bf16.msra.mxu0 %v615
    %702 = vmatpush.bf16.msra.mxu0 %v607
    %703 = vmatmul.bf16.gmra.mxu0 %v654
    %v704 = vpop.f32.mrf.mxu0
    %v705 = vadd.f32 0.0, %v704
    %v706 = vpop.f32.mrf.mxu0
    %707 = vdwg.mxu0
    %708 = vmatpush.bf16.msra.mxu0 0
    %709 = vmatpush.bf16.msra.mxu0 0
    %710 = vmatpush.bf16.msra.mxu0 0
    %711 = vmatpush.bf16.msra.mxu0 0
    %712 = vmatpush.bf16.msra.mxu0 0
    %713 = vmatpush.bf16.msra.mxu0 %v624
    %714 = vmatpush.bf16.msra.mxu0 %v616
    %715 = vmatpush.bf16.msra.mxu0 %v608
    %716 = vmatmul.bf16.gmra.mxu0 %v654
    %v717 = vpop.f32.mrf.mxu0
    %v718 = vadd.f32 0.0, %v717
    %v719 = vpop.f32.mrf.mxu0
    %720 = vdwg.mxu0
    %721 = vmatpush.bf16.msra.mxu0 0
    %722 = vmatpush.bf16.msra.mxu0 0
    %723 = vmatpush.bf16.msra.mxu0 0
    %724 = vmatpush.bf16.msra.mxu0 0
    %725 = vmatpush.bf16.msra.mxu0 0
    %726 = vmatpush.bf16.msra.mxu0 %v625
    %727 = vmatpush.bf16.msra.mxu0 %v617
    %728 = vmatpush.bf16.msra.mxu0 %v609
    %729 = vmatmul.bf16.gmra.mxu0 %v654
    %v730 = vpop.f32.mrf.mxu0
    %v731 = vadd.f32 0.0, %v730
    %v732 = vpop.f32.mrf.mxu0
    %733 = vdwg.mxu0
    %734 = vmatpush.bf16.msra.mxu0 0
    %735 = vmatpush.bf16.msra.mxu0 0
    %736 = vmatpush.bf16.msra.mxu0 0
    %737 = vmatpush.bf16.msra.mxu0 0
    %738 = vmatpush.bf16.msra.mxu0 0
    %739 = vmatpush.bf16.msra.mxu0 %v626
    %740 = vmatpush.bf16.msra.mxu0 %v618
    %741 = vmatpush.bf16.msra.mxu0 %v610
    %742 = vmatmul.bf16.gmra.mxu0 %v654
    %v743 = vpop.f32.mrf.mxu0
    %v744 = vadd.f32 0.0, %v743
    %v745 = vpop.f32.mrf.mxu0
    %746 = vdwg.mxu0
    %747 = vmatpush.bf16.msra.mxu0 0
    %748 = vmatpush.bf16.msra.mxu0 0
    %749 = vmatpush.bf16.msra.mxu0 0
    %750 = vmatpush.bf16.msra.mxu0 0
    %751 = vmatpush.bf16.msra.mxu0 0
    %752 = vmatpush.bf16.msra.mxu0 %v627
    %753 = vmatpush.bf16.msra.mxu0 %v619
    %754 = vmatpush.bf16.msra.mxu0 %v611
    %755 = vmatmul.bf16.gmra.mxu0 %v654
    %v756 = vpop.f32.mrf.mxu0
    %v757 = vadd.f32 0.0, %v756
    %v758 = vpop.f32.mrf.mxu0
    %759 = vdwg.mxu0
    %v1144 = vunpack.c.l.b16 %v124
    %v1145 = vunpack.c.h.b16 %v124
    %v1146 = vunpack.c.l.b16 %v125
    %v1147 = vunpack.c.h.b16 %v125
    %v1148 = vunpack.c.l.b16 %v126
    %v1149 = vunpack.c.h.b16 %v126
    %v1150 = vunpack.c.l.b16 %v127
    %v1151 = vunpack.c.h.b16 %v127
    %v1152 = vunpack.c.l.b16 %v128
    %v1153 = vunpack.c.h.b16 %v128
    %v1154 = vunpack.c.l.b16 %v129
    %v1155 = vunpack.c.h.b16 %v129
    %v1156 = vunpack.c.l.b16 %v130
    %v1157 = vunpack.c.h.b16 %v130
    %v1158 = vunpack.c.l.b16 %v131
    %v1159 = vunpack.c.h.b16 %v131
    %v1160 = vunpack.c.l.b16 %v132
    %v1161 = vunpack.c.h.b16 %v132
    %v1162 = vunpack.c.l.b16 %v133
    %v1163 = vunpack.c.h.b16 %v133
    %v1164 = vunpack.c.l.b16 %v134
    %v1165 = vunpack.c.h.b16 %v134
    %v1166 = vunpack.c.l.b16 %v135
    %v1167 = vunpack.c.h.b16 %v135
    %v1168 = vunpack.c.l.b16 %v136
    %v1169 = vunpack.c.h.b16 %v136
    %v1170 = vunpack.c.l.b16 %v137
    %v1171 = vunpack.c.h.b16 %v137
    %v1172 = vunpack.c.l.b16 %v138
    %v1173 = vunpack.c.h.b16 %v138
    %v1174 = vunpack.c.l.b16 %v139
    %v1175 = vunpack.c.h.b16 %v139
    %v1176 = vunpack.c.l.b16 %v140
    %v1177 = vunpack.c.h.b16 %v140
    %v1178 = vunpack.c.l.b16 %v141
    %v1179 = vunpack.c.h.b16 %v141
    %v1180 = vunpack.c.l.b16 %v142
    %v1181 = vunpack.c.h.b16 %v142
    %v1182 = vunpack.c.l.b16 %v143
    %v1183 = vunpack.c.h.b16 %v143
    %v1184 = vunpack.c.l.b16 %v144
    %v1185 = vunpack.c.h.b16 %v144
    %v1186 = vunpack.c.l.b16 %v145
    %v1187 = vunpack.c.h.b16 %v145
    %v1188 = vunpack.c.l.b16 %v146
    %v1189 = vunpack.c.h.b16 %v146
    %v1190 = vunpack.c.l.b16 %v147
    %v1191 = vunpack.c.h.b16 %v147
    %v1192 = vunpack.c.l.b16 %v148
    %v1193 = vunpack.c.h.b16 %v148
    %v1194 = vunpack.c.l.b16 %v149
    %v1195 = vunpack.c.h.b16 %v149
    %v1196 = vunpack.c.l.b16 %v150
    %v1197 = vunpack.c.h.b16 %v150
    %v1198 = vunpack.c.l.b16 %v151
    %v1199 = vunpack.c.h.b16 %v151
    %v1200 = vunpack.c.l.b16 %v152
    %v1201 = vunpack.c.h.b16 %v152
    %v1202 = vunpack.c.l.b16 %v153
    %v1203 = vunpack.c.h.b16 %v153
    %v1204 = vunpack.c.l.b16 %v154
    %v1205 = vunpack.c.h.b16 %v154
    %v1206 = vunpack.c.l.b16 %v155
    %v1207 = vunpack.c.h.b16 %v155
    %v1208 = vunpack.c.l.b16 %v156
    %v1209 = vunpack.c.h.b16 %v156
    %v1210 = vunpack.c.l.b16 %v157
    %v1211 = vunpack.c.h.b16 %v157
    %v1212 = vunpack.c.l.b16 %v158
    %v1213 = vunpack.c.h.b16 %v158
    %v1214 = vunpack.c.l.b16 %v159
    %v1215 = vunpack.c.h.b16 %v159
    %v1216 = vunpack.c.l.b16 %v160
    %v1217 = vunpack.c.h.b16 %v160
    %v1218 = vunpack.c.l.b16 %v161
    %v1219 = vunpack.c.h.b16 %v161
    %v1220 = vunpack.c.l.b16 %v162
    %v1221 = vunpack.c.h.b16 %v162
    %v1222 = vunpack.c.l.b16 %v163
    %v1223 = vunpack.c.h.b16 %v163
    %v1224 = vunpack.c.l.b16 %v164
    %v1225 = vunpack.c.h.b16 %v164
    %v1226 = vunpack.c.l.b16 %v165
    %v1227 = vunpack.c.h.b16 %v165
    %v1228 = vunpack.c.l.b16 %v166
    %v1229 = vunpack.c.h.b16 %v166
    %v1230 = vunpack.c.l.b16 %v167
    %v1231 = vunpack.c.h.b16 %v167
    %v1232 = vunpack.c.l.b16 %v168
    %v1233 = vunpack.c.h.b16 %v168
    %v1234 = vunpack.c.l.b16 %v169
    %v1235 = vunpack.c.h.b16 %v169
    %v1236 = vunpack.c.l.b16 %v170
    %v1237 = vunpack.c.h.b16 %v170
    %v1238 = vunpack.c.l.b16 %v171
    %v1239 = vunpack.c.h.b16 %v171
    %v1240 = vunpack.c.l.b16 %v172
    %v1241 = vunpack.c.h.b16 %v172
    %v1242 = vunpack.c.l.b16 %v173
    %v1243 = vunpack.c.h.b16 %v173
    %v1244 = vunpack.c.l.b16 %v174
    %v1245 = vunpack.c.h.b16 %v174
    %v1246 = vunpack.c.l.b16 %v175
    %v1247 = vunpack.c.h.b16 %v175
    %v1248 = vunpack.c.l.b16 %v176
    %v1249 = vunpack.c.h.b16 %v176
    %v1250 = vunpack.c.l.b16 %v177
    %v1251 = vunpack.c.h.b16 %v177
    %v1252 = vunpack.c.l.b16 %v178
    %v1253 = vunpack.c.h.b16 %v178
    %v1254 = vunpack.c.l.b16 %v179
    %v1255 = vunpack.c.h.b16 %v179
    %v1256 = vunpack.c.l.b16 %v180
    %v1257 = vunpack.c.h.b16 %v180
    %v1258 = vunpack.c.l.b16 %v181
    %v1259 = vunpack.c.h.b16 %v181
    %v1260 = vunpack.c.l.b16 %v182
    %v1261 = vunpack.c.h.b16 %v182
    %v1262 = vunpack.c.l.b16 %v183
    %v1263 = vunpack.c.h.b16 %v183
    %v1264 = vunpack.c.l.b16 %v184
    %v1265 = vunpack.c.h.b16 %v184
    %v1266 = vunpack.c.l.b16 %v185
    %v1267 = vunpack.c.h.b16 %v185
    %v1268 = vunpack.c.l.b16 %v186
    %v1269 = vunpack.c.h.b16 %v186
    %v1270 = vunpack.c.l.b16 %v187
    %v1271 = vunpack.c.h.b16 %v187
    %v1272 = vunpack.c.l.b16 %v188
    %v1273 = vunpack.c.h.b16 %v188
    %v1274 = vunpack.c.l.b16 %v189
    %v1275 = vunpack.c.h.b16 %v189
    %v1276 = vunpack.c.l.b16 %v190
    %v1277 = vunpack.c.h.b16 %v190
    %v1278 = vunpack.c.l.b16 %v191
    %v1279 = vunpack.c.h.b16 %v191
    %v1280 = vunpack.c.l.b16 %v192
    %v1281 = vunpack.c.h.b16 %v192
    %v1282 = vunpack.c.l.b16 %v193
    %v1283 = vunpack.c.h.b16 %v193
    %v1284 = vunpack.c.l.b16 %v194
    %v1285 = vunpack.c.h.b16 %v194
    %v1286 = vunpack.c.l.b16 %v195
    %v1287 = vunpack.c.h.b16 %v195
    %v1288 = vunpack.c.l.b16 %v196
    %v1289 = vunpack.c.h.b16 %v196
    %v1290 = vunpack.c.l.b16 %v197
    %v1291 = vunpack.c.h.b16 %v197
    %v1292 = vunpack.c.l.b16 %v198
    %v1293 = vunpack.c.h.b16 %v198
    %v1294 = vunpack.c.l.b16 %v199
    %v1295 = vunpack.c.h.b16 %v199
    %v1296 = vunpack.c.l.b16 %v200
    %v1297 = vunpack.c.h.b16 %v200
    %v1298 = vunpack.c.l.b16 %v201
    %v1299 = vunpack.c.h.b16 %v201
    %v1300 = vunpack.c.l.b16 %v202
    %v1301 = vunpack.c.h.b16 %v202
    %v1302 = vunpack.c.l.b16 %v203
    %v1303 = vunpack.c.h.b16 %v203
    %v1304 = vunpack.c.l.b16 %v204
    %v1305 = vunpack.c.h.b16 %v204
    %v1306 = vunpack.c.l.b16 %v205
    %v1307 = vunpack.c.h.b16 %v205
    %v1308 = vunpack.c.l.b16 %v206
    %v1309 = vunpack.c.h.b16 %v206
    %v1310 = vunpack.c.l.b16 %v207
    %v1311 = vunpack.c.h.b16 %v207
    %v1312 = vunpack.c.l.b16 %v208
    %v1313 = vunpack.c.h.b16 %v208
    %v1314 = vunpack.c.l.b16 %v209
    %v1315 = vunpack.c.h.b16 %v209
    %v1316 = vunpack.c.l.b16 %v210
    %v1317 = vunpack.c.h.b16 %v210
    %v1318 = vunpack.c.l.b16 %v211
    %v1319 = vunpack.c.h.b16 %v211
    %v1320 = vunpack.c.l.b16 %v212
    %v1321 = vunpack.c.h.b16 %v212
    %v1322 = vunpack.c.l.b16 %v213
    %v1323 = vunpack.c.h.b16 %v213
    %v1324 = vunpack.c.l.b16 %v214
    %v1325 = vunpack.c.h.b16 %v214
    %v1326 = vunpack.c.l.b16 %v215
    %v1327 = vunpack.c.h.b16 %v215
    %v1328 = vunpack.c.l.b16 %v216
    %v1329 = vunpack.c.h.b16 %v216
    %v1330 = vunpack.c.l.b16 %v217
    %v1331 = vunpack.c.h.b16 %v217
    %v1332 = vunpack.c.l.b16 %v218
    %v1333 = vunpack.c.h.b16 %v218
    %v1334 = vunpack.c.l.b16 %v219
    %v1335 = vunpack.c.h.b16 %v219
    %v1336 = vunpack.c.l.b16 %v220
    %v1337 = vunpack.c.h.b16 %v220
    %v1338 = vunpack.c.l.b16 %v221
    %v1339 = vunpack.c.h.b16 %v221
    %v1340 = vunpack.c.l.b16 %v222
    %v1341 = vunpack.c.h.b16 %v222
    %v1342 = vunpack.c.l.b16 %v223
    %v1343 = vunpack.c.h.b16 %v223
    %v1344 = vunpack.c.l.b16 %v224
    %v1345 = vunpack.c.h.b16 %v224
    %v1346 = vunpack.c.l.b16 %v225
    %v1347 = vunpack.c.h.b16 %v225
    %v1348 = vunpack.c.l.b16 %v226
    %v1349 = vunpack.c.h.b16 %v226
    %v1350 = vunpack.c.l.b16 %v227
    %v1351 = vunpack.c.h.b16 %v227
    %v1352 = vunpack.c.l.b16 %v228
    %v1353 = vunpack.c.h.b16 %v228
    %v1354 = vunpack.c.l.b16 %v229
    %v1355 = vunpack.c.h.b16 %v229
    %v1356 = vunpack.c.l.b16 %v230
    %v1357 = vunpack.c.h.b16 %v230
    %v1358 = vunpack.c.l.b16 %v231
    %v1359 = vunpack.c.h.b16 %v231
    %v1360 = vunpack.c.l.b16 %v232
    %v1361 = vunpack.c.h.b16 %v232
    %v1362 = vunpack.c.l.b16 %v233
    %v1363 = vunpack.c.h.b16 %v233
    %v1364 = vunpack.c.l.b16 %v234
    %v1365 = vunpack.c.h.b16 %v234
    %v1366 = vunpack.c.l.b16 %v235
    %v1367 = vunpack.c.h.b16 %v235
    %v1368 = vunpack.c.l.b16 %v236
    %v1369 = vunpack.c.h.b16 %v236
    %v1370 = vunpack.c.l.b16 %v237
    %v1371 = vunpack.c.h.b16 %v237
    %v1372 = vunpack.c.l.b16 %v238
    %v1373 = vunpack.c.h.b16 %v238
    %v1374 = vunpack.c.l.b16 %v239
    %v1375 = vunpack.c.h.b16 %v239
    %v1376 = vunpack.c.l.b16 %v240
    %v1377 = vunpack.c.h.b16 %v240
    %v1378 = vunpack.c.l.b16 %v241
    %v1379 = vunpack.c.h.b16 %v241
    %v1380 = vunpack.c.l.b16 %v242
    %v1381 = vunpack.c.h.b16 %v242
    %v1382 = vunpack.c.l.b16 %v243
    %v1383 = vunpack.c.h.b16 %v243
    %v1384 = vunpack.c.l.b16 %v244
    %v1385 = vunpack.c.h.b16 %v244
    %v1386 = vunpack.c.l.b16 %v245
    %v1387 = vunpack.c.h.b16 %v245
    %v1388 = vunpack.c.l.b16 %v246
    %v1389 = vunpack.c.h.b16 %v246
    %v1390 = vunpack.c.l.b16 %v247
    %v1391 = vunpack.c.h.b16 %v247
    %v1392 = vunpack.c.l.b16 %v248
    %v1393 = vunpack.c.h.b16 %v248
    %v1394 = vunpack.c.l.b16 %v249
    %v1395 = vunpack.c.h.b16 %v249
    %v1396 = vunpack.c.l.b16 %v250
    %v1397 = vunpack.c.h.b16 %v250
    %v1398 = vunpack.c.l.b16 %v251
    %v1399 = vunpack.c.h.b16 %v251
    %v1400 = vunpack.c.l.b16 %v252
    %v1401 = vunpack.c.h.b16 %v252
    %v1402 = vunpack.c.l.b16 %v253
    %v1403 = vunpack.c.h.b16 %v253
    %v1404 = vunpack.c.l.b16 %v254
    %v1405 = vunpack.c.h.b16 %v254
    %v1406 = vunpack.c.l.b16 %v255
    %v1407 = vunpack.c.h.b16 %v255
    %v1408 = vunpack.c.l.b16 %v256
    %v1409 = vunpack.c.h.b16 %v256
    %v1410 = vunpack.c.l.b16 %v257
    %v1411 = vunpack.c.h.b16 %v257
    %v1412 = vunpack.c.l.b16 %v258
    %v1413 = vunpack.c.h.b16 %v258
    %v1414 = vunpack.c.l.b16 %v259
    %v1415 = vunpack.c.h.b16 %v259
    %v1416 = vunpack.c.l.b16 %v260
    %v1417 = vunpack.c.h.b16 %v260
    %v1418 = vunpack.c.l.b16 %v261
    %v1419 = vunpack.c.h.b16 %v261
    %v1420 = vunpack.c.l.b16 %v262
    %v1421 = vunpack.c.h.b16 %v262
    %v1422 = vunpack.c.l.b16 %v263
    %v1423 = vunpack.c.h.b16 %v263
    %v1424 = vunpack.c.l.b16 %v264
    %v1425 = vunpack.c.h.b16 %v264
    %v1426 = vunpack.c.l.b16 %v265
    %v1427 = vunpack.c.h.b16 %v265
    %v1428 = vunpack.c.l.b16 %v266
    %v1429 = vunpack.c.h.b16 %v266
    %v1430 = vunpack.c.l.b16 %v267
    %v1431 = vunpack.c.h.b16 %v267
    %v1432 = vunpack.c.l.b16 %v268
    %v1433 = vunpack.c.h.b16 %v268
    %v1434 = vunpack.c.l.b16 %v269
    %v1435 = vunpack.c.h.b16 %v269
    %v1436 = vunpack.c.l.b16 %v270
    %v1437 = vunpack.c.h.b16 %v270
    %v1438 = vunpack.c.l.b16 %v271
    %v1439 = vunpack.c.h.b16 %v271
    %v1440 = vunpack.c.l.b16 %v272
    %v1441 = vunpack.c.h.b16 %v272
    %v1442 = vunpack.c.l.b16 %v273
    %v1443 = vunpack.c.h.b16 %v273
    %v1444 = vunpack.c.l.b16 %v274
    %v1445 = vunpack.c.h.b16 %v274
    %v1446 = vunpack.c.l.b16 %v275
    %v1447 = vunpack.c.h.b16 %v275
    %v1448 = vunpack.c.l.b16 %v276
    %v1449 = vunpack.c.h.b16 %v276
    %v1450 = vunpack.c.l.b16 %v277
    %v1451 = vunpack.c.h.b16 %v277
    %v1452 = vunpack.c.l.b16 %v278
    %v1453 = vunpack.c.h.b16 %v278
    %v1454 = vunpack.c.l.b16 %v279
    %v1455 = vunpack.c.h.b16 %v279
    %v1456 = vunpack.c.l.b16 %v280
    %v1457 = vunpack.c.h.b16 %v280
    %v1458 = vunpack.c.l.b16 %v281
    %v1459 = vunpack.c.h.b16 %v281
    %v1460 = vunpack.c.l.b16 %v282
    %v1461 = vunpack.c.h.b16 %v282
    %v1462 = vunpack.c.l.b16 %v283
    %v1463 = vunpack.c.h.b16 %v283
    %v1464 = vunpack.c.l.b16 %v284
    %v1465 = vunpack.c.h.b16 %v284
    %v1466 = vunpack.c.l.b16 %v285
    %v1467 = vunpack.c.h.b16 %v285
    %v1468 = vunpack.c.l.b16 %v286
    %v1469 = vunpack.c.h.b16 %v286
    %v1470 = vunpack.c.l.b16 %v287
    %v1471 = vunpack.c.h.b16 %v287
    %v1472 = vunpack.c.l.b16 %v288
    %v1473 = vunpack.c.h.b16 %v288
    %v1474 = vunpack.c.l.b16 %v289
    %v1475 = vunpack.c.h.b16 %v289
    %v1476 = vunpack.c.l.b16 %v290
    %v1477 = vunpack.c.h.b16 %v290
    %v1478 = vunpack.c.l.b16 %v291
    %v1479 = vunpack.c.h.b16 %v291
    %v1480 = vunpack.c.l.b16 %v292
    %v1481 = vunpack.c.h.b16 %v292
    %v1482 = vunpack.c.l.b16 %v293
    %v1483 = vunpack.c.h.b16 %v293
    %v1484 = vunpack.c.l.b16 %v294
    %v1485 = vunpack.c.h.b16 %v294
    %v1486 = vunpack.c.l.b16 %v295
    %v1487 = vunpack.c.h.b16 %v295
    %v1488 = vunpack.c.l.b16 %v296
    %v1489 = vunpack.c.h.b16 %v296
    %v1490 = vunpack.c.l.b16 %v297
    %v1491 = vunpack.c.h.b16 %v297
    %v1492 = vunpack.c.l.b16 %v298
    %v1493 = vunpack.c.h.b16 %v298
    %v1494 = vunpack.c.l.b16 %v299
    %v1495 = vunpack.c.h.b16 %v299
    %v1496 = vunpack.c.l.b16 %v300
    %v1497 = vunpack.c.h.b16 %v300
    %v1498 = vunpack.c.l.b16 %v301
    %v1499 = vunpack.c.h.b16 %v301
    %v1500 = vunpack.c.l.b16 %v302
    %v1501 = vunpack.c.h.b16 %v302
    %v1502 = vunpack.c.l.b16 %v303
    %v1503 = vunpack.c.h.b16 %v303
    %v1504 = vunpack.c.l.b16 %v304
    %v1505 = vunpack.c.h.b16 %v304
    %v1506 = vunpack.c.l.b16 %v305
    %v1507 = vunpack.c.h.b16 %v305
    %v1508 = vunpack.c.l.b16 %v306
    %v1509 = vunpack.c.h.b16 %v306
    %v1510 = vunpack.c.l.b16 %v307
    %v1511 = vunpack.c.h.b16 %v307
    %v1512 = vunpack.c.l.b16 %v308
    %v1513 = vunpack.c.h.b16 %v308
    %v1514 = vunpack.c.l.b16 %v309
    %v1515 = vunpack.c.h.b16 %v309
    %v1516 = vunpack.c.l.b16 %v310
    %v1517 = vunpack.c.h.b16 %v310
    %v1518 = vunpack.c.l.b16 %v311
    %v1519 = vunpack.c.h.b16 %v311
    %v1520 = vunpack.c.l.b16 %v312
    %v1521 = vunpack.c.h.b16 %v312
    %v1522 = vunpack.c.l.b16 %v313
    %v1523 = vunpack.c.h.b16 %v313
    %v1524 = vunpack.c.l.b16 %v314
    %v1525 = vunpack.c.h.b16 %v314
    %v1526 = vunpack.c.l.b16 %v315
    %v1527 = vunpack.c.h.b16 %v315
    %v1528 = vunpack.c.l.b16 %v316
    %v1529 = vunpack.c.h.b16 %v316
    %v1530 = vunpack.c.l.b16 %v317
    %v1531 = vunpack.c.h.b16 %v317
    %v1532 = vunpack.c.l.b16 %v318
    %v1533 = vunpack.c.h.b16 %v318
    %v1534 = vunpack.c.l.b16 %v319
    %v1535 = vunpack.c.h.b16 %v319
    %v1536 = vunpack.c.l.b16 %v320
    %v1537 = vunpack.c.h.b16 %v320
    %v1538 = vunpack.c.l.b16 %v321
    %v1539 = vunpack.c.h.b16 %v321
    %v1540 = vunpack.c.l.b16 %v322
    %v1541 = vunpack.c.h.b16 %v322
    %v1542 = vunpack.c.l.b16 %v323
    %v1543 = vunpack.c.h.b16 %v323
    %v1544 = vunpack.c.l.b16 %v324
    %v1545 = vunpack.c.h.b16 %v324
    %v1546 = vunpack.c.l.b16 %v325
    %v1547 = vunpack.c.h.b16 %v325
    %v1548 = vunpack.c.l.b16 %v326
    %v1549 = vunpack.c.h.b16 %v326
    %v1550 = vunpack.c.l.b16 %v327
    %v1551 = vunpack.c.h.b16 %v327
    %v1552 = vunpack.c.l.b16 %v328
    %v1553 = vunpack.c.h.b16 %v328
    %v1554 = vunpack.c.l.b16 %v329
    %v1555 = vunpack.c.h.b16 %v329
    %v1556 = vunpack.c.l.b16 %v330
    %v1557 = vunpack.c.h.b16 %v330
    %v1558 = vunpack.c.l.b16 %v331
    %v1559 = vunpack.c.h.b16 %v331
    %v1560 = vunpack.c.l.b16 %v332
    %v1561 = vunpack.c.h.b16 %v332
    %v1562 = vunpack.c.l.b16 %v333
    %v1563 = vunpack.c.h.b16 %v333
    %v1564 = vunpack.c.l.b16 %v334
    %v1565 = vunpack.c.h.b16 %v334
    %v1566 = vunpack.c.l.b16 %v335
    %v1567 = vunpack.c.h.b16 %v335
    %v1568 = vunpack.c.l.b16 %v336
    %v1569 = vunpack.c.h.b16 %v336
    %v1570 = vunpack.c.l.b16 %v337
    %v1571 = vunpack.c.h.b16 %v337
    %v1572 = vunpack.c.l.b16 %v338
    %v1573 = vunpack.c.h.b16 %v338
    %v1574 = vunpack.c.l.b16 %v339
    %v1575 = vunpack.c.h.b16 %v339
    %v1576 = vunpack.c.l.b16 %v340
    %v1577 = vunpack.c.h.b16 %v340
    %v1578 = vunpack.c.l.b16 %v341
    %v1579 = vunpack.c.h.b16 %v341
    %v1580 = vunpack.c.l.b16 %v342
    %v1581 = vunpack.c.h.b16 %v342
    %v1582 = vunpack.c.l.b16 %v343
    %v1583 = vunpack.c.h.b16 %v343
    %v1584 = vunpack.c.l.b16 %v344
    %v1585 = vunpack.c.h.b16 %v344
    %v1586 = vunpack.c.l.b16 %v345
    %v1587 = vunpack.c.h.b16 %v345
    %v1588 = vunpack.c.l.b16 %v346
    %v1589 = vunpack.c.h.b16 %v346
    %v1590 = vunpack.c.l.b16 %v347
    %v1591 = vunpack.c.h.b16 %v347
    %v1592 = vunpack.c.l.b16 %v348
    %v1593 = vunpack.c.h.b16 %v348
    %v1594 = vunpack.c.l.b16 %v349
    %v1595 = vunpack.c.h.b16 %v349
    %v1596 = vunpack.c.l.b16 %v350
    %v1597 = vunpack.c.h.b16 %v350
    %v1598 = vunpack.c.l.b16 %v351
    %v1599 = vunpack.c.h.b16 %v351
    %v1600 = vunpack.c.l.b16 %v352
    %v1601 = vunpack.c.h.b16 %v352
    %v1602 = vunpack.c.l.b16 %v353
    %v1603 = vunpack.c.h.b16 %v353
    %v1604 = vunpack.c.l.b16 %v354
    %v1605 = vunpack.c.h.b16 %v354
    %v1606 = vunpack.c.l.b16 %v355
    %v1607 = vunpack.c.h.b16 %v355
    %v1608 = vunpack.c.l.b16 %v356
    %v1609 = vunpack.c.h.b16 %v356
    %v1610 = vunpack.c.l.b16 %v357
    %v1611 = vunpack.c.h.b16 %v357
    %v1612 = vunpack.c.l.b16 %v358
    %v1613 = vunpack.c.h.b16 %v358
    %v1614 = vunpack.c.l.b16 %v359
    %v1615 = vunpack.c.h.b16 %v359
    %v1616 = vunpack.c.l.b16 %v360
    %v1617 = vunpack.c.h.b16 %v360
    %v1618 = vunpack.c.l.b16 %v361
    %v1619 = vunpack.c.h.b16 %v361
    %v1620 = vunpack.c.l.b16 %v362
    %v1621 = vunpack.c.h.b16 %v362
    %v1622 = vunpack.c.l.b16 %v363
    %v1623 = vunpack.c.h.b16 %v363
    %v1624 = vunpack.c.l.b16 %v364
    %v1625 = vunpack.c.h.b16 %v364
    %v1626 = vunpack.c.l.b16 %v365
    %v1627 = vunpack.c.h.b16 %v365
    %v1628 = vunpack.c.l.b16 %v366
    %v1629 = vunpack.c.h.b16 %v366
    %v1630 = vunpack.c.l.b16 %v367
    %v1631 = vunpack.c.h.b16 %v367
    %v1632 = vunpack.c.l.b16 %v368
    %v1633 = vunpack.c.h.b16 %v368
    %v1634 = vunpack.c.l.b16 %v369
    %v1635 = vunpack.c.h.b16 %v369
    %v1636 = vunpack.c.l.b16 %v370
    %v1637 = vunpack.c.h.b16 %v370
    %v1638 = vunpack.c.l.b16 %v371
    %v1639 = vunpack.c.h.b16 %v371
    %v1640 = vunpack.c.l.b16 %v372
    %v1641 = vunpack.c.h.b16 %v372
    %v1642 = vunpack.c.l.b16 %v373
    %v1643 = vunpack.c.h.b16 %v373
    %v1644 = vunpack.c.l.b16 %v374
    %v1645 = vunpack.c.h.b16 %v374
    %v1646 = vunpack.c.l.b16 %v375
    %v1647 = vunpack.c.h.b16 %v375
    %v1648 = vunpack.c.l.b16 %v376
    %v1649 = vunpack.c.h.b16 %v376
    %v1650 = vunpack.c.l.b16 %v377
    %v1651 = vunpack.c.h.b16 %v377
    %v1652 = vunpack.c.l.b16 %v378
    %v1653 = vunpack.c.h.b16 %v378
    %v1654 = vunpack.c.l.b16 %v379
    %v1655 = vunpack.c.h.b16 %v379
    %v1656 = vunpack.c.l.b16 %v380
    %v1657 = vunpack.c.h.b16 %v380
    %v1658 = vunpack.c.l.b16 %v381
    %v1659 = vunpack.c.h.b16 %v381
    %v1660 = vunpack.c.l.b16 %v382
    %v1661 = vunpack.c.h.b16 %v382
    %v1662 = vunpack.c.l.b16 %v383
    %v1663 = vunpack.c.h.b16 %v383
    %v1664 = vunpack.c.l.b16 %v384
    %v1665 = vunpack.c.h.b16 %v384
    %v1666 = vunpack.c.l.b16 %v385
    %v1667 = vunpack.c.h.b16 %v385
    %v1668 = vunpack.c.l.b16 %v386
    %v1669 = vunpack.c.h.b16 %v386
    %v1670 = vunpack.c.l.b16 %v387
    %v1671 = vunpack.c.h.b16 %v387
    %v1672 = vunpack.c.l.b16 %v388
    %v1673 = vunpack.c.h.b16 %v388
    %v1674 = vunpack.c.l.b16 %v389
    %v1675 = vunpack.c.h.b16 %v389
    %v1676 = vunpack.c.l.b16 %v390
    %v1677 = vunpack.c.h.b16 %v390
    %v1678 = vunpack.c.l.b16 %v391
    %v1679 = vunpack.c.h.b16 %v391
    %v1680 = vunpack.c.l.b16 %v392
    %v1681 = vunpack.c.h.b16 %v392
    %v1682 = vunpack.c.l.b16 %v393
    %v1683 = vunpack.c.h.b16 %v393
    %v1684 = vunpack.c.l.b16 %v394
    %v1685 = vunpack.c.h.b16 %v394
    %v1686 = vunpack.c.l.b16 %v395
    %v1687 = vunpack.c.h.b16 %v395
    %v1688 = vunpack.c.l.b16 %v396
    %v1689 = vunpack.c.h.b16 %v396
    %v1690 = vunpack.c.l.b16 %v397
    %v1691 = vunpack.c.h.b16 %v397
    %v1692 = vunpack.c.l.b16 %v398
    %v1693 = vunpack.c.h.b16 %v398
    %v1694 = vunpack.c.l.b16 %v399
    %v1695 = vunpack.c.h.b16 %v399
    %v1696 = vunpack.c.l.b16 %v400
    %v1697 = vunpack.c.h.b16 %v400
    %v1698 = vunpack.c.l.b16 %v401
    %v1699 = vunpack.c.h.b16 %v401
    %v1700 = vunpack.c.l.b16 %v402
    %v1701 = vunpack.c.h.b16 %v402
    %v1702 = vunpack.c.l.b16 %v403
    %v1703 = vunpack.c.h.b16 %v403
    %v1704 = vunpack.c.l.b16 %v404
    %v1705 = vunpack.c.h.b16 %v404
    %v1706 = vunpack.c.l.b16 %v405
    %v1707 = vunpack.c.h.b16 %v405
    %v1708 = vunpack.c.l.b16 %v406
    %v1709 = vunpack.c.h.b16 %v406
    %v1710 = vunpack.c.l.b16 %v407
    %v1711 = vunpack.c.h.b16 %v407
    %v1712 = vunpack.c.l.b16 %v408
    %v1713 = vunpack.c.h.b16 %v408
    %v1714 = vunpack.c.l.b16 %v409
    %v1715 = vunpack.c.h.b16 %v409
    %v1716 = vunpack.c.l.b16 %v410
    %v1717 = vunpack.c.h.b16 %v410
    %v1718 = vunpack.c.l.b16 %v411
    %v1719 = vunpack.c.h.b16 %v411
    %v1720 = vunpack.c.l.b16 %v412
    %v1721 = vunpack.c.h.b16 %v412
    %v1722 = vunpack.c.l.b16 %v413
    %v1723 = vunpack.c.h.b16 %v413
    %v1724 = vunpack.c.l.b16 %v414
    %v1725 = vunpack.c.h.b16 %v414
    %v1726 = vunpack.c.l.b16 %v415
    %v1727 = vunpack.c.h.b16 %v415
    %v1728 = vunpack.c.l.b16 %v416
    %v1729 = vunpack.c.h.b16 %v416
    %v1730 = vunpack.c.l.b16 %v417
    %v1731 = vunpack.c.h.b16 %v417
    %v1732 = vunpack.c.l.b16 %v418
    %v1733 = vunpack.c.h.b16 %v418
    %v1734 = vunpack.c.l.b16 %v419
    %v1735 = vunpack.c.h.b16 %v419
    %v1736 = vunpack.c.l.b16 %v420
    %v1737 = vunpack.c.h.b16 %v420
    %v1738 = vunpack.c.l.b16 %v421
    %v1739 = vunpack.c.h.b16 %v421
    %v1740 = vunpack.c.l.b16 %v422
    %v1741 = vunpack.c.h.b16 %v422
    %v1742 = vunpack.c.l.b16 %v423
    %v1743 = vunpack.c.h.b16 %v423
    %v1744 = vunpack.c.l.b16 %v424
    %v1745 = vunpack.c.h.b16 %v424
    %v1746 = vunpack.c.l.b16 %v425
    %v1747 = vunpack.c.h.b16 %v425
    %v1748 = vunpack.c.l.b16 %v426
    %v1749 = vunpack.c.h.b16 %v426
    %v1750 = vunpack.c.l.b16 %v427
    %v1751 = vunpack.c.h.b16 %v427
    %v1752 = vunpack.c.l.b16 %v428
    %v1753 = vunpack.c.h.b16 %v428
    %v1754 = vunpack.c.l.b16 %v429
    %v1755 = vunpack.c.h.b16 %v429
    %v1756 = vunpack.c.l.b16 %v430
    %v1757 = vunpack.c.h.b16 %v430
    %v1758 = vunpack.c.l.b16 %v431
    %v1759 = vunpack.c.h.b16 %v431
    %v1760 = vunpack.c.l.b16 %v432
    %v1761 = vunpack.c.h.b16 %v432
    %v1762 = vunpack.c.l.b16 %v433
    %v1763 = vunpack.c.h.b16 %v433
    %v1764 = vunpack.c.l.b16 %v434
    %v1765 = vunpack.c.h.b16 %v434
    %v1766 = vunpack.c.l.b16 %v435
    %v1767 = vunpack.c.h.b16 %v435
    %v1768 = vunpack.c.l.b16 %v436
    %v1769 = vunpack.c.h.b16 %v436
    %v1770 = vunpack.c.l.b16 %v437
    %v1771 = vunpack.c.h.b16 %v437
    %v1772 = vunpack.c.l.b16 %v438
    %v1773 = vunpack.c.h.b16 %v438
    %v1774 = vunpack.c.l.b16 %v439
    %v1775 = vunpack.c.h.b16 %v439
    %v1776 = vunpack.c.l.b16 %v440
    %v1777 = vunpack.c.h.b16 %v440
    %v1778 = vunpack.c.l.b16 %v441
    %v1779 = vunpack.c.h.b16 %v441
    %v1780 = vunpack.c.l.b16 %v442
    %v1781 = vunpack.c.h.b16 %v442
    %v1782 = vunpack.c.l.b16 %v443
    %v1783 = vunpack.c.h.b16 %v443
    %v1784 = vunpack.c.l.b16 %v444
    %v1785 = vunpack.c.h.b16 %v444
    %v1786 = vunpack.c.l.b16 %v445
    %v1787 = vunpack.c.h.b16 %v445
    %v1788 = vunpack.c.l.b16 %v446
    %v1789 = vunpack.c.h.b16 %v446
    %v1790 = vunpack.c.l.b16 %v447
    %v1791 = vunpack.c.h.b16 %v447
    %v1792 = vunpack.c.l.b16 %v448
    %v1793 = vunpack.c.h.b16 %v448
    %v1794 = vunpack.c.l.b16 %v449
    %v1795 = vunpack.c.h.b16 %v449
    %v1796 = vunpack.c.l.b16 %v450
    %v1797 = vunpack.c.h.b16 %v450
    %v1798 = vunpack.c.l.b16 %v451
    %v1799 = vunpack.c.h.b16 %v451
    %v1800 = vunpack.c.l.b16 %v452
    %v1801 = vunpack.c.h.b16 %v452
    %v1802 = vunpack.c.l.b16 %v453
    %v1803 = vunpack.c.h.b16 %v453
    %v1804 = vunpack.c.l.b16 %v454
    %v1805 = vunpack.c.h.b16 %v454
    %v1806 = vunpack.c.l.b16 %v455
    %v1807 = vunpack.c.h.b16 %v455
    %v1808 = vunpack.c.l.b16 %v456
    %v1809 = vunpack.c.h.b16 %v456
    %v1810 = vunpack.c.l.b16 %v457
    %v1811 = vunpack.c.h.b16 %v457
    %v1812 = vunpack.c.l.b16 %v458
    %v1813 = vunpack.c.h.b16 %v458
    %v1814 = vunpack.c.l.b16 %v459
    %v1815 = vunpack.c.h.b16 %v459
    %v1816 = vunpack.c.l.b16 %v460
    %v1817 = vunpack.c.h.b16 %v460
    %v1818 = vunpack.c.l.b16 %v461
    %v1819 = vunpack.c.h.b16 %v461
    %v1820 = vunpack.c.l.b16 %v462
    %v1821 = vunpack.c.h.b16 %v462
    %v1822 = vunpack.c.l.b16 %v463
    %v1823 = vunpack.c.h.b16 %v463
    %v1824 = vunpack.c.l.b16 %v464
    %v1825 = vunpack.c.h.b16 %v464
    %v1826 = vunpack.c.l.b16 %v465
    %v1827 = vunpack.c.h.b16 %v465
    %v1828 = vunpack.c.l.b16 %v466
    %v1829 = vunpack.c.h.b16 %v466
    %v1830 = vunpack.c.l.b16 %v467
    %v1831 = vunpack.c.h.b16 %v467
    %v1832 = vunpack.c.l.b16 %v468
    %v1833 = vunpack.c.h.b16 %v468
    %v1834 = vunpack.c.l.b16 %v469
    %v1835 = vunpack.c.h.b16 %v469
    %v1836 = vunpack.c.l.b16 %v470
    %v1837 = vunpack.c.h.b16 %v470
    %v1838 = vunpack.c.l.b16 %v471
    %v1839 = vunpack.c.h.b16 %v471
    %v1840 = vunpack.c.l.b16 %v472
    %v1841 = vunpack.c.h.b16 %v472
    %v1842 = vunpack.c.l.b16 %v473
    %v1843 = vunpack.c.h.b16 %v473
    %v1844 = vunpack.c.l.b16 %v474
    %v1845 = vunpack.c.h.b16 %v474
    %v1846 = vunpack.c.l.b16 %v475
    %v1847 = vunpack.c.h.b16 %v475
    %v1848 = vunpack.c.l.b16 %v476
    %v1849 = vunpack.c.h.b16 %v476
    %v1850 = vunpack.c.l.b16 %v477
    %v1851 = vunpack.c.h.b16 %v477
    %v1852 = vunpack.c.l.b16 %v478
    %v1853 = vunpack.c.h.b16 %v478
    %v1854 = vunpack.c.l.b16 %v479
    %v1855 = vunpack.c.h.b16 %v479
    %v1856 = vunpack.c.l.b16 %v480
    %v1857 = vunpack.c.h.b16 %v480
    %v1858 = vunpack.c.l.b16 %v481
    %v1859 = vunpack.c.h.b16 %v481
    %v1860 = vunpack.c.l.b16 %v482
    %v1861 = vunpack.c.h.b16 %v482
    %v1862 = vunpack.c.l.b16 %v483
    %v1863 = vunpack.c.h.b16 %v483
    %v1864 = vunpack.c.l.b16 %v484
    %v1865 = vunpack.c.h.b16 %v484
    %v1866 = vunpack.c.l.b16 %v485
    %v1867 = vunpack.c.h.b16 %v485
    %v1868 = vunpack.c.l.b16 %v486
    %v1869 = vunpack.c.h.b16 %v486
    %v1870 = vunpack.c.l.b16 %v487
    %v1871 = vunpack.c.h.b16 %v487
    %v1872 = vunpack.c.l.b16 %v488
    %v1873 = vunpack.c.h.b16 %v488
    %v1874 = vunpack.c.l.b16 %v489
    %v1875 = vunpack.c.h.b16 %v489
    %v1876 = vunpack.c.l.b16 %v490
    %v1877 = vunpack.c.h.b16 %v490
    %v1878 = vunpack.c.l.b16 %v491
    %v1879 = vunpack.c.h.b16 %v491
    %v1880 = vunpack.c.l.b16 %v492
    %v1881 = vunpack.c.h.b16 %v492
    %v1882 = vunpack.c.l.b16 %v493
    %v1883 = vunpack.c.h.b16 %v493
    %v1884 = vunpack.c.l.b16 %v494
    %v1885 = vunpack.c.h.b16 %v494
    %v1886 = vunpack.c.l.b16 %v495
    %v1887 = vunpack.c.h.b16 %v495
    %v1888 = vunpack.c.l.b16 %v496
    %v1889 = vunpack.c.h.b16 %v496
    %v1890 = vunpack.c.l.b16 %v497
    %v1891 = vunpack.c.h.b16 %v497
    %v1892 = vunpack.c.l.b16 %v498
    %v1893 = vunpack.c.h.b16 %v498
    %v1894 = vunpack.c.l.b16 %v499
    %v1895 = vunpack.c.h.b16 %v499
    %v1896 = vunpack.c.l.b16 %v500
    %v1897 = vunpack.c.h.b16 %v500
    %v1898 = vunpack.c.l.b16 %v501
    %v1899 = vunpack.c.h.b16 %v501
    %v1900 = vunpack.c.l.b16 %v502
    %v1901 = vunpack.c.h.b16 %v502
    %v1902 = vunpack.c.l.b16 %v503
    %v1903 = vunpack.c.h.b16 %v503
    %v1904 = vunpack.c.l.b16 %v504
    %v1905 = vunpack.c.h.b16 %v504
    %v1906 = vunpack.c.l.b16 %v505
    %v1907 = vunpack.c.h.b16 %v505
    %v1908 = vunpack.c.l.b16 %v506
    %v1909 = vunpack.c.h.b16 %v506
    %v1910 = vunpack.c.l.b16 %v507
    %v1911 = vunpack.c.h.b16 %v507
    %v1912 = vpack.c.b16 %v1152, %v1144
    %v1913 = vpack.c.b16 %v1153, %v1145
    %v1914 = vpack.c.b16 %v1154, %v1146
    %v1915 = vpack.c.b16 %v1155, %v1147
    %v1916 = vpack.c.b16 %v1156, %v1148
    %v1917 = vpack.c.b16 %v1157, %v1149
    %v1918 = vpack.c.b16 %v1158, %v1150
    %v1919 = vpack.c.b16 %v1159, %v1151
    %v1920 = vpack.c.b16 %v1168, %v1160
    %v1921 = vpack.c.b16 %v1169, %v1161
    %v1922 = vpack.c.b16 %v1170, %v1162
    %v1923 = vpack.c.b16 %v1171, %v1163
    %v1924 = vpack.c.b16 %v1172, %v1164
    %v1925 = vpack.c.b16 %v1173, %v1165
    %v1926 = vpack.c.b16 %v1174, %v1166
    %v1927 = vpack.c.b16 %v1175, %v1167
    %v1928 = vpack.c.b16 %v1184, %v1176
    %v1929 = vpack.c.b16 %v1185, %v1177
    %v1930 = vpack.c.b16 %v1186, %v1178
    %v1931 = vpack.c.b16 %v1187, %v1179
    %v1932 = vpack.c.b16 %v1188, %v1180
    %v1933 = vpack.c.b16 %v1189, %v1181
    %v1934 = vpack.c.b16 %v1190, %v1182
    %v1935 = vpack.c.b16 %v1191, %v1183
    %v1936 = vpack.c.b16 %v1200, %v1192
    %v1937 = vpack.c.b16 %v1201, %v1193
    %v1938 = vpack.c.b16 %v1202, %v1194
    %v1939 = vpack.c.b16 %v1203, %v1195
    %v1940 = vpack.c.b16 %v1204, %v1196
    %v1941 = vpack.c.b16 %v1205, %v1197
    %v1942 = vpack.c.b16 %v1206, %v1198
    %v1943 = vpack.c.b16 %v1207, %v1199
    %v1944 = vpack.c.b16 %v1216, %v1208
    %v1945 = vpack.c.b16 %v1217, %v1209
    %v1946 = vpack.c.b16 %v1218, %v1210
    %v1947 = vpack.c.b16 %v1219, %v1211
    %v1948 = vpack.c.b16 %v1220, %v1212
    %v1949 = vpack.c.b16 %v1221, %v1213
    %v1950 = vpack.c.b16 %v1222, %v1214
    %v1951 = vpack.c.b16 %v1223, %v1215
    %v1952 = vpack.c.b16 %v1232, %v1224
    %v1953 = vpack.c.b16 %v1233, %v1225
    %v1954 = vpack.c.b16 %v1234, %v1226
    %v1955 = vpack.c.b16 %v1235, %v1227
    %v1956 = vpack.c.b16 %v1236, %v1228
    %v1957 = vpack.c.b16 %v1237, %v1229
    %v1958 = vpack.c.b16 %v1238, %v1230
    %v1959 = vpack.c.b16 %v1239, %v1231
    %v1960 = vpack.c.b16 %v1248, %v1240
    %v1961 = vpack.c.b16 %v1249, %v1241
    %v1962 = vpack.c.b16 %v1250, %v1242
    %v1963 = vpack.c.b16 %v1251, %v1243
    %v1964 = vpack.c.b16 %v1252, %v1244
    %v1965 = vpack.c.b16 %v1253, %v1245
    %v1966 = vpack.c.b16 %v1254, %v1246
    %v1967 = vpack.c.b16 %v1255, %v1247
    %v1968 = vpack.c.b16 %v1264, %v1256
    %v1969 = vpack.c.b16 %v1265, %v1257
    %v1970 = vpack.c.b16 %v1266, %v1258
    %v1971 = vpack.c.b16 %v1267, %v1259
    %v1972 = vpack.c.b16 %v1268, %v1260
    %v1973 = vpack.c.b16 %v1269, %v1261
    %v1974 = vpack.c.b16 %v1270, %v1262
    %v1975 = vpack.c.b16 %v1271, %v1263
    %v1976 = vpack.c.b16 %v1280, %v1272
    %v1977 = vpack.c.b16 %v1281, %v1273
    %v1978 = vpack.c.b16 %v1282, %v1274
    %v1979 = vpack.c.b16 %v1283, %v1275
    %v1980 = vpack.c.b16 %v1284, %v1276
    %v1981 = vpack.c.b16 %v1285, %v1277
    %v1982 = vpack.c.b16 %v1286, %v1278
    %v1983 = vpack.c.b16 %v1287, %v1279
    %v1984 = vpack.c.b16 %v1296, %v1288
    %v1985 = vpack.c.b16 %v1297, %v1289
    %v1986 = vpack.c.b16 %v1298, %v1290
    %v1987 = vpack.c.b16 %v1299, %v1291
    %v1988 = vpack.c.b16 %v1300, %v1292
    %v1989 = vpack.c.b16 %v1301, %v1293
    %v1990 = vpack.c.b16 %v1302, %v1294
    %v1991 = vpack.c.b16 %v1303, %v1295
    %v1992 = vpack.c.b16 %v1312, %v1304
    %v1993 = vpack.c.b16 %v1313, %v1305
    %v1994 = vpack.c.b16 %v1314, %v1306
    %v1995 = vpack.c.b16 %v1315, %v1307
    %v1996 = vpack.c.b16 %v1316, %v1308
    %v1997 = vpack.c.b16 %v1317, %v1309
    %v1998 = vpack.c.b16 %v1318, %v1310
    %v1999 = vpack.c.b16 %v1319, %v1311
    %v2000 = vpack.c.b16 %v1328, %v1320
    %v2001 = vpack.c.b16 %v1329, %v1321
    %v2002 = vpack.c.b16 %v1330, %v1322
    %v2003 = vpack.c.b16 %v1331, %v1323
    %v2004 = vpack.c.b16 %v1332, %v1324
    %v2005 = vpack.c.b16 %v1333, %v1325
    %v2006 = vpack.c.b16 %v1334, %v1326
    %v2007 = vpack.c.b16 %v1335, %v1327
    %v2008 = vpack.c.b16 %v1344, %v1336
    %v2009 = vpack.c.b16 %v1345, %v1337
    %v2010 = vpack.c.b16 %v1346, %v1338
    %v2011 = vpack.c.b16 %v1347, %v1339
    %v2012 = vpack.c.b16 %v1348, %v1340
    %v2013 = vpack.c.b16 %v1349, %v1341
    %v2014 = vpack.c.b16 %v1350, %v1342
    %v2015 = vpack.c.b16 %v1351, %v1343
    %v2016 = vpack.c.b16 %v1360, %v1352
    %v2017 = vpack.c.b16 %v1361, %v1353
    %v2018 = vpack.c.b16 %v1362, %v1354
    %v2019 = vpack.c.b16 %v1363, %v1355
    %v2020 = vpack.c.b16 %v1364, %v1356
    %v2021 = vpack.c.b16 %v1365, %v1357
    %v2022 = vpack.c.b16 %v1366, %v1358
    %v2023 = vpack.c.b16 %v1367, %v1359
    %v2024 = vpack.c.b16 %v1376, %v1368
    %v2025 = vpack.c.b16 %v1377, %v1369
    %v2026 = vpack.c.b16 %v1378, %v1370
    %v2027 = vpack.c.b16 %v1379, %v1371
    %v2028 = vpack.c.b16 %v1380, %v1372
    %v2029 = vpack.c.b16 %v1381, %v1373
    %v2030 = vpack.c.b16 %v1382, %v1374
    %v2031 = vpack.c.b16 %v1383, %v1375
    %v2032 = vpack.c.b16 %v1392, %v1384
    %v2033 = vpack.c.b16 %v1393, %v1385
    %v2034 = vpack.c.b16 %v1394, %v1386
    %v2035 = vpack.c.b16 %v1395, %v1387
    %v2036 = vpack.c.b16 %v1396, %v1388
    %v2037 = vpack.c.b16 %v1397, %v1389
    %v2038 = vpack.c.b16 %v1398, %v1390
    %v2039 = vpack.c.b16 %v1399, %v1391
    %v2040 = vpack.c.b16 %v1408, %v1400
    %v2041 = vpack.c.b16 %v1409, %v1401
    %v2042 = vpack.c.b16 %v1410, %v1402
    %v2043 = vpack.c.b16 %v1411, %v1403
    %v2044 = vpack.c.b16 %v1412, %v1404
    %v2045 = vpack.c.b16 %v1413, %v1405
    %v2046 = vpack.c.b16 %v1414, %v1406
    %v2047 = vpack.c.b16 %v1415, %v1407
    %v2048 = vpack.c.b16 %v1424, %v1416
    %v2049 = vpack.c.b16 %v1425, %v1417
    %v2050 = vpack.c.b16 %v1426, %v1418
    %v2051 = vpack.c.b16 %v1427, %v1419
    %v2052 = vpack.c.b16 %v1428, %v1420
    %v2053 = vpack.c.b16 %v1429, %v1421
    %v2054 = vpack.c.b16 %v1430, %v1422
    %v2055 = vpack.c.b16 %v1431, %v1423
    %v2056 = vpack.c.b16 %v1440, %v1432
    %v2057 = vpack.c.b16 %v1441, %v1433
    %v2058 = vpack.c.b16 %v1442, %v1434
    %v2059 = vpack.c.b16 %v1443, %v1435
    %v2060 = vpack.c.b16 %v1444, %v1436
    %v2061 = vpack.c.b16 %v1445, %v1437
    %v2062 = vpack.c.b16 %v1446, %v1438
    %v2063 = vpack.c.b16 %v1447, %v1439
    %v2064 = vpack.c.b16 %v1456, %v1448
    %v2065 = vpack.c.b16 %v1457, %v1449
    %v2066 = vpack.c.b16 %v1458, %v1450
    %v2067 = vpack.c.b16 %v1459, %v1451
    %v2068 = vpack.c.b16 %v1460, %v1452
    %v2069 = vpack.c.b16 %v1461, %v1453
    %v2070 = vpack.c.b16 %v1462, %v1454
    %v2071 = vpack.c.b16 %v1463, %v1455
    %v2072 = vpack.c.b16 %v1472, %v1464
    %v2073 = vpack.c.b16 %v1473, %v1465
    %v2074 = vpack.c.b16 %v1474, %v1466
    %v2075 = vpack.c.b16 %v1475, %v1467
    %v2076 = vpack.c.b16 %v1476, %v1468
    %v2077 = vpack.c.b16 %v1477, %v1469
    %v2078 = vpack.c.b16 %v1478, %v1470
    %v2079 = vpack.c.b16 %v1479, %v1471
    %v2080 = vpack.c.b16 %v1488, %v1480
    %v2081 = vpack.c.b16 %v1489, %v1481
    %v2082 = vpack.c.b16 %v1490, %v1482
    %v2083 = vpack.c.b16 %v1491, %v1483
    %v2084 = vpack.c.b16 %v1492, %v1484
    %v2085 = vpack.c.b16 %v1493, %v1485
    %v2086 = vpack.c.b16 %v1494, %v1486
    %v2087 = vpack.c.b16 %v1495, %v1487
    %v2088 = vpack.c.b16 %v1504, %v1496
    %v2089 = vpack.c.b16 %v1505, %v1497
    %v2090 = vpack.c.b16 %v1506, %v1498
    %v2091 = vpack.c.b16 %v1507, %v1499
    %v2092 = vpack.c.b16 %v1508, %v1500
    %v2093 = vpack.c.b16 %v1509, %v1501
    %v2094 = vpack.c.b16 %v1510, %v1502
    %v2095 = vpack.c.b16 %v1511, %v1503
    %v2096 = vpack.c.b16 %v1520, %v1512
    %v2097 = vpack.c.b16 %v1521, %v1513
    %v2098 = vpack.c.b16 %v1522, %v1514
    %v2099 = vpack.c.b16 %v1523, %v1515
    %v2100 = vpack.c.b16 %v1524, %v1516
    %v2101 = vpack.c.b16 %v1525, %v1517
    %v2102 = vpack.c.b16 %v1526, %v1518
    %v2103 = vpack.c.b16 %v1527, %v1519
    %v2104 = vpack.c.b16 %v1536, %v1528
    %v2105 = vpack.c.b16 %v1537, %v1529
    %v2106 = vpack.c.b16 %v1538, %v1530
    %v2107 = vpack.c.b16 %v1539, %v1531
    %v2108 = vpack.c.b16 %v1540, %v1532
    %v2109 = vpack.c.b16 %v1541, %v1533
    %v2110 = vpack.c.b16 %v1542, %v1534
    %v2111 = vpack.c.b16 %v1543, %v1535
    %v2112 = vpack.c.b16 %v1552, %v1544
    %v2113 = vpack.c.b16 %v1553, %v1545
    %v2114 = vpack.c.b16 %v1554, %v1546
    %v2115 = vpack.c.b16 %v1555, %v1547
    %v2116 = vpack.c.b16 %v1556, %v1548
    %v2117 = vpack.c.b16 %v1557, %v1549
    %v2118 = vpack.c.b16 %v1558, %v1550
    %v2119 = vpack.c.b16 %v1559, %v1551
    %v2120 = vpack.c.b16 %v1568, %v1560
    %v2121 = vpack.c.b16 %v1569, %v1561
    %v2122 = vpack.c.b16 %v1570, %v1562
    %v2123 = vpack.c.b16 %v1571, %v1563
    %v2124 = vpack.c.b16 %v1572, %v1564
    %v2125 = vpack.c.b16 %v1573, %v1565
    %v2126 = vpack.c.b16 %v1574, %v1566
    %v2127 = vpack.c.b16 %v1575, %v1567
    %v2128 = vpack.c.b16 %v1584, %v1576
    %v2129 = vpack.c.b16 %v1585, %v1577
    %v2130 = vpack.c.b16 %v1586, %v1578
    %v2131 = vpack.c.b16 %v1587, %v1579
    %v2132 = vpack.c.b16 %v1588, %v1580
    %v2133 = vpack.c.b16 %v1589, %v1581
    %v2134 = vpack.c.b16 %v1590, %v1582
    %v2135 = vpack.c.b16 %v1591, %v1583
    %v2136 = vpack.c.b16 %v1600, %v1592
    %v2137 = vpack.c.b16 %v1601, %v1593
    %v2138 = vpack.c.b16 %v1602, %v1594
    %v2139 = vpack.c.b16 %v1603, %v1595
    %v2140 = vpack.c.b16 %v1604, %v1596
    %v2141 = vpack.c.b16 %v1605, %v1597
    %v2142 = vpack.c.b16 %v1606, %v1598
    %v2143 = vpack.c.b16 %v1607, %v1599
    %v2144 = vpack.c.b16 %v1616, %v1608
    %v2145 = vpack.c.b16 %v1617, %v1609
    %v2146 = vpack.c.b16 %v1618, %v1610
    %v2147 = vpack.c.b16 %v1619, %v1611
    %v2148 = vpack.c.b16 %v1620, %v1612
    %v2149 = vpack.c.b16 %v1621, %v1613
    %v2150 = vpack.c.b16 %v1622, %v1614
    %v2151 = vpack.c.b16 %v1623, %v1615
    %v2152 = vpack.c.b16 %v1632, %v1624
    %v2153 = vpack.c.b16 %v1633, %v1625
    %v2154 = vpack.c.b16 %v1634, %v1626
    %v2155 = vpack.c.b16 %v1635, %v1627
    %v2156 = vpack.c.b16 %v1636, %v1628
    %v2157 = vpack.c.b16 %v1637, %v1629
    %v2158 = vpack.c.b16 %v1638, %v1630
    %v2159 = vpack.c.b16 %v1639, %v1631
    %v2160 = vpack.c.b16 %v1648, %v1640
    %v2161 = vpack.c.b16 %v1649, %v1641
    %v2162 = vpack.c.b16 %v1650, %v1642
    %v2163 = vpack.c.b16 %v1651, %v1643
    %v2164 = vpack.c.b16 %v1652, %v1644
    %v2165 = vpack.c.b16 %v1653, %v1645
    %v2166 = vpack.c.b16 %v1654, %v1646
    %v2167 = vpack.c.b16 %v1655, %v1647
    %v2168 = vpack.c.b16 %v1664, %v1656
    %v2169 = vpack.c.b16 %v1665, %v1657
    %v2170 = vpack.c.b16 %v1666, %v1658
    %v2171 = vpack.c.b16 %v1667, %v1659
    %v2172 = vpack.c.b16 %v1668, %v1660
    %v2173 = vpack.c.b16 %v1669, %v1661
    %v2174 = vpack.c.b16 %v1670, %v1662
    %v2175 = vpack.c.b16 %v1671, %v1663
    %v2176 = vpack.c.b16 %v1680, %v1672
    %v2177 = vpack.c.b16 %v1681, %v1673
    %v2178 = vpack.c.b16 %v1682, %v1674
    %v2179 = vpack.c.b16 %v1683, %v1675
    %v2180 = vpack.c.b16 %v1684, %v1676
    %v2181 = vpack.c.b16 %v1685, %v1677
    %v2182 = vpack.c.b16 %v1686, %v1678
    %v2183 = vpack.c.b16 %v1687, %v1679
    %v2184 = vpack.c.b16 %v1696, %v1688
    %v2185 = vpack.c.b16 %v1697, %v1689
    %v2186 = vpack.c.b16 %v1698, %v1690
    %v2187 = vpack.c.b16 %v1699, %v1691
    %v2188 = vpack.c.b16 %v1700, %v1692
    %v2189 = vpack.c.b16 %v1701, %v1693
    %v2190 = vpack.c.b16 %v1702, %v1694
    %v2191 = vpack.c.b16 %v1703, %v1695
    %v2192 = vpack.c.b16 %v1712, %v1704
    %v2193 = vpack.c.b16 %v1713, %v1705
    %v2194 = vpack.c.b16 %v1714, %v1706
    %v2195 = vpack.c.b16 %v1715, %v1707
    %v2196 = vpack.c.b16 %v1716, %v1708
    %v2197 = vpack.c.b16 %v1717, %v1709
    %v2198 = vpack.c.b16 %v1718, %v1710
    %v2199 = vpack.c.b16 %v1719, %v1711
    %v2200 = vpack.c.b16 %v1728, %v1720
    %v2201 = vpack.c.b16 %v1729, %v1721
    %v2202 = vpack.c.b16 %v1730, %v1722
    %v2203 = vpack.c.b16 %v1731, %v1723
    %v2204 = vpack.c.b16 %v1732, %v1724
    %v2205 = vpack.c.b16 %v1733, %v1725
    %v2206 = vpack.c.b16 %v1734, %v1726
    %v2207 = vpack.c.b16 %v1735, %v1727
    %v2208 = vpack.c.b16 %v1744, %v1736
    %v2209 = vpack.c.b16 %v1745, %v1737
    %v2210 = vpack.c.b16 %v1746, %v1738
    %v2211 = vpack.c.b16 %v1747, %v1739
    %v2212 = vpack.c.b16 %v1748, %v1740
    %v2213 = vpack.c.b16 %v1749, %v1741
    %v2214 = vpack.c.b16 %v1750, %v1742
    %v2215 = vpack.c.b16 %v1751, %v1743
    %v2216 = vpack.c.b16 %v1760, %v1752
    %v2217 = vpack.c.b16 %v1761, %v1753
    %v2218 = vpack.c.b16 %v1762, %v1754
    %v2219 = vpack.c.b16 %v1763, %v1755
    %v2220 = vpack.c.b16 %v1764, %v1756
    %v2221 = vpack.c.b16 %v1765, %v1757
    %v2222 = vpack.c.b16 %v1766, %v1758
    %v2223 = vpack.c.b16 %v1767, %v1759
    %v2224 = vpack.c.b16 %v1776, %v1768
    %v2225 = vpack.c.b16 %v1777, %v1769
    %v2226 = vpack.c.b16 %v1778, %v1770
    %v2227 = vpack.c.b16 %v1779, %v1771
    %v2228 = vpack.c.b16 %v1780, %v1772
    %v2229 = vpack.c.b16 %v1781, %v1773
    %v2230 = vpack.c.b16 %v1782, %v1774
    %v2231 = vpack.c.b16 %v1783, %v1775
    %v2232 = vpack.c.b16 %v1792, %v1784
    %v2233 = vpack.c.b16 %v1793, %v1785
    %v2234 = vpack.c.b16 %v1794, %v1786
    %v2235 = vpack.c.b16 %v1795, %v1787
    %v2236 = vpack.c.b16 %v1796, %v1788
    %v2237 = vpack.c.b16 %v1797, %v1789
    %v2238 = vpack.c.b16 %v1798, %v1790
    %v2239 = vpack.c.b16 %v1799, %v1791
    %v2240 = vpack.c.b16 %v1808, %v1800
    %v2241 = vpack.c.b16 %v1809, %v1801
    %v2242 = vpack.c.b16 %v1810, %v1802
    %v2243 = vpack.c.b16 %v1811, %v1803
    %v2244 = vpack.c.b16 %v1812, %v1804
    %v2245 = vpack.c.b16 %v1813, %v1805
    %v2246 = vpack.c.b16 %v1814, %v1806
    %v2247 = vpack.c.b16 %v1815, %v1807
    %v2248 = vpack.c.b16 %v1824, %v1816
    %v2249 = vpack.c.b16 %v1825, %v1817
    %v2250 = vpack.c.b16 %v1826, %v1818
    %v2251 = vpack.c.b16 %v1827, %v1819
    %v2252 = vpack.c.b16 %v1828, %v1820
    %v2253 = vpack.c.b16 %v1829, %v1821
    %v2254 = vpack.c.b16 %v1830, %v1822
    %v2255 = vpack.c.b16 %v1831, %v1823
    %v2256 = vpack.c.b16 %v1840, %v1832
    %v2257 = vpack.c.b16 %v1841, %v1833
    %v2258 = vpack.c.b16 %v1842, %v1834
    %v2259 = vpack.c.b16 %v1843, %v1835
    %v2260 = vpack.c.b16 %v1844, %v1836
    %v2261 = vpack.c.b16 %v1845, %v1837
    %v2262 = vpack.c.b16 %v1846, %v1838
    %v2263 = vpack.c.b16 %v1847, %v1839
    %v2264 = vpack.c.b16 %v1856, %v1848
    %v2265 = vpack.c.b16 %v1857, %v1849
    %v2266 = vpack.c.b16 %v1858, %v1850
    %v2267 = vpack.c.b16 %v1859, %v1851
    %v2268 = vpack.c.b16 %v1860, %v1852
    %v2269 = vpack.c.b16 %v1861, %v1853
    %v2270 = vpack.c.b16 %v1862, %v1854
    %v2271 = vpack.c.b16 %v1863, %v1855
    %v2272 = vpack.c.b16 %v1872, %v1864
    %v2273 = vpack.c.b16 %v1873, %v1865
    %v2274 = vpack.c.b16 %v1874, %v1866
    %v2275 = vpack.c.b16 %v1875, %v1867
    %v2276 = vpack.c.b16 %v1876, %v1868
    %v2277 = vpack.c.b16 %v1877, %v1869
    %v2278 = vpack.c.b16 %v1878, %v1870
    %v2279 = vpack.c.b16 %v1879, %v1871
    %v2280 = vpack.c.b16 %v1888, %v1880
    %v2281 = vpack.c.b16 %v1889, %v1881
    %v2282 = vpack.c.b16 %v1890, %v1882
    %v2283 = vpack.c.b16 %v1891, %v1883
    %v2284 = vpack.c.b16 %v1892, %v1884
    %v2285 = vpack.c.b16 %v1893, %v1885
    %v2286 = vpack.c.b16 %v1894, %v1886
    %v2287 = vpack.c.b16 %v1895, %v1887
    %v2288 = vpack.c.b16 %v1904, %v1896
    %v2289 = vpack.c.b16 %v1905, %v1897
    %v2290 = vpack.c.b16 %v1906, %v1898
    %v2291 = vpack.c.b16 %v1907, %v1899
    %v2292 = vpack.c.b16 %v1908, %v1900
    %v2293 = vpack.c.b16 %v1909, %v1901
    %v2294 = vpack.c.b16 %v1910, %v1902
    %v2295 = vpack.c.b16 %v1911, %v1903
    %2680 = vmatpush.bf16.msra.mxu0 %v1968
    %2681 = vmatpush.bf16.msra.mxu0 %v1960
    %2682 = vmatpush.bf16.msra.mxu0 %v1952
    %2683 = vmatpush.bf16.msra.mxu0 %v1944
    %2684 = vmatpush.bf16.msra.mxu0 %v1936
    %2685 = vmatpush.bf16.msra.mxu0 %v1928
    %2686 = vmatpush.bf16.msra.mxu0 %v1920
    %2687 = vmatpush.bf16.msra.mxu0 %v1912
    %2688 = vmatmul.bf16.gmra.mxu0 %v116
    %v2689 = vpop.f32.mrf.mxu0
    %v2690 = vadd.f32 %v666, %v2689
    %v2691 = vpop.f32.mrf.mxu0
    %2692 = vdwg.mxu0
    %2693 = vmatpush.bf16.msra.mxu0 %v2032
    %2694 = vmatpush.bf16.msra.mxu0 %v2024
    %2695 = vmatpush.bf16.msra.mxu0 %v2016
    %2696 = vmatpush.bf16.msra.mxu0 %v2008
    %2697 = vmatpush.bf16.msra.mxu0 %v2000
    %2698 = vmatpush.bf16.msra.mxu0 %v1992
    %2699 = vmatpush.bf16.msra.mxu0 %v1984
    %2700 = vmatpush.bf16.msra.mxu0 %v1976
    %2701 = vmatmul.bf16.gmra.mxu0 %v117
    %v2702 = vpop.f32.mrf.mxu0
    %v2703 = vadd.f32 %v2690, %v2702
    %v2704 = vpop.f32.mrf.mxu0
    %2705 = vdwg.mxu0
    %2706 = vmatpush.bf16.msra.mxu0 %v2096
    %2707 = vmatpush.bf16.msra.mxu0 %v2088
    %2708 = vmatpush.bf16.msra.mxu0 %v2080
    %2709 = vmatpush.bf16.msra.mxu0 %v2072
    %2710 = vmatpush.bf16.msra.mxu0 %v2064
    %2711 = vmatpush.bf16.msra.mxu0 %v2056
    %2712 = vmatpush.bf16.msra.mxu0 %v2048
    %2713 = vmatpush.bf16.msra.mxu0 %v2040
    %2714 = vmatmul.bf16.gmra.mxu0 %v118
    %v2715 = vpop.f32.mrf.mxu0
    %v2716 = vadd.f32 %v2703, %v2715
    %v2717 = vpop.f32.mrf.mxu0
    %2718 = vdwg.mxu0
    %2719 = vmatpush.bf16.msra.mxu0 %v2160
    %2720 = vmatpush.bf16.msra.mxu0 %v2152
    %2721 = vmatpush.bf16.msra.mxu0 %v2144
    %2722 = vmatpush.bf16.msra.mxu0 %v2136
    %2723 = vmatpush.bf16.msra.mxu0 %v2128
    %2724 = vmatpush.bf16.msra.mxu0 %v2120
    %2725 = vmatpush.bf16.msra.mxu0 %v2112
    %2726 = vmatpush.bf16.msra.mxu0 %v2104
    %2727 = vmatmul.bf16.gmra.mxu0 %v119
    %v2728 = vpop.f32.mrf.mxu0
    %v2729 = vadd.f32 %v2716, %v2728
    %v2730 = vpop.f32.mrf.mxu0
    %2731 = vdwg.mxu0
    %2732 = vmatpush.bf16.msra.mxu0 %v2224
    %2733 = vmatpush.bf16.msra.mxu0 %v2216
    %2734 = vmatpush.bf16.msra.mxu0 %v2208
    %2735 = vmatpush.bf16.msra.mxu0 %v2200
    %2736 = vmatpush.bf16.msra.mxu0 %v2192
    %2737 = vmatpush.bf16.msra.mxu0 %v2184
    %2738 = vmatpush.bf16.msra.mxu0 %v2176
    %2739 = vmatpush.bf16.msra.mxu0 %v2168
    %2740 = vmatmul.bf16.gmra.mxu0 %v120
    %v2741 = vpop.f32.mrf.mxu0
    %v2742 = vadd.f32 %v2729, %v2741
    %v2743 = vpop.f32.mrf.mxu0
    %2744 = vdwg.mxu0
    %2745 = vmatpush.bf16.msra.mxu0 %v2288
    %2746 = vmatpush.bf16.msra.mxu0 %v2280
    %2747 = vmatpush.bf16.msra.mxu0 %v2272
    %2748 = vmatpush.bf16.msra.mxu0 %v2264
    %2749 = vmatpush.bf16.msra.mxu0 %v2256
    %2750 = vmatpush.bf16.msra.mxu0 %v2248
    %2751 = vmatpush.bf16.msra.mxu0 %v2240
    %2752 = vmatpush.bf16.msra.mxu0 %v2232
    %2753 = vmatmul.bf16.gmra.mxu0 %v121
    %v2754 = vpop.f32.mrf.mxu0
    %v2755 = vadd.f32 %v2742, %v2754
    %v2756 = vpop.f32.mrf.mxu0
    %2757 = vdwg.mxu0
    %2758 = vmatpush.bf16.msra.mxu0 %v1969
    %2759 = vmatpush.bf16.msra.mxu0 %v1961
    %2760 = vmatpush.bf16.msra.mxu0 %v1953
    %2761 = vmatpush.bf16.msra.mxu0 %v1945
    %2762 = vmatpush.bf16.msra.mxu0 %v1937
    %2763 = vmatpush.bf16.msra.mxu0 %v1929
    %2764 = vmatpush.bf16.msra.mxu0 %v1921
    %2765 = vmatpush.bf16.msra.mxu0 %v1913
    %2766 = vmatmul.bf16.gmra.mxu0 %v116
    %v2767 = vpop.f32.mrf.mxu0
    %v2768 = vadd.f32 %v679, %v2767
    %v2769 = vpop.f32.mrf.mxu0
    %2770 = vdwg.mxu0
    %2771 = vmatpush.bf16.msra.mxu0 %v2033
    %2772 = vmatpush.bf16.msra.mxu0 %v2025
    %2773 = vmatpush.bf16.msra.mxu0 %v2017
    %2774 = vmatpush.bf16.msra.mxu0 %v2009
    %2775 = vmatpush.bf16.msra.mxu0 %v2001
    %2776 = vmatpush.bf16.msra.mxu0 %v1993
    %2777 = vmatpush.bf16.msra.mxu0 %v1985
    %2778 = vmatpush.bf16.msra.mxu0 %v1977
    %2779 = vmatmul.bf16.gmra.mxu0 %v117
    %v2780 = vpop.f32.mrf.mxu0
    %v2781 = vadd.f32 %v2768, %v2780
    %v2782 = vpop.f32.mrf.mxu0
    %2783 = vdwg.mxu0
    %2784 = vmatpush.bf16.msra.mxu0 %v2097
    %2785 = vmatpush.bf16.msra.mxu0 %v2089
    %2786 = vmatpush.bf16.msra.mxu0 %v2081
    %2787 = vmatpush.bf16.msra.mxu0 %v2073
    %2788 = vmatpush.bf16.msra.mxu0 %v2065
    %2789 = vmatpush.bf16.msra.mxu0 %v2057
    %2790 = vmatpush.bf16.msra.mxu0 %v2049
    %2791 = vmatpush.bf16.msra.mxu0 %v2041
    %2792 = vmatmul.bf16.gmra.mxu0 %v118
    %v2793 = vpop.f32.mrf.mxu0
    %v2794 = vadd.f32 %v2781, %v2793
    %v2795 = vpop.f32.mrf.mxu0
    %2796 = vdwg.mxu0
    %2797 = vmatpush.bf16.msra.mxu0 %v2161
    %2798 = vmatpush.bf16.msra.mxu0 %v2153
    %2799 = vmatpush.bf16.msra.mxu0 %v2145
    %2800 = vmatpush.bf16.msra.mxu0 %v2137
    %2801 = vmatpush.bf16.msra.mxu0 %v2129
    %2802 = vmatpush.bf16.msra.mxu0 %v2121
    %2803 = vmatpush.bf16.msra.mxu0 %v2113
    %2804 = vmatpush.bf16.msra.mxu0 %v2105
    %2805 = vmatmul.bf16.gmra.mxu0 %v119
    %v2806 = vpop.f32.mrf.mxu0
    %v2807 = vadd.f32 %v2794, %v2806
    %v2808 = vpop.f32.mrf.mxu0
    %2809 = vdwg.mxu0
    %2810 = vmatpush.bf16.msra.mxu0 %v2225
    %2811 = vmatpush.bf16.msra.mxu0 %v2217
    %2812 = vmatpush.bf16.msra.mxu0 %v2209
    %2813 = vmatpush.bf16.msra.mxu0 %v2201
    %2814 = vmatpush.bf16.msra.mxu0 %v2193
    %2815 = vmatpush.bf16.msra.mxu0 %v2185
    %2816 = vmatpush.bf16.msra.mxu0 %v2177
    %2817 = vmatpush.bf16.msra.mxu0 %v2169
    %2818 = vmatmul.bf16.gmra.mxu0 %v120
    %v2819 = vpop.f32.mrf.mxu0
    %v2820 = vadd.f32 %v2807, %v2819
    %v2821 = vpop.f32.mrf.mxu0
    %2822 = vdwg.mxu0
    %2823 = vmatpush.bf16.msra.mxu0 %v2289
    %2824 = vmatpush.bf16.msra.mxu0 %v2281
    %2825 = vmatpush.bf16.msra.mxu0 %v2273
    %2826 = vmatpush.bf16.msra.mxu0 %v2265
    %2827 = vmatpush.bf16.msra.mxu0 %v2257
    %2828 = vmatpush.bf16.msra.mxu0 %v2249
    %2829 = vmatpush.bf16.msra.mxu0 %v2241
    %2830 = vmatpush.bf16.msra.mxu0 %v2233
    %2831 = vmatmul.bf16.gmra.mxu0 %v121
    %v2832 = vpop.f32.mrf.mxu0
    %v2833 = vadd.f32 %v2820, %v2832
    %v2834 = vpop.f32.mrf.mxu0
    %2835 = vdwg.mxu0
    %2836 = vmatpush.bf16.msra.mxu0 %v1970
    %2837 = vmatpush.bf16.msra.mxu0 %v1962
    %2838 = vmatpush.bf16.msra.mxu0 %v1954
    %2839 = vmatpush.bf16.msra.mxu0 %v1946
    %2840 = vmatpush.bf16.msra.mxu0 %v1938
    %2841 = vmatpush.bf16.msra.mxu0 %v1930
    %2842 = vmatpush.bf16.msra.mxu0 %v1922
    %2843 = vmatpush.bf16.msra.mxu0 %v1914
    %2844 = vmatmul.bf16.gmra.mxu0 %v116
    %v2845 = vpop.f32.mrf.mxu0
    %v2846 = vadd.f32 %v692, %v2845
    %v2847 = vpop.f32.mrf.mxu0
    %2848 = vdwg.mxu0
    %2849 = vmatpush.bf16.msra.mxu0 %v2034
    %2850 = vmatpush.bf16.msra.mxu0 %v2026
    %2851 = vmatpush.bf16.msra.mxu0 %v2018
    %2852 = vmatpush.bf16.msra.mxu0 %v2010
    %2853 = vmatpush.bf16.msra.mxu0 %v2002
    %2854 = vmatpush.bf16.msra.mxu0 %v1994
    %2855 = vmatpush.bf16.msra.mxu0 %v1986
    %2856 = vmatpush.bf16.msra.mxu0 %v1978
    %2857 = vmatmul.bf16.gmra.mxu0 %v117
    %v2858 = vpop.f32.mrf.mxu0
    %v2859 = vadd.f32 %v2846, %v2858
    %v2860 = vpop.f32.mrf.mxu0
    %2861 = vdwg.mxu0
    %2862 = vmatpush.bf16.msra.mxu0 %v2098
    %2863 = vmatpush.bf16.msra.mxu0 %v2090
    %2864 = vmatpush.bf16.msra.mxu0 %v2082
    %2865 = vmatpush.bf16.msra.mxu0 %v2074
    %2866 = vmatpush.bf16.msra.mxu0 %v2066
    %2867 = vmatpush.bf16.msra.mxu0 %v2058
    %2868 = vmatpush.bf16.msra.mxu0 %v2050
    %2869 = vmatpush.bf16.msra.mxu0 %v2042
    %2870 = vmatmul.bf16.gmra.mxu0 %v118
    %v2871 = vpop.f32.mrf.mxu0
    %v2872 = vadd.f32 %v2859, %v2871
    %v2873 = vpop.f32.mrf.mxu0
    %2874 = vdwg.mxu0
    %2875 = vmatpush.bf16.msra.mxu0 %v2162
    %2876 = vmatpush.bf16.msra.mxu0 %v2154
    %2877 = vmatpush.bf16.msra.mxu0 %v2146
    %2878 = vmatpush.bf16.msra.mxu0 %v2138
    %2879 = vmatpush.bf16.msra.mxu0 %v2130
    %2880 = vmatpush.bf16.msra.mxu0 %v2122
    %2881 = vmatpush.bf16.msra.mxu0 %v2114
    %2882 = vmatpush.bf16.msra.mxu0 %v2106
    %2883 = vmatmul.bf16.gmra.mxu0 %v119
    %v2884 = vpop.f32.mrf.mxu0
    %v2885 = vadd.f32 %v2872, %v2884
    %v2886 = vpop.f32.mrf.mxu0
    %2887 = vdwg.mxu0
    %2888 = vmatpush.bf16.msra.mxu0 %v2226
    %2889 = vmatpush.bf16.msra.mxu0 %v2218
    %2890 = vmatpush.bf16.msra.mxu0 %v2210
    %2891 = vmatpush.bf16.msra.mxu0 %v2202
    %2892 = vmatpush.bf16.msra.mxu0 %v2194
    %2893 = vmatpush.bf16.msra.mxu0 %v2186
    %2894 = vmatpush.bf16.msra.mxu0 %v2178
    %2895 = vmatpush.bf16.msra.mxu0 %v2170
    %2896 = vmatmul.bf16.gmra.mxu0 %v120
    %v2897 = vpop.f32.mrf.mxu0
    %v2898 = vadd.f32 %v2885, %v2897
    %v2899 = vpop.f32.mrf.mxu0
    %2900 = vdwg.mxu0
    %2901 = vmatpush.bf16.msra.mxu0 %v2290
    %2902 = vmatpush.bf16.msra.mxu0 %v2282
    %2903 = vmatpush.bf16.msra.mxu0 %v2274
    %2904 = vmatpush.bf16.msra.mxu0 %v2266
    %2905 = vmatpush.bf16.msra.mxu0 %v2258
    %2906 = vmatpush.bf16.msra.mxu0 %v2250
    %2907 = vmatpush.bf16.msra.mxu0 %v2242
    %2908 = vmatpush.bf16.msra.mxu0 %v2234
    %2909 = vmatmul.bf16.gmra.mxu0 %v121
    %v2910 = vpop.f32.mrf.mxu0
    %v2911 = vadd.f32 %v2898, %v2910
    %v2912 = vpop.f32.mrf.mxu0
    %2913 = vdwg.mxu0
    %2914 = vmatpush.bf16.msra.mxu0 %v1971
    %2915 = vmatpush.bf16.msra.mxu0 %v1963
    %2916 = vmatpush.bf16.msra.mxu0 %v1955
    %2917 = vmatpush.bf16.msra.mxu0 %v1947
    %2918 = vmatpush.bf16.msra.mxu0 %v1939
    %2919 = vmatpush.bf16.msra.mxu0 %v1931
    %2920 = vmatpush.bf16.msra.mxu0 %v1923
    %2921 = vmatpush.bf16.msra.mxu0 %v1915
    %2922 = vmatmul.bf16.gmra.mxu0 %v116
    %v2923 = vpop.f32.mrf.mxu0
    %v2924 = vadd.f32 %v705, %v2923
    %v2925 = vpop.f32.mrf.mxu0
    %2926 = vdwg.mxu0
    %2927 = vmatpush.bf16.msra.mxu0 %v2035
    %2928 = vmatpush.bf16.msra.mxu0 %v2027
    %2929 = vmatpush.bf16.msra.mxu0 %v2019
    %2930 = vmatpush.bf16.msra.mxu0 %v2011
    %2931 = vmatpush.bf16.msra.mxu0 %v2003
    %2932 = vmatpush.bf16.msra.mxu0 %v1995
    %2933 = vmatpush.bf16.msra.mxu0 %v1987
    %2934 = vmatpush.bf16.msra.mxu0 %v1979
    %2935 = vmatmul.bf16.gmra.mxu0 %v117
    %v2936 = vpop.f32.mrf.mxu0
    %v2937 = vadd.f32 %v2924, %v2936
    %v2938 = vpop.f32.mrf.mxu0
    %2939 = vdwg.mxu0
    %2940 = vmatpush.bf16.msra.mxu0 %v2099
    %2941 = vmatpush.bf16.msra.mxu0 %v2091
    %2942 = vmatpush.bf16.msra.mxu0 %v2083
    %2943 = vmatpush.bf16.msra.mxu0 %v2075
    %2944 = vmatpush.bf16.msra.mxu0 %v2067
    %2945 = vmatpush.bf16.msra.mxu0 %v2059
    %2946 = vmatpush.bf16.msra.mxu0 %v2051
    %2947 = vmatpush.bf16.msra.mxu0 %v2043
    %2948 = vmatmul.bf16.gmra.mxu0 %v118
    %v2949 = vpop.f32.mrf.mxu0
    %v2950 = vadd.f32 %v2937, %v2949
    %v2951 = vpop.f32.mrf.mxu0
    %2952 = vdwg.mxu0
    %2953 = vmatpush.bf16.msra.mxu0 %v2163
    %2954 = vmatpush.bf16.msra.mxu0 %v2155
    %2955 = vmatpush.bf16.msra.mxu0 %v2147
    %2956 = vmatpush.bf16.msra.mxu0 %v2139
    %2957 = vmatpush.bf16.msra.mxu0 %v2131
    %2958 = vmatpush.bf16.msra.mxu0 %v2123
    %2959 = vmatpush.bf16.msra.mxu0 %v2115
    %2960 = vmatpush.bf16.msra.mxu0 %v2107
    %2961 = vmatmul.bf16.gmra.mxu0 %v119
    %v2962 = vpop.f32.mrf.mxu0
    %v2963 = vadd.f32 %v2950, %v2962
    %v2964 = vpop.f32.mrf.mxu0
    %2965 = vdwg.mxu0
    %2966 = vmatpush.bf16.msra.mxu0 %v2227
    %2967 = vmatpush.bf16.msra.mxu0 %v2219
    %2968 = vmatpush.bf16.msra.mxu0 %v2211
    %2969 = vmatpush.bf16.msra.mxu0 %v2203
    %2970 = vmatpush.bf16.msra.mxu0 %v2195
    %2971 = vmatpush.bf16.msra.mxu0 %v2187
    %2972 = vmatpush.bf16.msra.mxu0 %v2179
    %2973 = vmatpush.bf16.msra.mxu0 %v2171
    %2974 = vmatmul.bf16.gmra.mxu0 %v120
    %v2975 = vpop.f32.mrf.mxu0
    %v2976 = vadd.f32 %v2963, %v2975
    %v2977 = vpop.f32.mrf.mxu0
    %2978 = vdwg.mxu0
    %2979 = vmatpush.bf16.msra.mxu0 %v2291
    %2980 = vmatpush.bf16.msra.mxu0 %v2283
    %2981 = vmatpush.bf16.msra.mxu0 %v2275
    %2982 = vmatpush.bf16.msra.mxu0 %v2267
    %2983 = vmatpush.bf16.msra.mxu0 %v2259
    %2984 = vmatpush.bf16.msra.mxu0 %v2251
    %2985 = vmatpush.bf16.msra.mxu0 %v2243
    %2986 = vmatpush.bf16.msra.mxu0 %v2235
    %2987 = vmatmul.bf16.gmra.mxu0 %v121
    %v2988 = vpop.f32.mrf.mxu0
    %v2989 = vadd.f32 %v2976, %v2988
    %v2990 = vpop.f32.mrf.mxu0
    %2991 = vdwg.mxu0
    %2992 = vmatpush.bf16.msra.mxu0 %v1972
    %2993 = vmatpush.bf16.msra.mxu0 %v1964
    %2994 = vmatpush.bf16.msra.mxu0 %v1956
    %2995 = vmatpush.bf16.msra.mxu0 %v1948
    %2996 = vmatpush.bf16.msra.mxu0 %v1940
    %2997 = vmatpush.bf16.msra.mxu0 %v1932
    %2998 = vmatpush.bf16.msra.mxu0 %v1924
    %2999 = vmatpush.bf16.msra.mxu0 %v1916
    %3000 = vmatmul.bf16.gmra.mxu0 %v116
    %v3001 = vpop.f32.mrf.mxu0
    %v3002 = vadd.f32 %v718, %v3001
    %v3003 = vpop.f32.mrf.mxu0
    %3004 = vdwg.mxu0
    %3005 = vmatpush.bf16.msra.mxu0 %v2036
    %3006 = vmatpush.bf16.msra.mxu0 %v2028
    %3007 = vmatpush.bf16.msra.mxu0 %v2020
    %3008 = vmatpush.bf16.msra.mxu0 %v2012
    %3009 = vmatpush.bf16.msra.mxu0 %v2004
    %3010 = vmatpush.bf16.msra.mxu0 %v1996
    %3011 = vmatpush.bf16.msra.mxu0 %v1988
    %3012 = vmatpush.bf16.msra.mxu0 %v1980
    %3013 = vmatmul.bf16.gmra.mxu0 %v117
    %v3014 = vpop.f32.mrf.mxu0
    %v3015 = vadd.f32 %v3002, %v3014
    %v3016 = vpop.f32.mrf.mxu0
    %3017 = vdwg.mxu0
    %3018 = vmatpush.bf16.msra.mxu0 %v2100
    %3019 = vmatpush.bf16.msra.mxu0 %v2092
    %3020 = vmatpush.bf16.msra.mxu0 %v2084
    %3021 = vmatpush.bf16.msra.mxu0 %v2076
    %3022 = vmatpush.bf16.msra.mxu0 %v2068
    %3023 = vmatpush.bf16.msra.mxu0 %v2060
    %3024 = vmatpush.bf16.msra.mxu0 %v2052
    %3025 = vmatpush.bf16.msra.mxu0 %v2044
    %3026 = vmatmul.bf16.gmra.mxu0 %v118
    %v3027 = vpop.f32.mrf.mxu0
    %v3028 = vadd.f32 %v3015, %v3027
    %v3029 = vpop.f32.mrf.mxu0
    %3030 = vdwg.mxu0
    %3031 = vmatpush.bf16.msra.mxu0 %v2164
    %3032 = vmatpush.bf16.msra.mxu0 %v2156
    %3033 = vmatpush.bf16.msra.mxu0 %v2148
    %3034 = vmatpush.bf16.msra.mxu0 %v2140
    %3035 = vmatpush.bf16.msra.mxu0 %v2132
    %3036 = vmatpush.bf16.msra.mxu0 %v2124
    %3037 = vmatpush.bf16.msra.mxu0 %v2116
    %3038 = vmatpush.bf16.msra.mxu0 %v2108
    %3039 = vmatmul.bf16.gmra.mxu0 %v119
    %v3040 = vpop.f32.mrf.mxu0
    %v3041 = vadd.f32 %v3028, %v3040
    %v3042 = vpop.f32.mrf.mxu0
    %3043 = vdwg.mxu0
    %3044 = vmatpush.bf16.msra.mxu0 %v2228
    %3045 = vmatpush.bf16.msra.mxu0 %v2220
    %3046 = vmatpush.bf16.msra.mxu0 %v2212
    %3047 = vmatpush.bf16.msra.mxu0 %v2204
    %3048 = vmatpush.bf16.msra.mxu0 %v2196
    %3049 = vmatpush.bf16.msra.mxu0 %v2188
    %3050 = vmatpush.bf16.msra.mxu0 %v2180
    %3051 = vmatpush.bf16.msra.mxu0 %v2172
    %3052 = vmatmul.bf16.gmra.mxu0 %v120
    %v3053 = vpop.f32.mrf.mxu0
    %v3054 = vadd.f32 %v3041, %v3053
    %v3055 = vpop.f32.mrf.mxu0
    %3056 = vdwg.mxu0
    %3057 = vmatpush.bf16.msra.mxu0 %v2292
    %3058 = vmatpush.bf16.msra.mxu0 %v2284
    %3059 = vmatpush.bf16.msra.mxu0 %v2276
    %3060 = vmatpush.bf16.msra.mxu0 %v2268
    %3061 = vmatpush.bf16.msra.mxu0 %v2260
    %3062 = vmatpush.bf16.msra.mxu0 %v2252
    %3063 = vmatpush.bf16.msra.mxu0 %v2244
    %3064 = vmatpush.bf16.msra.mxu0 %v2236
    %3065 = vmatmul.bf16.gmra.mxu0 %v121
    %v3066 = vpop.f32.mrf.mxu0
    %v3067 = vadd.f32 %v3054, %v3066
    %v3068 = vpop.f32.mrf.mxu0
    %3069 = vdwg.mxu0
    %3070 = vmatpush.bf16.msra.mxu0 %v1973
    %3071 = vmatpush.bf16.msra.mxu0 %v1965
    %3072 = vmatpush.bf16.msra.mxu0 %v1957
    %3073 = vmatpush.bf16.msra.mxu0 %v1949
    %3074 = vmatpush.bf16.msra.mxu0 %v1941
    %3075 = vmatpush.bf16.msra.mxu0 %v1933
    %3076 = vmatpush.bf16.msra.mxu0 %v1925
    %3077 = vmatpush.bf16.msra.mxu0 %v1917
    %3078 = vmatmul.bf16.gmra.mxu0 %v116
    %v3079 = vpop.f32.mrf.mxu0
    %v3080 = vadd.f32 %v731, %v3079
    %v3081 = vpop.f32.mrf.mxu0
    %3082 = vdwg.mxu0
    %3083 = vmatpush.bf16.msra.mxu0 %v2037
    %3084 = vmatpush.bf16.msra.mxu0 %v2029
    %3085 = vmatpush.bf16.msra.mxu0 %v2021
    %3086 = vmatpush.bf16.msra.mxu0 %v2013
    %3087 = vmatpush.bf16.msra.mxu0 %v2005
    %3088 = vmatpush.bf16.msra.mxu0 %v1997
    %3089 = vmatpush.bf16.msra.mxu0 %v1989
    %3090 = vmatpush.bf16.msra.mxu0 %v1981
    %3091 = vmatmul.bf16.gmra.mxu0 %v117
    %v3092 = vpop.f32.mrf.mxu0
    %v3093 = vadd.f32 %v3080, %v3092
    %v3094 = vpop.f32.mrf.mxu0
    %3095 = vdwg.mxu0
    %3096 = vmatpush.bf16.msra.mxu0 %v2101
    %3097 = vmatpush.bf16.msra.mxu0 %v2093
    %3098 = vmatpush.bf16.msra.mxu0 %v2085
    %3099 = vmatpush.bf16.msra.mxu0 %v2077
    %3100 = vmatpush.bf16.msra.mxu0 %v2069
    %3101 = vmatpush.bf16.msra.mxu0 %v2061
    %3102 = vmatpush.bf16.msra.mxu0 %v2053
    %3103 = vmatpush.bf16.msra.mxu0 %v2045
    %3104 = vmatmul.bf16.gmra.mxu0 %v118
    %v3105 = vpop.f32.mrf.mxu0
    %v3106 = vadd.f32 %v3093, %v3105
    %v3107 = vpop.f32.mrf.mxu0
    %3108 = vdwg.mxu0
    %3109 = vmatpush.bf16.msra.mxu0 %v2165
    %3110 = vmatpush.bf16.msra.mxu0 %v2157
    %3111 = vmatpush.bf16.msra.mxu0 %v2149
    %3112 = vmatpush.bf16.msra.mxu0 %v2141
    %3113 = vmatpush.bf16.msra.mxu0 %v2133
    %3114 = vmatpush.bf16.msra.mxu0 %v2125
    %3115 = vmatpush.bf16.msra.mxu0 %v2117
    %3116 = vmatpush.bf16.msra.mxu0 %v2109
    %3117 = vmatmul.bf16.gmra.mxu0 %v119
    %v3118 = vpop.f32.mrf.mxu0
    %v3119 = vadd.f32 %v3106, %v3118
    %v3120 = vpop.f32.mrf.mxu0
    %3121 = vdwg.mxu0
    %3122 = vmatpush.bf16.msra.mxu0 %v2229
    %3123 = vmatpush.bf16.msra.mxu0 %v2221
    %3124 = vmatpush.bf16.msra.mxu0 %v2213
    %3125 = vmatpush.bf16.msra.mxu0 %v2205
    %3126 = vmatpush.bf16.msra.mxu0 %v2197
    %3127 = vmatpush.bf16.msra.mxu0 %v2189
    %3128 = vmatpush.bf16.msra.mxu0 %v2181
    %3129 = vmatpush.bf16.msra.mxu0 %v2173
    %3130 = vmatmul.bf16.gmra.mxu0 %v120
    %v3131 = vpop.f32.mrf.mxu0
    %v3132 = vadd.f32 %v3119, %v3131
    %v3133 = vpop.f32.mrf.mxu0
    %3134 = vdwg.mxu0
    %3135 = vmatpush.bf16.msra.mxu0 %v2293
    %3136 = vmatpush.bf16.msra.mxu0 %v2285
    %3137 = vmatpush.bf16.msra.mxu0 %v2277
    %3138 = vmatpush.bf16.msra.mxu0 %v2269
    %3139 = vmatpush.bf16.msra.mxu0 %v2261
    %3140 = vmatpush.bf16.msra.mxu0 %v2253
    %3141 = vmatpush.bf16.msra.mxu0 %v2245
    %3142 = vmatpush.bf16.msra.mxu0 %v2237
    %3143 = vmatmul.bf16.gmra.mxu0 %v121
    %v3144 = vpop.f32.mrf.mxu0
    %v3145 = vadd.f32 %v3132, %v3144
    %v3146 = vpop.f32.mrf.mxu0
    %3147 = vdwg.mxu0
    %3148 = vmatpush.bf16.msra.mxu0 %v1974
    %3149 = vmatpush.bf16.msra.mxu0 %v1966
    %3150 = vmatpush.bf16.msra.mxu0 %v1958
    %3151 = vmatpush.bf16.msra.mxu0 %v1950
    %3152 = vmatpush.bf16.msra.mxu0 %v1942
    %3153 = vmatpush.bf16.msra.mxu0 %v1934
    %3154 = vmatpush.bf16.msra.mxu0 %v1926
    %3155 = vmatpush.bf16.msra.mxu0 %v1918
    %3156 = vmatmul.bf16.gmra.mxu0 %v116
    %v3157 = vpop.f32.mrf.mxu0
    %v3158 = vadd.f32 %v744, %v3157
    %v3159 = vpop.f32.mrf.mxu0
    %3160 = vdwg.mxu0
    %3161 = vmatpush.bf16.msra.mxu0 %v2038
    %3162 = vmatpush.bf16.msra.mxu0 %v2030
    %3163 = vmatpush.bf16.msra.mxu0 %v2022
    %3164 = vmatpush.bf16.msra.mxu0 %v2014
    %3165 = vmatpush.bf16.msra.mxu0 %v2006
    %3166 = vmatpush.bf16.msra.mxu0 %v1998
    %3167 = vmatpush.bf16.msra.mxu0 %v1990
    %3168 = vmatpush.bf16.msra.mxu0 %v1982
    %3169 = vmatmul.bf16.gmra.mxu0 %v117
    %v3170 = vpop.f32.mrf.mxu0
    %v3171 = vadd.f32 %v3158, %v3170
    %v3172 = vpop.f32.mrf.mxu0
    %3173 = vdwg.mxu0
    %3174 = vmatpush.bf16.msra.mxu0 %v2102
    %3175 = vmatpush.bf16.msra.mxu0 %v2094
    %3176 = vmatpush.bf16.msra.mxu0 %v2086
    %3177 = vmatpush.bf16.msra.mxu0 %v2078
    %3178 = vmatpush.bf16.msra.mxu0 %v2070
    %3179 = vmatpush.bf16.msra.mxu0 %v2062
    %3180 = vmatpush.bf16.msra.mxu0 %v2054
    %3181 = vmatpush.bf16.msra.mxu0 %v2046
    %3182 = vmatmul.bf16.gmra.mxu0 %v118
    %v3183 = vpop.f32.mrf.mxu0
    %v3184 = vadd.f32 %v3171, %v3183
    %v3185 = vpop.f32.mrf.mxu0
    %3186 = vdwg.mxu0
    %3187 = vmatpush.bf16.msra.mxu0 %v2166
    %3188 = vmatpush.bf16.msra.mxu0 %v2158
    %3189 = vmatpush.bf16.msra.mxu0 %v2150
    %3190 = vmatpush.bf16.msra.mxu0 %v2142
    %3191 = vmatpush.bf16.msra.mxu0 %v2134
    %3192 = vmatpush.bf16.msra.mxu0 %v2126
    %3193 = vmatpush.bf16.msra.mxu0 %v2118
    %3194 = vmatpush.bf16.msra.mxu0 %v2110
    %3195 = vmatmul.bf16.gmra.mxu0 %v119
    %v3196 = vpop.f32.mrf.mxu0
    %v3197 = vadd.f32 %v3184, %v3196
    %v3198 = vpop.f32.mrf.mxu0
    %3199 = vdwg.mxu0
    %3200 = vmatpush.bf16.msra.mxu0 %v2230
    %3201 = vmatpush.bf16.msra.mxu0 %v2222
    %3202 = vmatpush.bf16.msra.mxu0 %v2214
    %3203 = vmatpush.bf16.msra.mxu0 %v2206
    %3204 = vmatpush.bf16.msra.mxu0 %v2198
    %3205 = vmatpush.bf16.msra.mxu0 %v2190
    %3206 = vmatpush.bf16.msra.mxu0 %v2182
    %3207 = vmatpush.bf16.msra.mxu0 %v2174
    %3208 = vmatmul.bf16.gmra.mxu0 %v120
    %v3209 = vpop.f32.mrf.mxu0
    %v3210 = vadd.f32 %v3197, %v3209
    %v3211 = vpop.f32.mrf.mxu0
    %3212 = vdwg.mxu0
    %3213 = vmatpush.bf16.msra.mxu0 %v2294
    %3214 = vmatpush.bf16.msra.mxu0 %v2286
    %3215 = vmatpush.bf16.msra.mxu0 %v2278
    %3216 = vmatpush.bf16.msra.mxu0 %v2270
    %3217 = vmatpush.bf16.msra.mxu0 %v2262
    %3218 = vmatpush.bf16.msra.mxu0 %v2254
    %3219 = vmatpush.bf16.msra.mxu0 %v2246
    %3220 = vmatpush.bf16.msra.mxu0 %v2238
    %3221 = vmatmul.bf16.gmra.mxu0 %v121
    %v3222 = vpop.f32.mrf.mxu0
    %v3223 = vadd.f32 %v3210, %v3222
    %v3224 = vpop.f32.mrf.mxu0
    %3225 = vdwg.mxu0
    %3226 = vmatpush.bf16.msra.mxu0 %v1975
    %3227 = vmatpush.bf16.msra.mxu0 %v1967
    %3228 = vmatpush.bf16.msra.mxu0 %v1959
    %3229 = vmatpush.bf16.msra.mxu0 %v1951
    %3230 = vmatpush.bf16.msra.mxu0 %v1943
    %3231 = vmatpush.bf16.msra.mxu0 %v1935
    %3232 = vmatpush.bf16.msra.mxu0 %v1927
    %3233 = vmatpush.bf16.msra.mxu0 %v1919
    %3234 = vmatmul.bf16.gmra.mxu0 %v116
    %v3235 = vpop.f32.mrf.mxu0
    %v3236 = vadd.f32 %v757, %v3235
    %v3237 = vpop.f32.mrf.mxu0
    %3238 = vdwg.mxu0
    %3239 = vmatpush.bf16.msra.mxu0 %v2039
    %3240 = vmatpush.bf16.msra.mxu0 %v2031
    %3241 = vmatpush.bf16.msra.mxu0 %v2023
    %3242 = vmatpush.bf16.msra.mxu0 %v2015
    %3243 = vmatpush.bf16.msra.mxu0 %v2007
    %3244 = vmatpush.bf16.msra.mxu0 %v1999
    %3245 = vmatpush.bf16.msra.mxu0 %v1991
    %3246 = vmatpush.bf16.msra.mxu0 %v1983
    %3247 = vmatmul.bf16.gmra.mxu0 %v117
    %v3248 = vpop.f32.mrf.mxu0
    %v3249 = vadd.f32 %v3236, %v3248
    %v3250 = vpop.f32.mrf.mxu0
    %3251 = vdwg.mxu0
    %3252 = vmatpush.bf16.msra.mxu0 %v2103
    %3253 = vmatpush.bf16.msra.mxu0 %v2095
    %3254 = vmatpush.bf16.msra.mxu0 %v2087
    %3255 = vmatpush.bf16.msra.mxu0 %v2079
    %3256 = vmatpush.bf16.msra.mxu0 %v2071
    %3257 = vmatpush.bf16.msra.mxu0 %v2063
    %3258 = vmatpush.bf16.msra.mxu0 %v2055
    %3259 = vmatpush.bf16.msra.mxu0 %v2047
    %3260 = vmatmul.bf16.gmra.mxu0 %v118
    %v3261 = vpop.f32.mrf.mxu0
    %v3262 = vadd.f32 %v3249, %v3261
    %v3263 = vpop.f32.mrf.mxu0
    %3264 = vdwg.mxu0
    %3265 = vmatpush.bf16.msra.mxu0 %v2167
    %3266 = vmatpush.bf16.msra.mxu0 %v2159
    %3267 = vmatpush.bf16.msra.mxu0 %v2151
    %3268 = vmatpush.bf16.msra.mxu0 %v2143
    %3269 = vmatpush.bf16.msra.mxu0 %v2135
    %3270 = vmatpush.bf16.msra.mxu0 %v2127
    %3271 = vmatpush.bf16.msra.mxu0 %v2119
    %3272 = vmatpush.bf16.msra.mxu0 %v2111
    %3273 = vmatmul.bf16.gmra.mxu0 %v119
    %v3274 = vpop.f32.mrf.mxu0
    %v3275 = vadd.f32 %v3262, %v3274
    %v3276 = vpop.f32.mrf.mxu0
    %3277 = vdwg.mxu0
    %3278 = vmatpush.bf16.msra.mxu0 %v2231
    %3279 = vmatpush.bf16.msra.mxu0 %v2223
    %3280 = vmatpush.bf16.msra.mxu0 %v2215
    %3281 = vmatpush.bf16.msra.mxu0 %v2207
    %3282 = vmatpush.bf16.msra.mxu0 %v2199
    %3283 = vmatpush.bf16.msra.mxu0 %v2191
    %3284 = vmatpush.bf16.msra.mxu0 %v2183
    %3285 = vmatpush.bf16.msra.mxu0 %v2175
    %3286 = vmatmul.bf16.gmra.mxu0 %v120
    %v3287 = vpop.f32.mrf.mxu0
    %v3288 = vadd.f32 %v3275, %v3287
    %v3289 = vpop.f32.mrf.mxu0
    %3290 = vdwg.mxu0
    %3291 = vmatpush.bf16.msra.mxu0 %v2295
    %3292 = vmatpush.bf16.msra.mxu0 %v2287
    %3293 = vmatpush.bf16.msra.mxu0 %v2279
    %3294 = vmatpush.bf16.msra.mxu0 %v2271
    %3295 = vmatpush.bf16.msra.mxu0 %v2263
    %3296 = vmatpush.bf16.msra.mxu0 %v2255
    %3297 = vmatpush.bf16.msra.mxu0 %v2247
    %3298 = vmatpush.bf16.msra.mxu0 %v2239
    %3299 = vmatmul.bf16.gmra.mxu0 %v121
    %v3300 = vpop.f32.mrf.mxu0
    %v3301 = vadd.f32 %v3288, %v3300
    %v3302 = vpop.f32.mrf.mxu0
    %3303 = vdwg.mxu0
    %v3304 = vld [vmem:[#allocation7] sm:$0xff]
    %v3306 = vperm.slane %v3304, 0
    %v3307 = vperm.slane %v3304, 1
    %v3308 = vperm.slane %v3304, 2
    %v3309 = vperm.slane %v3304, 3
    %v3310 = vperm.slane %v3304, 4
    %v3311 = vperm.slane %v3304, 5
    %v3312 = vperm.slane %v3304, 6
    %v3313 = vperm.slane %v3304, 7
    %v3322 = vadd.f32 %v2755, %v3306
    %v3323 = vadd.f32 %v2833, %v3307
    %v3324 = vadd.f32 %v2911, %v3308
    %v3325 = vadd.f32 %v2989, %v3309
    %v3326 = vadd.f32 %v3067, %v3310
    %v3327 = vadd.f32 %v3145, %v3311
    %v3328 = vadd.f32 %v3223, %v3312
    %v3329 = vadd.f32 %v3301, %v3313
    %v3330 = vmax.f32 %v3322, 0.0
    %v3331 = vmax.f32 %v3323, 0.0
    %v3332 = vmax.f32 %v3324, 0.0
    %v3333 = vmax.f32 %v3325, 0.0
    %v3334 = vmax.f32 %v3326, 0.0
    %v3335 = vmax.f32 %v3327, 0.0
    %v3336 = vmax.f32 %v3328, 0.0
    %v3337 = vmax.f32 %v3329, 0.0
    %v3338 = vpack.c.bf16 %v3330, %v3330
    %v3339 = vpack.c.bf16 %v3331, %v3331
    %v3340 = vpack.c.bf16 %v3332, %v3332
    %v3341 = vpack.c.bf16 %v3333, %v3333
    %v3342 = vpack.c.bf16 %v3334, %v3334
    %v3343 = vpack.c.bf16 %v3335, %v3335
    %v3344 = vpack.c.bf16 %v3336, %v3336
    %v3345 = vpack.c.bf16 %v3337, %v3337
    %v3346 = vld [vmem:[#allocation8] sm:$0xf]
    %v3347 = vld [vmem:[#allocation8 + $0x4] sm:$0xf]
    %v3348 = vld [vmem:[#allocation8 + $0x8] sm:$0xf]
    %v3349 = vld [vmem:[#allocation8 + $0xc] sm:$0xf]
    %v3350 = vld [vmem:[#allocation8 + $0x10] sm:$0xf]
    %v3351 = vld [vmem:[#allocation8 + $0x14] sm:$0xf]
    %v3352 = vld [vmem:[#allocation8 + $0x18] sm:$0xf]
    %v3353 = vld [vmem:[#allocation8 + $0x1c] sm:$0xf]
    %v3354 = vld [vmem:[#allocation8 + $0x20] sm:$0xf]
    %v3355 = vld [vmem:[#allocation8 + $0x24] sm:$0xf]
    %v3356 = vld [vmem:[#allocation8 + $0x28] sm:$0xf]
    %v3357 = vld [vmem:[#allocation8 + $0x2c] sm:$0xf]
    %v3358 = vld [vmem:[#allocation8 + $0x30] sm:$0xf]
    %v3359 = vld [vmem:[#allocation8 + $0x34] sm:$0xf]
    %v3360 = vld [vmem:[#allocation8 + $0x38] sm:$0xf]
    %v3361 = vld [vmem:[#allocation8 + $0x3c] sm:$0xf]
    %v3362 = vld [vmem:[#allocation8 + $0x40] sm:$0xf]
    %v3363 = vld [vmem:[#allocation8 + $0x44] sm:$0xf]
    %v3364 = vld [vmem:[#allocation8 + $0x48] sm:$0xf]
    %v3365 = vld [vmem:[#allocation8 + $0x4c] sm:$0xf]
    %v3366 = vld [vmem:[#allocation8 + $0x50] sm:$0xf]
    %v3367 = vld [vmem:[#allocation8 + $0x54] sm:$0xf]
    %v3368 = vld [vmem:[#allocation8 + $0x58] sm:$0xf]
    %v3369 = vld [vmem:[#allocation8 + $0x5c] sm:$0xf]
    %v3370 = vld [vmem:[#allocation8 + $0x60] sm:$0xf]
    %v3371 = vld [vmem:[#allocation8 + $0x64] sm:$0xf]
    %v3372 = vld [vmem:[#allocation8 + $0x68] sm:$0xf]
    %v3373 = vld [vmem:[#allocation8 + $0x6c] sm:$0xf]
    %v3374 = vld [vmem:[#allocation8 + $0x70] sm:$0xf]
    %v3375 = vld [vmem:[#allocation8 + $0x74] sm:$0xf]
    %v3376 = vld [vmem:[#allocation8 + $0x78] sm:$0xf]
    %v3377 = vld [vmem:[#allocation8 + $0x7c] sm:$0xf]
    %v3378 = vld [vmem:[#allocation8 + $0x80] sm:$0xf]
    %v3379 = vld [vmem:[#allocation8 + $0x84] sm:$0xf]
    %v3380 = vld [vmem:[#allocation8 + $0x88] sm:$0xf]
    %v3381 = vld [vmem:[#allocation8 + $0x8c] sm:$0xf]
    %v3382 = vld [vmem:[#allocation8 + $0x90] sm:$0xf]
    %v3383 = vld [vmem:[#allocation8 + $0x94] sm:$0xf]
    %v3384 = vld [vmem:[#allocation8 + $0x98] sm:$0xf]
    %v3385 = vld [vmem:[#allocation8 + $0x9c] sm:$0xf]
    %v3386 = vld [vmem:[#allocation8 + $0xa0] sm:$0xf]
    %v3387 = vld [vmem:[#allocation8 + $0xa4] sm:$0xf]
    %v3388 = vld [vmem:[#allocation8 + $0xa8] sm:$0xf]
    %v3389 = vld [vmem:[#allocation8 + $0xac] sm:$0xf]
    %v3390 = vld [vmem:[#allocation8 + $0xb0] sm:$0xf]
    %v3391 = vld [vmem:[#allocation8 + $0xb4] sm:$0xf]
    %v3392 = vld [vmem:[#allocation8 + $0xb8] sm:$0xf]
    %v3393 = vld [vmem:[#allocation8 + $0xbc] sm:$0xf]
    %v3394 = vld [vmem:[#allocation8 + $0xc0] sm:$0xf]
    %v3395 = vld [vmem:[#allocation8 + $0xc4] sm:$0xf]
    %v3396 = vld [vmem:[#allocation8 + $0xc8] sm:$0xf]
    %v3397 = vld [vmem:[#allocation8 + $0xcc] sm:$0xf]
    %v3398 = vld [vmem:[#allocation8 + $0xd0] sm:$0xf]
    %v3399 = vld [vmem:[#allocation8 + $0xd4] sm:$0xf]
    %v3400 = vld [vmem:[#allocation8 + $0xd8] sm:$0xf]
    %v3401 = vld [vmem:[#allocation8 + $0xdc] sm:$0xf]
    %v3402 = vld [vmem:[#allocation8 + $0xe0] sm:$0xf]
    %v3403 = vld [vmem:[#allocation8 + $0xe4] sm:$0xf]
    %v3404 = vld [vmem:[#allocation8 + $0xe8] sm:$0xf]
    %v3405 = vld [vmem:[#allocation8 + $0xec] sm:$0xf]
    %v3406 = vld [vmem:[#allocation8 + $0xf0] sm:$0xf]
    %v3407 = vld [vmem:[#allocation8 + $0xf4] sm:$0xf]
    %v3408 = vld [vmem:[#allocation8 + $0xf8] sm:$0xf]
    %v3409 = vld [vmem:[#allocation8 + $0xfc] sm:$0xf]
    %v3410 = vld [vmem:[#allocation8 + $0x100] sm:$0xf]
    %v3411 = vld [vmem:[#allocation8 + $0x104] sm:$0xf]
    %v3412 = vld [vmem:[#allocation8 + $0x108] sm:$0xf]
    %v3413 = vld [vmem:[#allocation8 + $0x10c] sm:$0xf]
    %v3414 = vld [vmem:[#allocation8 + $0x110] sm:$0xf]
    %v3415 = vld [vmem:[#allocation8 + $0x114] sm:$0xf]
    %v3416 = vld [vmem:[#allocation8 + $0x118] sm:$0xf]
    %v3417 = vld [vmem:[#allocation8 + $0x11c] sm:$0xf]
    %v3418 = vld [vmem:[#allocation8 + $0x120] sm:$0xf]
    %v3419 = vld [vmem:[#allocation8 + $0x124] sm:$0xf]
    %v3420 = vld [vmem:[#allocation8 + $0x128] sm:$0xf]
    %v3421 = vld [vmem:[#allocation8 + $0x12c] sm:$0xf]
    %v3422 = vld [vmem:[#allocation8 + $0x130] sm:$0xf]
    %v3423 = vld [vmem:[#allocation8 + $0x134] sm:$0xf]
    %v3424 = vld [vmem:[#allocation8 + $0x138] sm:$0xf]
    %v3425 = vld [vmem:[#allocation8 + $0x13c] sm:$0xf]
    %v3426 = vld [vmem:[#allocation8 + $0x140] sm:$0xf]
    %v3427 = vld [vmem:[#allocation8 + $0x144] sm:$0xf]
    %v3428 = vld [vmem:[#allocation8 + $0x148] sm:$0xf]
    %v3429 = vld [vmem:[#allocation8 + $0x14c] sm:$0xf]
    %v3430 = vld [vmem:[#allocation8 + $0x150] sm:$0xf]
    %v3431 = vld [vmem:[#allocation8 + $0x154] sm:$0xf]
    %v3432 = vld [vmem:[#allocation8 + $0x158] sm:$0xf]
    %v3433 = vld [vmem:[#allocation8 + $0x15c] sm:$0xf]
    %v3434 = vld [vmem:[#allocation8 + $0x160] sm:$0xf]
    %v3435 = vld [vmem:[#allocation8 + $0x164] sm:$0xf]
    %v3436 = vld [vmem:[#allocation8 + $0x168] sm:$0xf]
    %v3437 = vld [vmem:[#allocation8 + $0x16c] sm:$0xf]
    %v3438 = vld [vmem:[#allocation8 + $0x170] sm:$0xf]
    %v3439 = vld [vmem:[#allocation8 + $0x174] sm:$0xf]
    %v3440 = vld [vmem:[#allocation8 + $0x178] sm:$0xf]
    %v3441 = vld [vmem:[#allocation8 + $0x17c] sm:$0xf]
    %v3442 = vld [vmem:[#allocation8 + $0x180] sm:$0xf]
    %v3443 = vld [vmem:[#allocation8 + $0x184] sm:$0xf]
    %v3444 = vld [vmem:[#allocation8 + $0x188] sm:$0xf]
    %v3445 = vld [vmem:[#allocation8 + $0x18c] sm:$0xf]
    %v3446 = vld [vmem:[#allocation8 + $0x190] sm:$0xf]
    %v3447 = vld [vmem:[#allocation8 + $0x194] sm:$0xf]
    %v3448 = vld [vmem:[#allocation8 + $0x198] sm:$0xf]
    %v3449 = vld [vmem:[#allocation8 + $0x19c] sm:$0xf]
    %v3450 = vld [vmem:[#allocation8 + $0x1a0] sm:$0xf]
    %v3451 = vld [vmem:[#allocation8 + $0x1a4] sm:$0xf]
    %v3452 = vld [vmem:[#allocation8 + $0x1a8] sm:$0xf]
    %v3453 = vld [vmem:[#allocation8 + $0x1ac] sm:$0xf]
    %v3454 = vld [vmem:[#allocation8 + $0x1b0] sm:$0xf]
    %v3455 = vld [vmem:[#allocation8 + $0x1b4] sm:$0xf]
    %v3456 = vld [vmem:[#allocation8 + $0x1b8] sm:$0xf]
    %v3457 = vld [vmem:[#allocation8 + $0x1bc] sm:$0xf]
    %v3458 = vld [vmem:[#allocation8 + $0x1c0] sm:$0xf]
    %v3459 = vld [vmem:[#allocation8 + $0x1c4] sm:$0xf]
    %v3460 = vld [vmem:[#allocation8 + $0x1c8] sm:$0xf]
    %v3461 = vld [vmem:[#allocation8 + $0x1cc] sm:$0xf]
    %v3462 = vld [vmem:[#allocation8 + $0x1d0] sm:$0xf]
    %v3463 = vld [vmem:[#allocation8 + $0x1d4] sm:$0xf]
    %v3464 = vld [vmem:[#allocation8 + $0x1d8] sm:$0xf]
    %v3465 = vld [vmem:[#allocation8 + $0x1dc] sm:$0xf]
    %v3466 = vld [vmem:[#allocation8 + $0x1e0] sm:$0xf]
    %v3467 = vld [vmem:[#allocation8 + $0x1e4] sm:$0xf]
    %v3468 = vld [vmem:[#allocation8 + $0x1e8] sm:$0xf]
    %v3469 = vld [vmem:[#allocation8 + $0x1ec] sm:$0xf]
    %v3470 = vld [vmem:[#allocation8 + $0x1f0] sm:$0xf]
    %v3471 = vld [vmem:[#allocation8 + $0x1f4] sm:$0xf]
    %v3472 = vld [vmem:[#allocation8 + $0x1f8] sm:$0xf]
    %v3473 = vld [vmem:[#allocation8 + $0x1fc] sm:$0xf]
    %v3474 = vld [vmem:[#allocation10] sm:$0x1]
    %v3603 = vunpack.c.l.b16 %v3346
    %v3604 = vunpack.c.l.b16 %v3347
    %v3605 = vunpack.c.l.b16 %v3348
    %v3606 = vunpack.c.l.b16 %v3349
    %v3607 = vunpack.c.l.b16 %v3350
    %v3608 = vunpack.c.l.b16 %v3351
    %v3609 = vunpack.c.l.b16 %v3352
    %v3610 = vunpack.c.l.b16 %v3353
    %v3611 = vunpack.c.l.b16 %v3354
    %v3612 = vunpack.c.l.b16 %v3355
    %v3613 = vunpack.c.l.b16 %v3356
    %v3614 = vunpack.c.l.b16 %v3357
    %v3615 = vunpack.c.l.b16 %v3358
    %v3616 = vunpack.c.l.b16 %v3359
    %v3617 = vunpack.c.l.b16 %v3360
    %v3618 = vunpack.c.l.b16 %v3361
    %v3619 = vunpack.c.l.b16 %v3362
    %v3620 = vunpack.c.l.b16 %v3363
    %v3621 = vunpack.c.l.b16 %v3364
    %v3622 = vunpack.c.l.b16 %v3365
    %v3623 = vunpack.c.l.b16 %v3366
    %v3624 = vunpack.c.l.b16 %v3367
    %v3625 = vunpack.c.l.b16 %v3368
    %v3626 = vunpack.c.l.b16 %v3369
    %v3627 = vunpack.c.l.b16 %v3370
    %v3628 = vunpack.c.l.b16 %v3371
    %v3629 = vunpack.c.l.b16 %v3372
    %v3630 = vunpack.c.l.b16 %v3373
    %v3631 = vunpack.c.l.b16 %v3374
    %v3632 = vunpack.c.l.b16 %v3375
    %v3633 = vunpack.c.l.b16 %v3376
    %v3634 = vunpack.c.l.b16 %v3377
    %v3635 = vunpack.c.l.b16 %v3378
    %v3636 = vunpack.c.l.b16 %v3379
    %v3637 = vunpack.c.l.b16 %v3380
    %v3638 = vunpack.c.l.b16 %v3381
    %v3639 = vunpack.c.l.b16 %v3382
    %v3640 = vunpack.c.l.b16 %v3383
    %v3641 = vunpack.c.l.b16 %v3384
    %v3642 = vunpack.c.l.b16 %v3385
    %v3643 = vunpack.c.l.b16 %v3386
    %v3644 = vunpack.c.l.b16 %v3387
    %v3645 = vunpack.c.l.b16 %v3388
    %v3646 = vunpack.c.l.b16 %v3389
    %v3647 = vunpack.c.l.b16 %v3390
    %v3648 = vunpack.c.l.b16 %v3391
    %v3649 = vunpack.c.l.b16 %v3392
    %v3650 = vunpack.c.l.b16 %v3393
    %v3651 = vunpack.c.l.b16 %v3394
    %v3652 = vunpack.c.l.b16 %v3395
    %v3653 = vunpack.c.l.b16 %v3396
    %v3654 = vunpack.c.l.b16 %v3397
    %v3655 = vunpack.c.l.b16 %v3398
    %v3656 = vunpack.c.l.b16 %v3399
    %v3657 = vunpack.c.l.b16 %v3400
    %v3658 = vunpack.c.l.b16 %v3401
    %v3659 = vunpack.c.l.b16 %v3402
    %v3660 = vunpack.c.l.b16 %v3403
    %v3661 = vunpack.c.l.b16 %v3404
    %v3662 = vunpack.c.l.b16 %v3405
    %v3663 = vunpack.c.l.b16 %v3406
    %v3664 = vunpack.c.l.b16 %v3407
    %v3665 = vunpack.c.l.b16 %v3408
    %v3666 = vunpack.c.l.b16 %v3409
    %v3667 = vunpack.c.l.b16 %v3410
    %v3668 = vunpack.c.l.b16 %v3411
    %v3669 = vunpack.c.l.b16 %v3412
    %v3670 = vunpack.c.l.b16 %v3413
    %v3671 = vunpack.c.l.b16 %v3414
    %v3672 = vunpack.c.l.b16 %v3415
    %v3673 = vunpack.c.l.b16 %v3416
    %v3674 = vunpack.c.l.b16 %v3417
    %v3675 = vunpack.c.l.b16 %v3418
    %v3676 = vunpack.c.l.b16 %v3419
    %v3677 = vunpack.c.l.b16 %v3420
    %v3678 = vunpack.c.l.b16 %v3421
    %v3679 = vunpack.c.l.b16 %v3422
    %v3680 = vunpack.c.l.b16 %v3423
    %v3681 = vunpack.c.l.b16 %v3424
    %v3682 = vunpack.c.l.b16 %v3425
    %v3683 = vunpack.c.l.b16 %v3426
    %v3684 = vunpack.c.l.b16 %v3427
    %v3685 = vunpack.c.l.b16 %v3428
    %v3686 = vunpack.c.l.b16 %v3429
    %v3687 = vunpack.c.l.b16 %v3430
    %v3688 = vunpack.c.l.b16 %v3431
    %v3689 = vunpack.c.l.b16 %v3432
    %v3690 = vunpack.c.l.b16 %v3433
    %v3691 = vunpack.c.l.b16 %v3434
    %v3692 = vunpack.c.l.b16 %v3435
    %v3693 = vunpack.c.l.b16 %v3436
    %v3694 = vunpack.c.l.b16 %v3437
    %v3695 = vunpack.c.l.b16 %v3438
    %v3696 = vunpack.c.l.b16 %v3439
    %v3697 = vunpack.c.l.b16 %v3440
    %v3698 = vunpack.c.l.b16 %v3441
    %v3699 = vunpack.c.l.b16 %v3442
    %v3700 = vunpack.c.l.b16 %v3443
    %v3701 = vunpack.c.l.b16 %v3444
    %v3702 = vunpack.c.l.b16 %v3445
    %v3703 = vunpack.c.l.b16 %v3446
    %v3704 = vunpack.c.l.b16 %v3447
    %v3705 = vunpack.c.l.b16 %v3448
    %v3706 = vunpack.c.l.b16 %v3449
    %v3707 = vunpack.c.l.b16 %v3450
    %v3708 = vunpack.c.l.b16 %v3451
    %v3709 = vunpack.c.l.b16 %v3452
    %v3710 = vunpack.c.l.b16 %v3453
    %v3711 = vunpack.c.l.b16 %v3454
    %v3712 = vunpack.c.l.b16 %v3455
    %v3713 = vunpack.c.l.b16 %v3456
    %v3714 = vunpack.c.l.b16 %v3457
    %v3715 = vunpack.c.l.b16 %v3458
    %v3716 = vunpack.c.l.b16 %v3459
    %v3717 = vunpack.c.l.b16 %v3460
    %v3718 = vunpack.c.l.b16 %v3461
    %v3719 = vunpack.c.l.b16 %v3462
    %v3720 = vunpack.c.l.b16 %v3463
    %v3721 = vunpack.c.l.b16 %v3464
    %v3722 = vunpack.c.l.b16 %v3465
    %v3723 = vunpack.c.l.b16 %v3466
    %v3724 = vunpack.c.l.b16 %v3467
    %v3725 = vunpack.c.l.b16 %v3468
    %v3726 = vunpack.c.l.b16 %v3469
    %v3727 = vunpack.c.l.b16 %v3470
    %v3728 = vunpack.c.l.b16 %v3471
    %v3729 = vunpack.c.l.b16 %v3472
    %v3730 = vunpack.c.l.b16 %v3473
    %v3731 = vpack.c.b16 %v3604, %v3603
    %v3732 = vpack.c.b16 %v3606, %v3605
    %v3733 = vpack.c.b16 %v3608, %v3607
    %v3734 = vpack.c.b16 %v3610, %v3609
    %v3735 = vpack.c.b16 %v3612, %v3611
    %v3736 = vpack.c.b16 %v3614, %v3613
    %v3737 = vpack.c.b16 %v3616, %v3615
    %v3738 = vpack.c.b16 %v3618, %v3617
    %v3739 = vpack.c.b16 %v3620, %v3619
    %v3740 = vpack.c.b16 %v3622, %v3621
    %v3741 = vpack.c.b16 %v3624, %v3623
    %v3742 = vpack.c.b16 %v3626, %v3625
    %v3743 = vpack.c.b16 %v3628, %v3627
    %v3744 = vpack.c.b16 %v3630, %v3629
    %v3745 = vpack.c.b16 %v3632, %v3631
    %v3746 = vpack.c.b16 %v3634, %v3633
    %v3747 = vpack.c.b16 %v3636, %v3635
    %v3748 = vpack.c.b16 %v3638, %v3637
    %v3749 = vpack.c.b16 %v3640, %v3639
    %v3750 = vpack.c.b16 %v3642, %v3641
    %v3751 = vpack.c.b16 %v3644, %v3643
    %v3752 = vpack.c.b16 %v3646, %v3645
    %v3753 = vpack.c.b16 %v3648, %v3647
    %v3754 = vpack.c.b16 %v3650, %v3649
    %v3755 = vpack.c.b16 %v3652, %v3651
    %v3756 = vpack.c.b16 %v3654, %v3653
    %v3757 = vpack.c.b16 %v3656, %v3655
    %v3758 = vpack.c.b16 %v3658, %v3657
    %v3759 = vpack.c.b16 %v3660, %v3659
    %v3760 = vpack.c.b16 %v3662, %v3661
    %v3761 = vpack.c.b16 %v3664, %v3663
    %v3762 = vpack.c.b16 %v3666, %v3665
    %v3763 = vpack.c.b16 %v3668, %v3667
    %v3764 = vpack.c.b16 %v3670, %v3669
    %v3765 = vpack.c.b16 %v3672, %v3671
    %v3766 = vpack.c.b16 %v3674, %v3673
    %v3767 = vpack.c.b16 %v3676, %v3675
    %v3768 = vpack.c.b16 %v3678, %v3677
    %v3769 = vpack.c.b16 %v3680, %v3679
    %v3770 = vpack.c.b16 %v3682, %v3681
    %v3771 = vpack.c.b16 %v3684, %v3683
    %v3772 = vpack.c.b16 %v3686, %v3685
    %v3773 = vpack.c.b16 %v3688, %v3687
    %v3774 = vpack.c.b16 %v3690, %v3689
    %v3775 = vpack.c.b16 %v3692, %v3691
    %v3776 = vpack.c.b16 %v3694, %v3693
    %v3777 = vpack.c.b16 %v3696, %v3695
    %v3778 = vpack.c.b16 %v3698, %v3697
    %v3779 = vpack.c.b16 %v3700, %v3699
    %v3780 = vpack.c.b16 %v3702, %v3701
    %v3781 = vpack.c.b16 %v3704, %v3703
    %v3782 = vpack.c.b16 %v3706, %v3705
    %v3783 = vpack.c.b16 %v3708, %v3707
    %v3784 = vpack.c.b16 %v3710, %v3709
    %v3785 = vpack.c.b16 %v3712, %v3711
    %v3786 = vpack.c.b16 %v3714, %v3713
    %v3787 = vpack.c.b16 %v3716, %v3715
    %v3788 = vpack.c.b16 %v3718, %v3717
    %v3789 = vpack.c.b16 %v3720, %v3719
    %v3790 = vpack.c.b16 %v3722, %v3721
    %v3791 = vpack.c.b16 %v3724, %v3723
    %v3792 = vpack.c.b16 %v3726, %v3725
    %v3793 = vpack.c.b16 %v3728, %v3727
    %v3794 = vpack.c.b16 %v3730, %v3729
    %3859 = vmatpush.bf16.msra.mxu0 %v3738
    %3860 = vmatpush.bf16.msra.mxu0 %v3737
    %3861 = vmatpush.bf16.msra.mxu0 %v3736
    %3862 = vmatpush.bf16.msra.mxu0 %v3735
    %3863 = vmatpush.bf16.msra.mxu0 %v3734
    %3864 = vmatpush.bf16.msra.mxu0 %v3733
    %3865 = vmatpush.bf16.msra.mxu0 %v3732
    %3866 = vmatpush.bf16.msra.mxu0 %v3731
    %3867 = vmatmul.bf16.gmra.mxu0 %v3338
    %v3868 = vpop.f32.mrf.mxu0
    %v3869 = vadd.f32 %v3474, %v3868
    %v3870 = vpop.f32.mrf.mxu0
    %3871 = vdwg.mxu0
    %3872 = vmatpush.bf16.msra.mxu0 %v3746
    %3873 = vmatpush.bf16.msra.mxu0 %v3745
    %3874 = vmatpush.bf16.msra.mxu0 %v3744
    %3875 = vmatpush.bf16.msra.mxu0 %v3743
    %3876 = vmatpush.bf16.msra.mxu0 %v3742
    %3877 = vmatpush.bf16.msra.mxu0 %v3741
    %3878 = vmatpush.bf16.msra.mxu0 %v3740
    %3879 = vmatpush.bf16.msra.mxu0 %v3739
    %3880 = vmatmul.bf16.gmra.mxu0 %v3339
    %v3881 = vpop.f32.mrf.mxu0
    %v3882 = vadd.f32 %v3869, %v3881
    %v3883 = vpop.f32.mrf.mxu0
    %3884 = vdwg.mxu0
    %3885 = vmatpush.bf16.msra.mxu0 %v3754
    %3886 = vmatpush.bf16.msra.mxu0 %v3753
    %3887 = vmatpush.bf16.msra.mxu0 %v3752
    %3888 = vmatpush.bf16.msra.mxu0 %v3751
    %3889 = vmatpush.bf16.msra.mxu0 %v3750
    %3890 = vmatpush.bf16.msra.mxu0 %v3749
    %3891 = vmatpush.bf16.msra.mxu0 %v3748
    %3892 = vmatpush.bf16.msra.mxu0 %v3747
    %3893 = vmatmul.bf16.gmra.mxu0 %v3340
    %v3894 = vpop.f32.mrf.mxu0
    %v3895 = vadd.f32 %v3882, %v3894
    %v3896 = vpop.f32.mrf.mxu0
    %3897 = vdwg.mxu0
    %3898 = vmatpush.bf16.msra.mxu0 %v3762
    %3899 = vmatpush.bf16.msra.mxu0 %v3761
    %3900 = vmatpush.bf16.msra.mxu0 %v3760
    %3901 = vmatpush.bf16.msra.mxu0 %v3759
    %3902 = vmatpush.bf16.msra.mxu0 %v3758
    %3903 = vmatpush.bf16.msra.mxu0 %v3757
    %3904 = vmatpush.bf16.msra.mxu0 %v3756
    %3905 = vmatpush.bf16.msra.mxu0 %v3755
    %3906 = vmatmul.bf16.gmra.mxu0 %v3341
    %v3907 = vpop.f32.mrf.mxu0
    %v3908 = vadd.f32 %v3895, %v3907
    %v3909 = vpop.f32.mrf.mxu0
    %3910 = vdwg.mxu0
    %3911 = vmatpush.bf16.msra.mxu0 %v3770
    %3912 = vmatpush.bf16.msra.mxu0 %v3769
    %3913 = vmatpush.bf16.msra.mxu0 %v3768
    %3914 = vmatpush.bf16.msra.mxu0 %v3767
    %3915 = vmatpush.bf16.msra.mxu0 %v3766
    %3916 = vmatpush.bf16.msra.mxu0 %v3765
    %3917 = vmatpush.bf16.msra.mxu0 %v3764
    %3918 = vmatpush.bf16.msra.mxu0 %v3763
    %3919 = vmatmul.bf16.gmra.mxu0 %v3342
    %v3920 = vpop.f32.mrf.mxu0
    %v3921 = vadd.f32 %v3908, %v3920
    %v3922 = vpop.f32.mrf.mxu0
    %3923 = vdwg.mxu0
    %3924 = vmatpush.bf16.msra.mxu0 %v3778
    %3925 = vmatpush.bf16.msra.mxu0 %v3777
    %3926 = vmatpush.bf16.msra.mxu0 %v3776
    %3927 = vmatpush.bf16.msra.mxu0 %v3775
    %3928 = vmatpush.bf16.msra.mxu0 %v3774
    %3929 = vmatpush.bf16.msra.mxu0 %v3773
    %3930 = vmatpush.bf16.msra.mxu0 %v3772
    %3931 = vmatpush.bf16.msra.mxu0 %v3771
    %3932 = vmatmul.bf16.gmra.mxu0 %v3343
    %v3933 = vpop.f32.mrf.mxu0
    %v3934 = vadd.f32 %v3921, %v3933
    %v3935 = vpop.f32.mrf.mxu0
    %3936 = vdwg.mxu0
    %3937 = vmatpush.bf16.msra.mxu0 %v3786
    %3938 = vmatpush.bf16.msra.mxu0 %v3785
    %3939 = vmatpush.bf16.msra.mxu0 %v3784
    %3940 = vmatpush.bf16.msra.mxu0 %v3783
    %3941 = vmatpush.bf16.msra.mxu0 %v3782
    %3942 = vmatpush.bf16.msra.mxu0 %v3781
    %3943 = vmatpush.bf16.msra.mxu0 %v3780
    %3944 = vmatpush.bf16.msra.mxu0 %v3779
    %3945 = vmatmul.bf16.gmra.mxu0 %v3344
    %v3946 = vpop.f32.mrf.mxu0
    %v3947 = vadd.f32 %v3934, %v3946
    %v3948 = vpop.f32.mrf.mxu0
    %3949 = vdwg.mxu0
    %3950 = vmatpush.bf16.msra.mxu0 %v3794
    %3951 = vmatpush.bf16.msra.mxu0 %v3793
    %3952 = vmatpush.bf16.msra.mxu0 %v3792
    %3953 = vmatpush.bf16.msra.mxu0 %v3791
    %3954 = vmatpush.bf16.msra.mxu0 %v3790
    %3955 = vmatpush.bf16.msra.mxu0 %v3789
    %3956 = vmatpush.bf16.msra.mxu0 %v3788
    %3957 = vmatpush.bf16.msra.mxu0 %v3787
    %3958 = vmatmul.bf16.gmra.mxu0 %v3345
    %v3959 = vpop.f32.mrf.mxu0
    %v3960 = vadd.f32 %v3947, %v3959
    %v3961 = vpop.f32.mrf.mxu0
    %3962 = vdwg.mxu0
    %3963 = vst [vmem:[#allocation11] sm:$0x1] %v3960
    // Predicated region
    $region50: #{mymodel_forward.1} parent=1 // pred_check
      _
    $region51: #{mymodel_forward.1} parent=1 // pred_check_branch
      %3965 = sbr.rel (0) target = $region53
    $region52: #{mymodel_forward.1} parent=1 // pred_region
      %3967 = vsyncadd [#allocation4], 0
      %s3969 = sshll.u32 [#allocation11], 4
      %s3970 = int_to_ptr.vmem [resolvable:$true] %s3969
      %s3971 = sshll.u32 %s7, 4
      %s3972 = int_to_ptr.hbm [resolvable:$true] %s3971
      %3974 = dma.vmem_to_hbm [thread:$0]  %s3970, 16, %s3972, [#allocation4]
    $region53: #{mymodel_forward.1} parent=1 // pred_fallthru
      _
    // Predicated region
    $region54: #{mymodel_forward.1} parent=1 // pred_check
      _
    $region55: #{mymodel_forward.1} parent=1 // pred_check_branch
      %3976 = sbr.rel (0) target = $region57
    $region56: #{mymodel_forward.1} parent=1 // pred_region
      %3978 = dma.done [#allocation4], 16
    $region57: #{mymodel_forward.1} parent=1 // pred_fallthru
      _
    %3979 = vsyncpa [#allocation3], 1
    %3980 = vsyncpa [#allocation6], 1
    %3981 = vsyncpa [#allocation9], 1
    %3982 = vsyncpa [#allocation4], 1

</llo_original>
